<compile_context>
chip_gen: v7x
topology: tpu7x:2x2x1
jax: 0.10.0
libtpu: 0.0.40
codegen_flags: <defaults>
</compile_context>

<pallas_src>
import functools

import jax
import jax.numpy as jnp
import numpy as np
from jax.experimental import pallas as pl
from jax.experimental.pallas import tpu as pltpu


# -----------------------------------------------------------------------------
# helpers
# -----------------------------------------------------------------------------
def _pick_time_chunk(T, max_chunk=16):
    """Largest divisor of T that is <= max_chunk (prime T degrades to 1, still correct)."""
    for c in range(min(T, max_chunk), 0, -1):
        if T % c == 0:
            return c
    return 1


def _fold_bias(bi, bh, H):
    """Fold r/z hidden biases into the input-side bias; keep only b_hn on the h path.

    bi, bh: (1, 3H) in PyTorch gate order [r | z | n].
    Returns (bx, bhn):
      bx  = bi + [bh_r, bh_z, 0]   -> folded into the precomputed input projection
      bhn = [0, 0, bh_n]           -> added to h @ Wh inside the kernel (needed under r*)
    """
    zeros_h = jnp.zeros((1, H), jnp.float32)
    zeros_2h = jnp.zeros((1, 2 * H), jnp.float32)
    bx = bi + jnp.concatenate([bh[:, : 2 * H], zeros_h], axis=1)
    bhn = jnp.concatenate([zeros_2h, bh[:, 2 * H:]], axis=1)
    return bx, bhn


# -----------------------------------------------------------------------------
# Kernel 1: bidirectional GRU recurrence over precomputed input pre-activations.
# Grid = time chunks (sequential, "arbitrary"); the fused [h_f|h_b] state lives in
# VMEM scratch.  The backward direction is time-reversed purely via index_maps
# (chunk nC-1-c) plus in-kernel row index (C-1-i), so both GRU outputs land in HBM
# already in original time order and no wrapper flips/concats are needed.
# -----------------------------------------------------------------------------
def _gru_kernel(gif_ref, gib_ref, wh_ref, bhn_ref, outf_ref, outb_ref, h_scr):
    C = gif_ref.shape[0]
    B, H2 = h_scr.shape
    H = H2 // 2
    H3 = 3 * H

    @pl.when(pl.program_id(0) == 0)
    def _():
        h_scr[...] = jnp.zeros_like(h_scr)

    # Resident weights; bias broadcast hoisted out of the unrolled time loop.
    wh = wh_ref[...]                                           # (2H, 6H) bf16
    bhn = jnp.broadcast_to(bhn_ref[...], (B, 2 * H3))          # (B, 6H) f32, once per chunk

    def gates(gi, gh, h):
        r = jax.nn.sigmoid(gi[:, :H] + gh[:, :H])
        z = jax.nn.sigmoid(gi[:, H:2 * H] + gh[:, H:2 * H])
        n = jnp.tanh(gi[:, 2 * H:] + r * gh[:, 2 * H:])
        return (1.0 - z) * n + z * h

    def body(i, h_cat):
        # One fused recurrent matmul per timestep for BOTH directions
        # (block-diagonal Wh): bf16 operands, f32 accumulation.
        gh = jnp.dot(h_cat.astype(jnp.bfloat16), wh,
                     preferred_element_type=jnp.float32) + bhn   # (B, 6H)
        h_f = gates(gif_ref[i].astype(jnp.float32), gh[:, :H3], h_cat[:, :H])
        h_b = gates(gib_ref[C - 1 - i].astype(jnp.float32), gh[:, H3:], h_cat[:, H:])
        # Stores land in original time order: fwd row i, bwd row C-1-i of the
        # (reverse-indexed) output block.
        outf_ref[i] = h_f.astype(outf_ref.dtype)
        outb_ref[C - 1 - i] = h_b.astype(outb_ref.dtype)
        return jnp.concatenate([h_f, h_b], axis=-1)

    h_scr[...] = jax.lax.fori_loop(0, C, body, h_scr[...], unroll=True)


def bigru_pallas(gi_f, gi_b, wh_bd, bhn_cat, H):
    """gi_f / gi_b: (T, B, 3H) bf16 pre-activations (both in ORIGINAL time order).

    wh_bd: (2H, 6H) bf16 block-diagonal recurrent weight; bhn_cat: (1, 6H) f32.
    Returns (out_f, out_b): (T, B, H) bf16 each, both in original time order.
    """
    T, B, _ = gi_f.shape
    C = _pick_time_chunk(T)
    nC = T // C
    const2 = lambda c: (0, 0)

    grid_spec = pltpu.PrefetchScalarGridSpec(
        num_scalar_prefetch=0,
        grid=(nC,),
        in_specs=[
            pl.BlockSpec((C, B, 3 * H), lambda c: (c, 0, 0)),           # gi fwd
            pl.BlockSpec((C, B, 3 * H), lambda c: (nC - 1 - c, 0, 0)),  # gi bwd (reverse chunks)
            pl.BlockSpec((2 * H, 6 * H), const2),                       # block-diag Wh (bf16)
            pl.BlockSpec((1, 6 * H), const2),                           # [0,0,bhn_f | 0,0,bhn_b]
        ],
        out_specs=[
            pl.BlockSpec((C, B, H), lambda c: (c, 0, 0)),               # out_f, original order
            pl.BlockSpec((C, B, H), lambda c: (nC - 1 - c, 0, 0)),      # out_b, original order
        ],
        scratch_shapes=[pltpu.VMEM((B, 2 * H), jnp.float32)],
    )

    return pl.pallas_call(
        _gru_kernel,
        out_shape=(jax.ShapeDtypeStruct((T, B, H), jnp.bfloat16),
                   jax.ShapeDtypeStruct((T, B, H), jnp.bfloat16)),
        grid_spec=grid_spec,
        compiler_params=pltpu.CompilerParams(
            dimension_semantics=("arbitrary",),
            vmem_limit_bytes=64 * 1024 * 1024),
        cost_estimate=pl.CostEstimate(
            flops=24 * T * B * H * H,                   # (B,2H)@(2H,6H) per timestep
            transcendentals=6 * T * B * H,              # 2 sigmoid + 1 tanh per dir per elem
            bytes_accessed=2 * (2 * T * B * 3 * H + 2 * T * B * H) + 2 * (2 * H * 6 * H),
        ),
    )(gi_f, gi_b, wh_bd, bhn_cat)


# -----------------------------------------------------------------------------
# Kernel 2: fused fc1 + LayerNorm + ReLU + fc2 + LayerNorm + ReLU + residual.
# Consumes the GRU outputs time-major (fwd/bwd concatenated in VMEM) plus the
# time-major residual; tiled over time chunks on a "parallel" grid axis, weights
# resident via constant index maps, bf16 MXU operands / f32 accumulation.
# -----------------------------------------------------------------------------
def _mlp_kernel(yf_ref, yb_ref, xres_ref,
                w1_ref, b1_ref, g1_ref, be1_ref,
                w2_ref, b2_ref, g2_ref, be2_ref,
                o_ref):
    eps = 1e-5
    Ct, B, H = xres_ref.shape
    M = Ct * B

    def layernorm(v, gamma, beta):
        mu = jnp.mean(v, axis=-1, keepdims=True)
        var = jnp.mean((v - mu) ** 2, axis=-1, keepdims=True)
        return (v - mu) * jax.lax.rsqrt(var + eps) * gamma + beta

    # Concatenate fwd/bwd GRU halves in VMEM (replaces the wrapper-side HBM concat).
    y = jnp.concatenate([yf_ref[...], yb_ref[...]], axis=-1).reshape(M, 2 * H)   # bf16
    h = jnp.dot(y, w1_ref[...], preferred_element_type=jnp.float32) + b1_ref[...]
    h = jnp.maximum(layernorm(h, g1_ref[...], be1_ref[...]), 0.0)
    h = jnp.dot(h.astype(jnp.bfloat16), w2_ref[...],
                preferred_element_type=jnp.float32) + b2_ref[...]
    h = jnp.maximum(layernorm(h, g2_ref[...], be2_ref[...]), 0.0)
    o_ref[...] = h.reshape(Ct, B, H) + xres_ref[...]


def mlp_pallas(out_f, out_b, x_t, params):
    T, B, H = x_t.shape
    D_in, D_mid = 2 * H, 4 * H
    # Aim for ~512 rows per tile (good HBM pipelining) while keeping Ct a divisor of T.
    Ct = _pick_time_chunk(T, max_chunk=max(1, 512 // max(B, 1)))
    const2 = lambda t: (0, 0)
    bf16 = jnp.bfloat16

    grid_spec = pltpu.PrefetchScalarGridSpec(
        num_scalar_prefetch=0,
        grid=(T // Ct,),
        in_specs=[
            pl.BlockSpec((Ct, B, H), lambda t: (t, 0, 0)),   # GRU fwd output (bf16)
            pl.BlockSpec((Ct, B, H), lambda t: (t, 0, 0)),   # GRU bwd output (bf16)
            pl.BlockSpec((Ct, B, H), lambda t: (t, 0, 0)),   # residual x (f32, time-major)
            pl.BlockSpec((D_in, D_mid), const2),             # w1 (bf16)
            pl.BlockSpec((1, D_mid), const2),                # b1
            pl.BlockSpec((1, D_mid), const2),                # g1
            pl.BlockSpec((1, D_mid), const2),                # be1
            pl.BlockSpec((D_mid, H), const2),                # w2 (bf16)
            pl.BlockSpec((1, H), const2),                    # b2
            pl.BlockSpec((1, H), const2),                    # g2
            pl.BlockSpec((1, H), const2),                    # be2
        ],
        out_specs=pl.BlockSpec((Ct, B, H), lambda t: (t, 0, 0)),
    )

    M = T * B
    return pl.pallas_call(
        _mlp_kernel,
        out_shape=jax.ShapeDtypeStruct((T, B, H), jnp.float32),
        grid_spec=grid_spec,
        compiler_params=pltpu.CompilerParams(
            dimension_semantics=("parallel",),
            vmem_limit_bytes=64 * 1024 * 1024),
        cost_estimate=pl.CostEstimate(
            flops=2 * M * (D_in * D_mid + D_mid * H),
            transcendentals=0,
            bytes_accessed=(2 * M * H * 2 + 2 * M * H * 4
                            + 2 * (D_in * D_mid + D_mid * H)),
        ),
    )(out_f, out_b, x_t,
      params["w1"].astype(bf16), params["b1"], params["g1"], params["be1"],
      params["w2"].astype(bf16), params["b2"], params["g2"], params["be2"])


# -----------------------------------------------------------------------------
# Module wrapper.  Remaining XLA glue: one H-wide transpose of x to time-major
# (reused as the residual) and one H-wide transpose of the final result back to
# batch-first.  All 2H/3H/6H-wide streams stay inside the kernels.
# -----------------------------------------------------------------------------
def residual_bigru_forward(x, params):
    """x: (B, T, H) batch-first, like the PyTorch module (h=None)."""
    B, T, H = x.shape
    f32, bf16 = jnp.float32, jnp.bfloat16

    x_t = jnp.transpose(x, (1, 0, 2))                                 # (T, B, H) time-major

    bx_f, bhn_f = _fold_bias(params["bi_f"], params["bh_f"], H)
    bx_b, bhn_b = _fold_bias(params["bi_b"], params["bh_b"], H)

    # Hoisted input projections: one GEMM per direction, bf16 operands / f32 accumulate,
    # stored bf16 (halves the GRU kernel's dominant DMA).  No lane slicing, no flips.
    x2d = x_t.reshape(T * B, H).astype(bf16)
    gi_f = (jnp.dot(x2d, params["wi_f"].astype(bf16), preferred_element_type=f32)
            + bx_f).astype(bf16).reshape(T, B, 3 * H)
    gi_b = (jnp.dot(x2d, params["wi_b"].astype(bf16), preferred_element_type=f32)
            + bx_b).astype(bf16).reshape(T, B, 3 * H)

    # Block-diagonal recurrent weight: one (B,2H)@(2H,6H) MXU push per timestep.
    zeros = jnp.zeros((H, 3 * H), f32)
    wh_bd = jnp.concatenate(
        [jnp.concatenate([params["wh_f"], zeros], axis=1),
         jnp.concatenate([zeros, params["wh_b"]], axis=1)], axis=0).astype(bf16)
    bhn_cat = jnp.concatenate([bhn_f, bhn_b], axis=1)                 # (1, 6H)

    out_f, out_b = bigru_pallas(gi_f, gi_b, wh_bd, bhn_cat, H)        # (T,B,H) bf16 each
    # Final hidden states: fwd at t=T-1, bwd (original time order) at t=0.
    new_h = jnp.stack([out_f[-1], out_b[0]], axis=0).astype(f32)      # (2, B, H)

    res_t = mlp_pallas(out_f, out_b, x_t, params)                     # (T, B, H) f32
    res = jnp.transpose(res_t, (1, 0, 2))                             # (B, T, H)
    return res, new_h


# -----------------------------------------------------------------------------
# Deterministic parameter init (PyTorch-style uniform(-1/sqrt(H), 1/sqrt(H))).
# GRU weights stored pre-fused as (H, 3H) with gate order [r | z | n].
# -----------------------------------------------------------------------------
def init_params(key, H):
    k = 1.0 / np.sqrt(H)
    names_shapes = [
        ("wi_f", (H, 3 * H)), ("wh_f", (H, 3 * H)), ("bi_f", (1, 3 * H)), ("bh_f", (1, 3 * H)),
        ("wi_b", (H, 3 * H)), ("wh_b", (H, 3 * H)), ("bi_b", (1, 3 * H)), ("bh_b", (1, 3 * H)),
        ("w1", (2 * H, 4 * H)), ("b1", (1, 4 * H)),
        ("w2", (4 * H, H)), ("b2", (1, H)),
    ]
    keys = jax.random.split(key, len(names_shapes))
    params = {
        n: jax.random.uniform(kk, s, jnp.float32, -k, k)
        for (n, s), kk in zip(names_shapes, keys)
    }
    params["g1"] = jnp.ones((1, 4 * H), jnp.float32)
    params["be1"] = jnp.zeros((1, 4 * H), jnp.float32)
    params["g2"] = jnp.ones((1, H), jnp.float32)
    params["be2"] = jnp.zeros((1, H), jnp.float32)
    return params


# -----------------------------------------------------------------------------
# Pure-JAX f32 reference (numerical sanity check)
# -----------------------------------------------------------------------------
def _gru_dir_ref(x_t, wi, wh, bi, bh, H):
    hp = functools.partial(jnp.matmul, precision=jax.lax.Precision.HIGHEST)

    def step(h, x):
        gi = hp(x, wi) + bi
        gh = hp(h, wh) + bh
        r = jax.nn.sigmoid(gi[:, :H] + gh[:, :H])
        z = jax.nn.sigmoid(gi[:, H:2 * H] + gh[:, H:2 * H])
        n = jnp.tanh(gi[:, 2 * H:] + r * gh[:, 2 * H:])
        h_new = (1.0 - z) * n + z * h
        return h_new, h_new

    h0 = jnp.zeros((x_t.shape[1], H), jnp.float32)
    hT, ys = jax.lax.scan(step, h0, x_t)
    return ys, hT


def reference_forward(x, p):
    B, T, H = x.shape
    hp = functools.partial(jnp.matmul, precision=jax.lax.Precision.HIGHEST)
    x_t = jnp.transpose(x, (1, 0, 2))
    out_f, hn_f = _gru_dir_ref(x_t, p["wi_f"], p["wh_f"], p["bi_f"], p["bh_f"], H)
    out_b_rev, hn_b = _gru_dir_ref(x_t[::-1], p["wi_b"], p["wh_b"], p["bi_b"], p["bh_b"], H)
    out_b = out_b_rev[::-1]
    gru_out = jnp.transpose(jnp.concatenate([out_f, out_b], axis=-1), (1, 0, 2))
    new_h = jnp.stack([hn_f, hn_b], axis=0)

    def ln(v, g, b):
        mu = jnp.mean(v, -1, keepdims=True)
        var = jnp.mean((v - mu) ** 2, -1, keepdims=True)
        return (v - mu) / jnp.sqrt(var + 1e-5) * g + b

    y = gru_out.reshape(B * T, 2 * H)
    h = jnp.maximum(ln(hp(y, p["w1"]) + p["b1"], p["g1"], p["be1"]), 0.0)
    h = jnp.maximum(ln(hp(h, p["w2"]) + p["b2"], p["g2"], p["be2"]), 0.0)
    res = (h + x.reshape(B * T, H)).reshape(B, T, H)
    return res, new_h


if __name__ == "__main__":
    B, T, H = 2, 8, 32
    key = jax.random.PRNGKey(0)
    key_x, key_p = jax.random.split(key)
    x = jax.random.normal(key_x, (B, T, H), jnp.float32)
    params = init_params(key_p, H)

    res, new_h = jax.jit(residual_bigru_forward)(x, params)
    jax.block_until_ready((res, new_h))

    # Looser tolerance than the f32 version: pre-activations / GRU outputs are stored in
    # bf16 and all matmuls use bf16 operands (f32 accumulation); the two LayerNorms
    # amplify that rounding slightly vs. the f32-HIGHEST reference.
    res_ref, new_h_ref = reference_forward(x, params)
    np.testing.assert_allclose(np.asarray(res), np.asarray(res_ref), atol=5e-2, rtol=5e-2)
    np.testing.assert_allclose(np.asarray(new_h), np.asarray(new_h_ref), atol=5e-2, rtol=5e-2)

    print("KERNEL_OK")
</pallas_src>

<mosaic_0001>
module attributes {stable_mosaic.version = 11 : i64} {
  func.func @_gru_kernel(%arg0: i32, %arg1: memref<8x2x96xbf16, #tpu.memory_space<vmem>>, %arg2: memref<8x2x96xbf16, #tpu.memory_space<vmem>>, %arg3: memref<64x192xbf16, #tpu.memory_space<vmem>>, %arg4: memref<1x192xf32, #tpu.memory_space<vmem>>, %arg5: memref<8x2x32xbf16, #tpu.memory_space<vmem>>, %arg6: memref<8x2x32xbf16, #tpu.memory_space<vmem>>, %arg7: memref<2x64xf32, #tpu.memory_space<vmem>>) attributes {dimension_semantics = [#tpu.dimension_semantics<arbitrary>], iteration_bounds = array<i64: 1>, scalar_prefetch = 0 : i64, scratch_operands = 1 : i64, tpu.core_type = #tpu.core_type<tc>, window_params = [{transform_indices = @transform_0, window_bounds = array<i64: 8, 2, 96>}, {transform_indices = @transform_1, window_bounds = array<i64: 8, 2, 96>}, {pipeline_mode = #tpu.pipeline_mode<synchronous>, transform_indices = @transform_2, window_bounds = array<i64: 64, 192>}, {pipeline_mode = #tpu.pipeline_mode<synchronous>, transform_indices = @transform_3, window_bounds = array<i64: 1, 192>}, {transform_indices = @transform_4, window_bounds = array<i64: 8, 2, 32>}, {transform_indices = @transform_5, window_bounds = array<i64: 8, 2, 32>}]} {
    %c0_i32 = arith.constant 0 : i32
    %0 = arith.cmpi eq, %arg0, %c0_i32 : i32
    %1 = arith.extui %0 : i1 to i32
    %c0_i32_0 = arith.constant 0 : i32
    %2 = arith.cmpi ne, %1, %c0_i32_0 : i32
    scf.if %2 {
      %cst_144 = arith.constant 0.000000e+00 : f32
      %649 = vector.broadcast %cst_144 : f32 to vector<2x64xf32>
      %c0_145 = arith.constant 0 : index
      %c0_146 = arith.constant 0 : index
      %650 = vector.load %arg7[%c0_145, %c0_146] : memref<2x64xf32, #tpu.memory_space<vmem>>, vector<2x64xf32>
      tpu.vector_store %arg7[%c0_145, %c0_146], %649 {strides = array<i32>} : memref<2x64xf32, #tpu.memory_space<vmem>>, vector<2x64xf32>,
    } else {
    }
    %c0 = arith.constant 0 : index
    %c0_1 = arith.constant 0 : index
    %3 = vector.load %arg3[%c0, %c0_1] : memref<64x192xbf16, #tpu.memory_space<vmem>>, vector<64x192xbf16>
    %c0_2 = arith.constant 0 : index
    %c0_3 = arith.constant 0 : index
    %4 = vector.load %arg4[%c0_2, %c0_3] : memref<1x192xf32, #tpu.memory_space<vmem>>, vector<1x192xf32>
    %5 = vector.shape_cast %4 : vector<1x192xf32> to vector<1x192xf32>
    %6 = vector.broadcast %5 : vector<1x192xf32> to vector<2x192xf32>
    %c0_4 = arith.constant 0 : index
    %c0_5 = arith.constant 0 : index
    %7 = vector.load %arg7[%c0_4, %c0_5] : memref<2x64xf32, #tpu.memory_space<vmem>>, vector<2x64xf32>
    %c0_i32_6 = arith.constant 0 : i32
    %8 = arith.truncf %7 : vector<2x64xf32> to vector<2x64xbf16>
    %cst = arith.constant dense<0.000000e+00> : vector<2x192xf32>
    %9 = tpu.matmul %8, %3, %cst {dimension_numbers = #tpu.dot_dimension_numbers<[1], [0], [0], [1], [0, 0, 1, 1], [], []>} : vector<2x64xbf16>, vector<64x192xbf16>, vector<2x192xf32> -> vector<2x192xf32>
    %10 = arith.addf %9, %6 : vector<2x192xf32>
    %11 = arith.index_cast %c0_i32_6 : i32 to index
    %c0_7 = arith.constant 0 : index
    %c0_8 = arith.constant 0 : index
    %12 = vector.load %arg1[%11, %c0_7, %c0_8] : memref<8x2x96xbf16, #tpu.memory_space<vmem>>, vector<1x2x96xbf16>
    %13 = vector.shape_cast %12 : vector<1x2x96xbf16> to vector<2x96xbf16>
    %14 = arith.extf %13 : vector<2x96xbf16> to vector<2x96xf32>
    %15 = vector.extract_strided_slice %10 {offsets = [0, 0], sizes = [2, 96], strides = [1, 1]} : vector<2x192xf32> to vector<2x96xf32>
    %16 = vector.extract_strided_slice %7 {offsets = [0, 0], sizes = [2, 32], strides = [1, 1]} : vector<2x64xf32> to vector<2x32xf32>
    %17 = vector.extract_strided_slice %14 {offsets = [0, 0], sizes = [2, 32], strides = [1, 1]} : vector<2x96xf32> to vector<2x32xf32>
    %18 = vector.extract_strided_slice %15 {offsets = [0, 0], sizes = [2, 32], strides = [1, 1]} : vector<2x96xf32> to vector<2x32xf32>
    %19 = arith.addf %17, %18 : vector<2x32xf32>
    %20 = arith.negf %19 : vector<2x32xf32>
    %21 = math.exp %20 : vector<2x32xf32>
    %cst_9 = arith.constant 1.000000e+00 : f32
    %22 = vector.broadcast %cst_9 : f32 to vector<2x32xf32>
    %23 = arith.addf %22, %21 : vector<2x32xf32>
    %24 = arith.divf %22, %23 : vector<2x32xf32>
    %25 = vector.extract_strided_slice %14 {offsets = [0, 32], sizes = [2, 32], strides = [1, 1]} : vector<2x96xf32> to vector<2x32xf32>
    %26 = vector.extract_strided_slice %15 {offsets = [0, 32], sizes = [2, 32], strides = [1, 1]} : vector<2x96xf32> to vector<2x32xf32>
    %27 = arith.addf %25, %26 : vector<2x32xf32>
    %28 = arith.negf %27 : vector<2x32xf32>
    %29 = math.exp %28 : vector<2x32xf32>
    %cst_10 = arith.constant 1.000000e+00 : f32
    %30 = vector.broadcast %cst_10 : f32 to vector<2x32xf32>
    %31 = arith.addf %30, %29 : vector<2x32xf32>
    %32 = arith.divf %30, %31 : vector<2x32xf32>
    %33 = vector.extract_strided_slice %14 {offsets = [0, 64], sizes = [2, 32], strides = [1, 1]} : vector<2x96xf32> to vector<2x32xf32>
    %34 = vector.extract_strided_slice %15 {offsets = [0, 64], sizes = [2, 32], strides = [1, 1]} : vector<2x96xf32> to vector<2x32xf32>
    %35 = arith.mulf %24, %34 : vector<2x32xf32>
    %36 = arith.addf %33, %35 : vector<2x32xf32>
    %37 = math.tanh %36 : vector<2x32xf32>
    %cst_11 = arith.constant 1.000000e+00 : f32
    %38 = vector.broadcast %cst_11 : f32 to vector<2x32xf32>
    %39 = arith.subf %38, %32 : vector<2x32xf32>
    %40 = arith.mulf %39, %37 : vector<2x32xf32>
    %41 = arith.mulf %32, %16 : vector<2x32xf32>
    %42 = arith.addf %40, %41 : vector<2x32xf32>
    %c7_i32 = arith.constant 7 : i32
    %43 = arith.subi %c7_i32, %c0_i32_6 : i32
    %44 = arith.index_cast %43 : i32 to index
    %c0_12 = arith.constant 0 : index
    %c0_13 = arith.constant 0 : index
    %45 = vector.load %arg2[%44, %c0_12, %c0_13] : memref<8x2x96xbf16, #tpu.memory_space<vmem>>, vector<1x2x96xbf16>
    %46 = vector.shape_cast %45 : vector<1x2x96xbf16> to vector<2x96xbf16>
    %47 = arith.extf %46 : vector<2x96xbf16> to vector<2x96xf32>
    %48 = vector.extract_strided_slice %10 {offsets = [0, 96], sizes = [2, 96], strides = [1, 1]} : vector<2x192xf32> to vector<2x96xf32>
    %49 = vector.extract_strided_slice %7 {offsets = [0, 32], sizes = [2, 32], strides = [1, 1]} : vector<2x64xf32> to vector<2x32xf32>
    %50 = vector.extract_strided_slice %47 {offsets = [0, 0], sizes = [2, 32], strides = [1, 1]} : vector<2x96xf32> to vector<2x32xf32>
    %51 = vector.extract_strided_slice %48 {offsets = [0, 0], sizes = [2, 32], strides = [1, 1]} : vector<2x96xf32> to vector<2x32xf32>
    %52 = arith.addf %50, %51 : vector<2x32xf32>
    %53 = arith.negf %52 : vector<2x32xf32>
    %54 = math.exp %53 : vector<2x32xf32>
    %cst_14 = arith.constant 1.000000e+00 : f32
    %55 = vector.broadcast %cst_14 : f32 to vector<2x32xf32>
    %56 = arith.addf %55, %54 : vector<2x32xf32>
    %57 = arith.divf %55, %56 : vector<2x32xf32>
    %58 = vector.extract_strided_slice %47 {offsets = [0, 32], sizes = [2, 32], strides = [1, 1]} : vector<2x96xf32> to vector<2x32xf32>
    %59 = vector.extract_strided_slice %48 {offsets = [0, 32], sizes = [2, 32], strides = [1, 1]} : vector<2x96xf32> to vector<2x32xf32>
    %60 = arith.addf %58, %59 : vector<2x32xf32>
    %61 = arith.negf %60 : vector<2x32xf32>
    %62 = math.exp %61 : vector<2x32xf32>
    %cst_15 = arith.constant 1.000000e+00 : f32
    %63 = vector.broadcast %cst_15 : f32 to vector<2x32xf32>
    %64 = arith.addf %63, %62 : vector<2x32xf32>
    %65 = arith.divf %63, %64 : vector<2x32xf32>
    %66 = vector.extract_strided_slice %47 {offsets = [0, 64], sizes = [2, 32], strides = [1, 1]} : vector<2x96xf32> to vector<2x32xf32>
    %67 = vector.extract_strided_slice %48 {offsets = [0, 64], sizes = [2, 32], strides = [1, 1]} : vector<2x96xf32> to vector<2x32xf32>
    %68 = arith.mulf %57, %67 : vector<2x32xf32>
    %69 = arith.addf %66, %68 : vector<2x32xf32>
    %70 = math.tanh %69 : vector<2x32xf32>
    %cst_16 = arith.constant 1.000000e+00 : f32
    %71 = vector.broadcast %cst_16 : f32 to vector<2x32xf32>
    %72 = arith.subf %71, %65 : vector<2x32xf32>
    %73 = arith.mulf %72, %70 : vector<2x32xf32>
    %74 = arith.mulf %65, %49 : vector<2x32xf32>
    %75 = arith.addf %73, %74 : vector<2x32xf32>
    %76 = arith.truncf %42 : vector<2x32xf32> to vector<2x32xbf16>
    %77 = arith.index_cast %c0_i32_6 : i32 to index
    %c0_17 = arith.constant 0 : index
    %c0_18 = arith.constant 0 : index
    %78 = vector.load %arg5[%77, %c0_17, %c0_18] : memref<8x2x32xbf16, #tpu.memory_space<vmem>>, vector<1x2x32xbf16>
    %79 = vector.shape_cast %78 : vector<1x2x32xbf16> to vector<2x32xbf16>
    %80 = vector.shape_cast %76 : vector<2x32xbf16> to vector<1x2x32xbf16>
    tpu.vector_store %arg5[%77, %c0_17, %c0_18], %80 {strides = array<i32>} : memref<8x2x32xbf16, #tpu.memory_space<vmem>>, vector<1x2x32xbf16>,
    %81 = arith.truncf %75 : vector<2x32xf32> to vector<2x32xbf16>
    %c7_i32_19 = arith.constant 7 : i32
    %82 = arith.subi %c7_i32_19, %c0_i32_6 : i32
    %83 = arith.index_cast %82 : i32 to index
    %c0_20 = arith.constant 0 : index
    %c0_21 = arith.constant 0 : index
    %84 = vector.load %arg6[%83, %c0_20, %c0_21] : memref<8x2x32xbf16, #tpu.memory_space<vmem>>, vector<1x2x32xbf16>
    %85 = vector.shape_cast %84 : vector<1x2x32xbf16> to vector<2x32xbf16>
    %86 = vector.shape_cast %81 : vector<2x32xbf16> to vector<1x2x32xbf16>
    tpu.vector_store %arg6[%83, %c0_20, %c0_21], %86 {strides = array<i32>} : memref<8x2x32xbf16, #tpu.memory_space<vmem>>, vector<1x2x32xbf16>,
    %87 = tpu.concatenate %42, %75 in 1 : vector<2x32xf32>, vector<2x32xf32> -> vector<2x64xf32>
    %c1_i32 = arith.constant 1 : i32
    %88 = arith.truncf %87 : vector<2x64xf32> to vector<2x64xbf16>
    %cst_22 = arith.constant dense<0.000000e+00> : vector<2x192xf32>
    %89 = tpu.matmul %88, %3, %cst_22 {dimension_numbers = #tpu.dot_dimension_numbers<[1], [0], [0], [1], [0, 0, 1, 1], [], []>} : vector<2x64xbf16>, vector<64x192xbf16>, vector<2x192xf32> -> vector<2x192xf32>
    %90 = arith.addf %89, %6 : vector<2x192xf32>
    %91 = arith.index_cast %c1_i32 : i32 to index
    %c0_23 = arith.constant 0 : index
    %c0_24 = arith.constant 0 : index
    %92 = vector.load %arg1[%91, %c0_23, %c0_24] : memref<8x2x96xbf16, #tpu.memory_space<vmem>>, vector<1x2x96xbf16>
    %93 = vector.shape_cast %92 : vector<1x2x96xbf16> to vector<2x96xbf16>
    %94 = arith.extf %93 : vector<2x96xbf16> to vector<2x96xf32>
    %95 = vector.extract_strided_slice %90 {offsets = [0, 0], sizes = [2, 96], strides = [1, 1]} : vector<2x192xf32> to vector<2x96xf32>
    %96 = vector.extract_strided_slice %87 {offsets = [0, 0], sizes = [2, 32], strides = [1, 1]} : vector<2x64xf32> to vector<2x32xf32>
    %97 = vector.extract_strided_slice %94 {offsets = [0, 0], sizes = [2, 32], strides = [1, 1]} : vector<2x96xf32> to vector<2x32xf32>
    %98 = vector.extract_strided_slice %95 {offsets = [0, 0], sizes = [2, 32], strides = [1, 1]} : vector<2x96xf32> to vector<2x32xf32>
    %99 = arith.addf %97, %98 : vector<2x32xf32>
    %100 = arith.negf %99 : vector<2x32xf32>
    %101 = math.exp %100 : vector<2x32xf32>
    %cst_25 = arith.constant 1.000000e+00 : f32
    %102 = vector.broadcast %cst_25 : f32 to vector<2x32xf32>
    %103 = arith.addf %102, %101 : vector<2x32xf32>
    %104 = arith.divf %102, %103 : vector<2x32xf32>
    %105 = vector.extract_strided_slice %94 {offsets = [0, 32], sizes = [2, 32], strides = [1, 1]} : vector<2x96xf32> to vector<2x32xf32>
    %106 = vector.extract_strided_slice %95 {offsets = [0, 32], sizes = [2, 32], strides = [1, 1]} : vector<2x96xf32> to vector<2x32xf32>
    %107 = arith.addf %105, %106 : vector<2x32xf32>
    %108 = arith.negf %107 : vector<2x32xf32>
    %109 = math.exp %108 : vector<2x32xf32>
    %cst_26 = arith.constant 1.000000e+00 : f32
    %110 = vector.broadcast %cst_26 : f32 to vector<2x32xf32>
    %111 = arith.addf %110, %109 : vector<2x32xf32>
    %112 = arith.divf %110, %111 : vector<2x32xf32>
    %113 = vector.extract_strided_slice %94 {offsets = [0, 64], sizes = [2, 32], strides = [1, 1]} : vector<2x96xf32> to vector<2x32xf32>
    %114 = vector.extract_strided_slice %95 {offsets = [0, 64], sizes = [2, 32], strides = [1, 1]} : vector<2x96xf32> to vector<2x32xf32>
    %115 = arith.mulf %104, %114 : vector<2x32xf32>
    %116 = arith.addf %113, %115 : vector<2x32xf32>
    %117 = math.tanh %116 : vector<2x32xf32>
    %cst_27 = arith.constant 1.000000e+00 : f32
    %118 = vector.broadcast %cst_27 : f32 to vector<2x32xf32>
    %119 = arith.subf %118, %112 : vector<2x32xf32>
    %120 = arith.mulf %119, %117 : vector<2x32xf32>
    %121 = arith.mulf %112, %96 : vector<2x32xf32>
    %122 = arith.addf %120, %121 : vector<2x32xf32>
    %c7_i32_28 = arith.constant 7 : i32
    %123 = arith.subi %c7_i32_28, %c1_i32 : i32
    %124 = arith.index_cast %123 : i32 to index
    %c0_29 = arith.constant 0 : index
    %c0_30 = arith.constant 0 : index
    %125 = vector.load %arg2[%124, %c0_29, %c0_30] : memref<8x2x96xbf16, #tpu.memory_space<vmem>>, vector<1x2x96xbf16>
    %126 = vector.shape_cast %125 : vector<1x2x96xbf16> to vector<2x96xbf16>
    %127 = arith.extf %126 : vector<2x96xbf16> to vector<2x96xf32>
    %128 = vector.extract_strided_slice %90 {offsets = [0, 96], sizes = [2, 96], strides = [1, 1]} : vector<2x192xf32> to vector<2x96xf32>
    %129 = vector.extract_strided_slice %87 {offsets = [0, 32], sizes = [2, 32], strides = [1, 1]} : vector<2x64xf32> to vector<2x32xf32>
    %130 = vector.extract_strided_slice %127 {offsets = [0, 0], sizes = [2, 32], strides = [1, 1]} : vector<2x96xf32> to vector<2x32xf32>
    %131 = vector.extract_strided_slice %128 {offsets = [0, 0], sizes = [2, 32], strides = [1, 1]} : vector<2x96xf32> to vector<2x32xf32>
    %132 = arith.addf %130, %131 : vector<2x32xf32>
    %133 = arith.negf %132 : vector<2x32xf32>
    %134 = math.exp %133 : vector<2x32xf32>
    %cst_31 = arith.constant 1.000000e+00 : f32
    %135 = vector.broadcast %cst_31 : f32 to vector<2x32xf32>
    %136 = arith.addf %135, %134 : vector<2x32xf32>
    %137 = arith.divf %135, %136 : vector<2x32xf32>
    %138 = vector.extract_strided_slice %127 {offsets = [0, 32], sizes = [2, 32], strides = [1, 1]} : vector<2x96xf32> to vector<2x32xf32>
    %139 = vector.extract_strided_slice %128 {offsets = [0, 32], sizes = [2, 32], strides = [1, 1]} : vector<2x96xf32> to vector<2x32xf32>
    %140 = arith.addf %138, %139 : vector<2x32xf32>
    %141 = arith.negf %140 : vector<2x32xf32>
    %142 = math.exp %141 : vector<2x32xf32>
    %cst_32 = arith.constant 1.000000e+00 : f32
    %143 = vector.broadcast %cst_32 : f32 to vector<2x32xf32>
    %144 = arith.addf %143, %142 : vector<2x32xf32>
    %145 = arith.divf %143, %144 : vector<2x32xf32>
    %146 = vector.extract_strided_slice %127 {offsets = [0, 64], sizes = [2, 32], strides = [1, 1]} : vector<2x96xf32> to vector<2x32xf32>
    %147 = vector.extract_strided_slice %128 {offsets = [0, 64], sizes = [2, 32], strides = [1, 1]} : vector<2x96xf32> to vector<2x32xf32>
    %148 = arith.mulf %137, %147 : vector<2x32xf32>
    %149 = arith.addf %146, %148 : vector<2x32xf32>
    %150 = math.tanh %149 : vector<2x32xf32>
    %cst_33 = arith.constant 1.000000e+00 : f32
    %151 = vector.broadcast %cst_33 : f32 to vector<2x32xf32>
    %152 = arith.subf %151, %145 : vector<2x32xf32>
    %153 = arith.mulf %152, %150 : vector<2x32xf32>
    %154 = arith.mulf %145, %129 : vector<2x32xf32>
    %155 = arith.addf %153, %154 : vector<2x32xf32>
    %156 = arith.truncf %122 : vector<2x32xf32> to vector<2x32xbf16>
    %157 = arith.index_cast %c1_i32 : i32 to index
    %c0_34 = arith.constant 0 : index
    %c0_35 = arith.constant 0 : index
    %158 = vector.load %arg5[%157, %c0_34, %c0_35] : memref<8x2x32xbf16, #tpu.memory_space<vmem>>, vector<1x2x32xbf16>
    %159 = vector.shape_cast %158 : vector<1x2x32xbf16> to vector<2x32xbf16>
    %160 = vector.shape_cast %156 : vector<2x32xbf16> to vector<1x2x32xbf16>
    tpu.vector_store %arg5[%157, %c0_34, %c0_35], %160 {strides = array<i32>} : memref<8x2x32xbf16, #tpu.memory_space<vmem>>, vector<1x2x32xbf16>,
    %161 = arith.truncf %155 : vector<2x32xf32> to vector<2x32xbf16>
    %c7_i32_36 = arith.constant 7 : i32
    %162 = arith.subi %c7_i32_36, %c1_i32 : i32
    %163 = arith.index_cast %162 : i32 to index
    %c0_37 = arith.constant 0 : index
    %c0_38 = arith.constant 0 : index
    %164 = vector.load %arg6[%163, %c0_37, %c0_38] : memref<8x2x32xbf16, #tpu.memory_space<vmem>>, vector<1x2x32xbf16>
    %165 = vector.shape_cast %164 : vector<1x2x32xbf16> to vector<2x32xbf16>
    %166 = vector.shape_cast %161 : vector<2x32xbf16> to vector<1x2x32xbf16>
    tpu.vector_store %arg6[%163, %c0_37, %c0_38], %166 {strides = array<i32>} : memref<8x2x32xbf16, #tpu.memory_space<vmem>>, vector<1x2x32xbf16>,
    %167 = tpu.concatenate %122, %155 in 1 : vector<2x32xf32>, vector<2x32xf32> -> vector<2x64xf32>
    %c2_i32 = arith.constant 2 : i32
    %168 = arith.truncf %167 : vector<2x64xf32> to vector<2x64xbf16>
    %cst_39 = arith.constant dense<0.000000e+00> : vector<2x192xf32>
    %169 = tpu.matmul %168, %3, %cst_39 {dimension_numbers = #tpu.dot_dimension_numbers<[1], [0], [0], [1], [0, 0, 1, 1], [], []>} : vector<2x64xbf16>, vector<64x192xbf16>, vector<2x192xf32> -> vector<2x192xf32>
    %170 = arith.addf %169, %6 : vector<2x192xf32>
    %171 = arith.index_cast %c2_i32 : i32 to index
    %c0_40 = arith.constant 0 : index
    %c0_41 = arith.constant 0 : index
    %172 = vector.load %arg1[%171, %c0_40, %c0_41] : memref<8x2x96xbf16, #tpu.memory_space<vmem>>, vector<1x2x96xbf16>
    %173 = vector.shape_cast %172 : vector<1x2x96xbf16> to vector<2x96xbf16>
    %174 = arith.extf %173 : vector<2x96xbf16> to vector<2x96xf32>
    %175 = vector.extract_strided_slice %170 {offsets = [0, 0], sizes = [2, 96], strides = [1, 1]} : vector<2x192xf32> to vector<2x96xf32>
    %176 = vector.extract_strided_slice %167 {offsets = [0, 0], sizes = [2, 32], strides = [1, 1]} : vector<2x64xf32> to vector<2x32xf32>
    %177 = vector.extract_strided_slice %174 {offsets = [0, 0], sizes = [2, 32], strides = [1, 1]} : vector<2x96xf32> to vector<2x32xf32>
    %178 = vector.extract_strided_slice %175 {offsets = [0, 0], sizes = [2, 32], strides = [1, 1]} : vector<2x96xf32> to vector<2x32xf32>
    %179 = arith.addf %177, %178 : vector<2x32xf32>
    %180 = arith.negf %179 : vector<2x32xf32>
    %181 = math.exp %180 : vector<2x32xf32>
    %cst_42 = arith.constant 1.000000e+00 : f32
    %182 = vector.broadcast %cst_42 : f32 to vector<2x32xf32>
    %183 = arith.addf %182, %181 : vector<2x32xf32>
    %184 = arith.divf %182, %183 : vector<2x32xf32>
    %185 = vector.extract_strided_slice %174 {offsets = [0, 32], sizes = [2, 32], strides = [1, 1]} : vector<2x96xf32> to vector<2x32xf32>
    %186 = vector.extract_strided_slice %175 {offsets = [0, 32], sizes = [2, 32], strides = [1, 1]} : vector<2x96xf32> to vector<2x32xf32>
    %187 = arith.addf %185, %186 : vector<2x32xf32>
    %188 = arith.negf %187 : vector<2x32xf32>
    %189 = math.exp %188 : vector<2x32xf32>
    %cst_43 = arith.constant 1.000000e+00 : f32
    %190 = vector.broadcast %cst_43 : f32 to vector<2x32xf32>
    %191 = arith.addf %190, %189 : vector<2x32xf32>
    %192 = arith.divf %190, %191 : vector<2x32xf32>
    %193 = vector.extract_strided_slice %174 {offsets = [0, 64], sizes = [2, 32], strides = [1, 1]} : vector<2x96xf32> to vector<2x32xf32>
    %194 = vector.extract_strided_slice %175 {offsets = [0, 64], sizes = [2, 32], strides = [1, 1]} : vector<2x96xf32> to vector<2x32xf32>
    %195 = arith.mulf %184, %194 : vector<2x32xf32>
    %196 = arith.addf %193, %195 : vector<2x32xf32>
    %197 = math.tanh %196 : vector<2x32xf32>
    %cst_44 = arith.constant 1.000000e+00 : f32
    %198 = vector.broadcast %cst_44 : f32 to vector<2x32xf32>
    %199 = arith.subf %198, %192 : vector<2x32xf32>
    %200 = arith.mulf %199, %197 : vector<2x32xf32>
    %201 = arith.mulf %192, %176 : vector<2x32xf32>
    %202 = arith.addf %200, %201 : vector<2x32xf32>
    %c7_i32_45 = arith.constant 7 : i32
    %203 = arith.subi %c7_i32_45, %c2_i32 : i32
    %204 = arith.index_cast %203 : i32 to index
    %c0_46 = arith.constant 0 : index
    %c0_47 = arith.constant 0 : index
    %205 = vector.load %arg2[%204, %c0_46, %c0_47] : memref<8x2x96xbf16, #tpu.memory_space<vmem>>, vector<1x2x96xbf16>
    %206 = vector.shape_cast %205 : vector<1x2x96xbf16> to vector<2x96xbf16>
    %207 = arith.extf %206 : vector<2x96xbf16> to vector<2x96xf32>
    %208 = vector.extract_strided_slice %170 {offsets = [0, 96], sizes = [2, 96], strides = [1, 1]} : vector<2x192xf32> to vector<2x96xf32>
    %209 = vector.extract_strided_slice %167 {offsets = [0, 32], sizes = [2, 32], strides = [1, 1]} : vector<2x64xf32> to vector<2x32xf32>
    %210 = vector.extract_strided_slice %207 {offsets = [0, 0], sizes = [2, 32], strides = [1, 1]} : vector<2x96xf32> to vector<2x32xf32>
    %211 = vector.extract_strided_slice %208 {offsets = [0, 0], sizes = [2, 32], strides = [1, 1]} : vector<2x96xf32> to vector<2x32xf32>
    %212 = arith.addf %210, %211 : vector<2x32xf32>
    %213 = arith.negf %212 : vector<2x32xf32>
    %214 = math.exp %213 : vector<2x32xf32>
    %cst_48 = arith.constant 1.000000e+00 : f32
    %215 = vector.broadcast %cst_48 : f32 to vector<2x32xf32>
    %216 = arith.addf %215, %214 : vector<2x32xf32>
    %217 = arith.divf %215, %216 : vector<2x32xf32>
    %218 = vector.extract_strided_slice %207 {offsets = [0, 32], sizes = [2, 32], strides = [1, 1]} : vector<2x96xf32> to vector<2x32xf32>
    %219 = vector.extract_strided_slice %208 {offsets = [0, 32], sizes = [2, 32], strides = [1, 1]} : vector<2x96xf32> to vector<2x32xf32>
    %220 = arith.addf %218, %219 : vector<2x32xf32>
    %221 = arith.negf %220 : vector<2x32xf32>
    %222 = math.exp %221 : vector<2x32xf32>
    %cst_49 = arith.constant 1.000000e+00 : f32
    %223 = vector.broadcast %cst_49 : f32 to vector<2x32xf32>
    %224 = arith.addf %223, %222 : vector<2x32xf32>
    %225 = arith.divf %223, %224 : vector<2x32xf32>
    %226 = vector.extract_strided_slice %207 {offsets = [0, 64], sizes = [2, 32], strides = [1, 1]} : vector<2x96xf32> to vector<2x32xf32>
    %227 = vector.extract_strided_slice %208 {offsets = [0, 64], sizes = [2, 32], strides = [1, 1]} : vector<2x96xf32> to vector<2x32xf32>
    %228 = arith.mulf %217, %227 : vector<2x32xf32>
    %229 = arith.addf %226, %228 : vector<2x32xf32>
    %230 = math.tanh %229 : vector<2x32xf32>
    %cst_50 = arith.constant 1.000000e+00 : f32
    %231 = vector.broadcast %cst_50 : f32 to vector<2x32xf32>
    %232 = arith.subf %231, %225 : vector<2x32xf32>
    %233 = arith.mulf %232, %230 : vector<2x32xf32>
    %234 = arith.mulf %225, %209 : vector<2x32xf32>
    %235 = arith.addf %233, %234 : vector<2x32xf32>
    %236 = arith.truncf %202 : vector<2x32xf32> to vector<2x32xbf16>
    %237 = arith.index_cast %c2_i32 : i32 to index
    %c0_51 = arith.constant 0 : index
    %c0_52 = arith.constant 0 : index
    %238 = vector.load %arg5[%237, %c0_51, %c0_52] : memref<8x2x32xbf16, #tpu.memory_space<vmem>>, vector<1x2x32xbf16>
    %239 = vector.shape_cast %238 : vector<1x2x32xbf16> to vector<2x32xbf16>
    %240 = vector.shape_cast %236 : vector<2x32xbf16> to vector<1x2x32xbf16>
    tpu.vector_store %arg5[%237, %c0_51, %c0_52], %240 {strides = array<i32>} : memref<8x2x32xbf16, #tpu.memory_space<vmem>>, vector<1x2x32xbf16>,
    %241 = arith.truncf %235 : vector<2x32xf32> to vector<2x32xbf16>
    %c7_i32_53 = arith.constant 7 : i32
    %242 = arith.subi %c7_i32_53, %c2_i32 : i32
    %243 = arith.index_cast %242 : i32 to index
    %c0_54 = arith.constant 0 : index
    %c0_55 = arith.constant 0 : index
    %244 = vector.load %arg6[%243, %c0_54, %c0_55] : memref<8x2x32xbf16, #tpu.memory_space<vmem>>, vector<1x2x32xbf16>
    %245 = vector.shape_cast %244 : vector<1x2x32xbf16> to vector<2x32xbf16>
    %246 = vector.shape_cast %241 : vector<2x32xbf16> to vector<1x2x32xbf16>
    tpu.vector_store %arg6[%243, %c0_54, %c0_55], %246 {strides = array<i32>} : memref<8x2x32xbf16, #tpu.memory_space<vmem>>, vector<1x2x32xbf16>,
    %247 = tpu.concatenate %202, %235 in 1 : vector<2x32xf32>, vector<2x32xf32> -> vector<2x64xf32>
    %c3_i32 = arith.constant 3 : i32
    %248 = arith.truncf %247 : vector<2x64xf32> to vector<2x64xbf16>
    %cst_56 = arith.constant dense<0.000000e+00> : vector<2x192xf32>
    %249 = tpu.matmul %248, %3, %cst_56 {dimension_numbers = #tpu.dot_dimension_numbers<[1], [0], [0], [1], [0, 0, 1, 1], [], []>} : vector<2x64xbf16>, vector<64x192xbf16>, vector<2x192xf32> -> vector<2x192xf32>
    %250 = arith.addf %249, %6 : vector<2x192xf32>
    %251 = arith.index_cast %c3_i32 : i32 to index
    %c0_57 = arith.constant 0 : index
    %c0_58 = arith.constant 0 : index
    %252 = vector.load %arg1[%251, %c0_57, %c0_58] : memref<8x2x96xbf16, #tpu.memory_space<vmem>>, vector<1x2x96xbf16>
    %253 = vector.shape_cast %252 : vector<1x2x96xbf16> to vector<2x96xbf16>
    %254 = arith.extf %253 : vector<2x96xbf16> to vector<2x96xf32>
    %255 = vector.extract_strided_slice %250 {offsets = [0, 0], sizes = [2, 96], strides = [1, 1]} : vector<2x192xf32> to vector<2x96xf32>
    %256 = vector.extract_strided_slice %247 {offsets = [0, 0], sizes = [2, 32], strides = [1, 1]} : vector<2x64xf32> to vector<2x32xf32>
    %257 = vector.extract_strided_slice %254 {offsets = [0, 0], sizes = [2, 32], strides = [1, 1]} : vector<2x96xf32> to vector<2x32xf32>
    %258 = vector.extract_strided_slice %255 {offsets = [0, 0], sizes = [2, 32], strides = [1, 1]} : vector<2x96xf32> to vector<2x32xf32>
    %259 = arith.addf %257, %258 : vector<2x32xf32>
    %260 = arith.negf %259 : vector<2x32xf32>
    %261 = math.exp %260 : vector<2x32xf32>
    %cst_59 = arith.constant 1.000000e+00 : f32
    %262 = vector.broadcast %cst_59 : f32 to vector<2x32xf32>
    %263 = arith.addf %262, %261 : vector<2x32xf32>
    %264 = arith.divf %262, %263 : vector<2x32xf32>
    %265 = vector.extract_strided_slice %254 {offsets = [0, 32], sizes = [2, 32], strides = [1, 1]} : vector<2x96xf32> to vector<2x32xf32>
    %266 = vector.extract_strided_slice %255 {offsets = [0, 32], sizes = [2, 32], strides = [1, 1]} : vector<2x96xf32> to vector<2x32xf32>
    %267 = arith.addf %265, %266 : vector<2x32xf32>
    %268 = arith.negf %267 : vector<2x32xf32>
    %269 = math.exp %268 : vector<2x32xf32>
    %cst_60 = arith.constant 1.000000e+00 : f32
    %270 = vector.broadcast %cst_60 : f32 to vector<2x32xf32>
    %271 = arith.addf %270, %269 : vector<2x32xf32>
    %272 = arith.divf %270, %271 : vector<2x32xf32>
    %273 = vector.extract_strided_slice %254 {offsets = [0, 64], sizes = [2, 32], strides = [1, 1]} : vector<2x96xf32> to vector<2x32xf32>
    %274 = vector.extract_strided_slice %255 {offsets = [0, 64], sizes = [2, 32], strides = [1, 1]} : vector<2x96xf32> to vector<2x32xf32>
    %275 = arith.mulf %264, %274 : vector<2x32xf32>
    %276 = arith.addf %273, %275 : vector<2x32xf32>
    %277 = math.tanh %276 : vector<2x32xf32>
    %cst_61 = arith.constant 1.000000e+00 : f32
    %278 = vector.broadcast %cst_61 : f32 to vector<2x32xf32>
    %279 = arith.subf %278, %272 : vector<2x32xf32>
    %280 = arith.mulf %279, %277 : vector<2x32xf32>
    %281 = arith.mulf %272, %256 : vector<2x32xf32>
    %282 = arith.addf %280, %281 : vector<2x32xf32>
    %c7_i32_62 = arith.constant 7 : i32
    %283 = arith.subi %c7_i32_62, %c3_i32 : i32
    %284 = arith.index_cast %283 : i32 to index
    %c0_63 = arith.constant 0 : index
    %c0_64 = arith.constant 0 : index
    %285 = vector.load %arg2[%284, %c0_63, %c0_64] : memref<8x2x96xbf16, #tpu.memory_space<vmem>>, vector<1x2x96xbf16>
    %286 = vector.shape_cast %285 : vector<1x2x96xbf16> to vector<2x96xbf16>
    %287 = arith.extf %286 : vector<2x96xbf16> to vector<2x96xf32>
    %288 = vector.extract_strided_slice %250 {offsets = [0, 96], sizes = [2, 96], strides = [1, 1]} : vector<2x192xf32> to vector<2x96xf32>
    %289 = vector.extract_strided_slice %247 {offsets = [0, 32], sizes = [2, 32], strides = [1, 1]} : vector<2x64xf32> to vector<2x32xf32>
    %290 = vector.extract_strided_slice %287 {offsets = [0, 0], sizes = [2, 32], strides = [1, 1]} : vector<2x96xf32> to vector<2x32xf32>
    %291 = vector.extract_strided_slice %288 {offsets = [0, 0], sizes = [2, 32], strides = [1, 1]} : vector<2x96xf32> to vector<2x32xf32>
    %292 = arith.addf %290, %291 : vector<2x32xf32>
    %293 = arith.negf %292 : vector<2x32xf32>
    %294 = math.exp %293 : vector<2x32xf32>
    %cst_65 = arith.constant 1.000000e+00 : f32
    %295 = vector.broadcast %cst_65 : f32 to vector<2x32xf32>
    %296 = arith.addf %295, %294 : vector<2x32xf32>
    %297 = arith.divf %295, %296 : vector<2x32xf32>
    %298 = vector.extract_strided_slice %287 {offsets = [0, 32], sizes = [2, 32], strides = [1, 1]} : vector<2x96xf32> to vector<2x32xf32>
    %299 = vector.extract_strided_slice %288 {offsets = [0, 32], sizes = [2, 32], strides = [1, 1]} : vector<2x96xf32> to vector<2x32xf32>
    %300 = arith.addf %298, %299 : vector<2x32xf32>
    %301 = arith.negf %300 : vector<2x32xf32>
    %302 = math.exp %301 : vector<2x32xf32>
    %cst_66 = arith.constant 1.000000e+00 : f32
    %303 = vector.broadcast %cst_66 : f32 to vector<2x32xf32>
    %304 = arith.addf %303, %302 : vector<2x32xf32>
    %305 = arith.divf %303, %304 : vector<2x32xf32>
    %306 = vector.extract_strided_slice %287 {offsets = [0, 64], sizes = [2, 32], strides = [1, 1]} : vector<2x96xf32> to vector<2x32xf32>
    %307 = vector.extract_strided_slice %288 {offsets = [0, 64], sizes = [2, 32], strides = [1, 1]} : vector<2x96xf32> to vector<2x32xf32>
    %308 = arith.mulf %297, %307 : vector<2x32xf32>
    %309 = arith.addf %306, %308 : vector<2x32xf32>
    %310 = math.tanh %309 : vector<2x32xf32>
    %cst_67 = arith.constant 1.000000e+00 : f32
    %311 = vector.broadcast %cst_67 : f32 to vector<2x32xf32>
    %312 = arith.subf %311, %305 : vector<2x32xf32>
    %313 = arith.mulf %312, %310 : vector<2x32xf32>
    %314 = arith.mulf %305, %289 : vector<2x32xf32>
    %315 = arith.addf %313, %314 : vector<2x32xf32>
    %316 = arith.truncf %282 : vector<2x32xf32> to vector<2x32xbf16>
    %317 = arith.index_cast %c3_i32 : i32 to index
    %c0_68 = arith.constant 0 : index
    %c0_69 = arith.constant 0 : index
    %318 = vector.load %arg5[%317, %c0_68, %c0_69] : memref<8x2x32xbf16, #tpu.memory_space<vmem>>, vector<1x2x32xbf16>
    %319 = vector.shape_cast %318 : vector<1x2x32xbf16> to vector<2x32xbf16>
    %320 = vector.shape_cast %316 : vector<2x32xbf16> to vector<1x2x32xbf16>
    tpu.vector_store %arg5[%317, %c0_68, %c0_69], %320 {strides = array<i32>} : memref<8x2x32xbf16, #tpu.memory_space<vmem>>, vector<1x2x32xbf16>,
    %321 = arith.truncf %315 : vector<2x32xf32> to vector<2x32xbf16>
    %c7_i32_70 = arith.constant 7 : i32
    %322 = arith.subi %c7_i32_70, %c3_i32 : i32
    %323 = arith.index_cast %322 : i32 to index
    %c0_71 = arith.constant 0 : index
    %c0_72 = arith.constant 0 : index
    %324 = vector.load %arg6[%323, %c0_71, %c0_72] : memref<8x2x32xbf16, #tpu.memory_space<vmem>>, vector<1x2x32xbf16>
    %325 = vector.shape_cast %324 : vector<1x2x32xbf16> to vector<2x32xbf16>
    %326 = vector.shape_cast %321 : vector<2x32xbf16> to vector<1x2x32xbf16>
    tpu.vector_store %arg6[%323, %c0_71, %c0_72], %326 {strides = array<i32>} : memref<8x2x32xbf16, #tpu.memory_space<vmem>>, vector<1x2x32xbf16>,
    %327 = tpu.concatenate %282, %315 in 1 : vector<2x32xf32>, vector<2x32xf32> -> vector<2x64xf32>
    %c4_i32 = arith.constant 4 : i32
    %328 = arith.truncf %327 : vector<2x64xf32> to vector<2x64xbf16>
    %cst_73 = arith.constant dense<0.000000e+00> : vector<2x192xf32>
    %329 = tpu.matmul %328, %3, %cst_73 {dimension_numbers = #tpu.dot_dimension_numbers<[1], [0], [0], [1], [0, 0, 1, 1], [], []>} : vector<2x64xbf16>, vector<64x192xbf16>, vector<2x192xf32> -> vector<2x192xf32>
    %330 = arith.addf %329, %6 : vector<2x192xf32>
    %331 = arith.index_cast %c4_i32 : i32 to index
    %c0_74 = arith.constant 0 : index
    %c0_75 = arith.constant 0 : index
    %332 = vector.load %arg1[%331, %c0_74, %c0_75] : memref<8x2x96xbf16, #tpu.memory_space<vmem>>, vector<1x2x96xbf16>
    %333 = vector.shape_cast %332 : vector<1x2x96xbf16> to vector<2x96xbf16>
    %334 = arith.extf %333 : vector<2x96xbf16> to vector<2x96xf32>
    %335 = vector.extract_strided_slice %330 {offsets = [0, 0], sizes = [2, 96], strides = [1, 1]} : vector<2x192xf32> to vector<2x96xf32>
    %336 = vector.extract_strided_slice %327 {offsets = [0, 0], sizes = [2, 32], strides = [1, 1]} : vector<2x64xf32> to vector<2x32xf32>
    %337 = vector.extract_strided_slice %334 {offsets = [0, 0], sizes = [2, 32], strides = [1, 1]} : vector<2x96xf32> to vector<2x32xf32>
    %338 = vector.extract_strided_slice %335 {offsets = [0, 0], sizes = [2, 32], strides = [1, 1]} : vector<2x96xf32> to vector<2x32xf32>
    %339 = arith.addf %337, %338 : vector<2x32xf32>
    %340 = arith.negf %339 : vector<2x32xf32>
    %341 = math.exp %340 : vector<2x32xf32>
    %cst_76 = arith.constant 1.000000e+00 : f32
    %342 = vector.broadcast %cst_76 : f32 to vector<2x32xf32>
    %343 = arith.addf %342, %341 : vector<2x32xf32>
    %344 = arith.divf %342, %343 : vector<2x32xf32>
    %345 = vector.extract_strided_slice %334 {offsets = [0, 32], sizes = [2, 32], strides = [1, 1]} : vector<2x96xf32> to vector<2x32xf32>
    %346 = vector.extract_strided_slice %335 {offsets = [0, 32], sizes = [2, 32], strides = [1, 1]} : vector<2x96xf32> to vector<2x32xf32>
    %347 = arith.addf %345, %346 : vector<2x32xf32>
    %348 = arith.negf %347 : vector<2x32xf32>
    %349 = math.exp %348 : vector<2x32xf32>
    %cst_77 = arith.constant 1.000000e+00 : f32
    %350 = vector.broadcast %cst_77 : f32 to vector<2x32xf32>
    %351 = arith.addf %350, %349 : vector<2x32xf32>
    %352 = arith.divf %350, %351 : vector<2x32xf32>
    %353 = vector.extract_strided_slice %334 {offsets = [0, 64], sizes = [2, 32], strides = [1, 1]} : vector<2x96xf32> to vector<2x32xf32>
    %354 = vector.extract_strided_slice %335 {offsets = [0, 64], sizes = [2, 32], strides = [1, 1]} : vector<2x96xf32> to vector<2x32xf32>
    %355 = arith.mulf %344, %354 : vector<2x32xf32>
    %356 = arith.addf %353, %355 : vector<2x32xf32>
    %357 = math.tanh %356 : vector<2x32xf32>
    %cst_78 = arith.constant 1.000000e+00 : f32
    %358 = vector.broadcast %cst_78 : f32 to vector<2x32xf32>
    %359 = arith.subf %358, %352 : vector<2x32xf32>
    %360 = arith.mulf %359, %357 : vector<2x32xf32>
    %361 = arith.mulf %352, %336 : vector<2x32xf32>
    %362 = arith.addf %360, %361 : vector<2x32xf32>
    %c7_i32_79 = arith.constant 7 : i32
    %363 = arith.subi %c7_i32_79, %c4_i32 : i32
    %364 = arith.index_cast %363 : i32 to index
    %c0_80 = arith.constant 0 : index
    %c0_81 = arith.constant 0 : index
    %365 = vector.load %arg2[%364, %c0_80, %c0_81] : memref<8x2x96xbf16, #tpu.memory_space<vmem>>, vector<1x2x96xbf16>
    %366 = vector.shape_cast %365 : vector<1x2x96xbf16> to vector<2x96xbf16>
    %367 = arith.extf %366 : vector<2x96xbf16> to vector<2x96xf32>
    %368 = vector.extract_strided_slice %330 {offsets = [0, 96], sizes = [2, 96], strides = [1, 1]} : vector<2x192xf32> to vector<2x96xf32>
    %369 = vector.extract_strided_slice %327 {offsets = [0, 32], sizes = [2, 32], strides = [1, 1]} : vector<2x64xf32> to vector<2x32xf32>
    %370 = vector.extract_strided_slice %367 {offsets = [0, 0], sizes = [2, 32], strides = [1, 1]} : vector<2x96xf32> to vector<2x32xf32>
    %371 = vector.extract_strided_slice %368 {offsets = [0, 0], sizes = [2, 32], strides = [1, 1]} : vector<2x96xf32> to vector<2x32xf32>
    %372 = arith.addf %370, %371 : vector<2x32xf32>
    %373 = arith.negf %372 : vector<2x32xf32>
    %374 = math.exp %373 : vector<2x32xf32>
    %cst_82 = arith.constant 1.000000e+00 : f32
    %375 = vector.broadcast %cst_82 : f32 to vector<2x32xf32>
    %376 = arith.addf %375, %374 : vector<2x32xf32>
    %377 = arith.divf %375, %376 : vector<2x32xf32>
    %378 = vector.extract_strided_slice %367 {offsets = [0, 32], sizes = [2, 32], strides = [1, 1]} : vector<2x96xf32> to vector<2x32xf32>
    %379 = vector.extract_strided_slice %368 {offsets = [0, 32], sizes = [2, 32], strides = [1, 1]} : vector<2x96xf32> to vector<2x32xf32>
    %380 = arith.addf %378, %379 : vector<2x32xf32>
    %381 = arith.negf %380 : vector<2x32xf32>
    %382 = math.exp %381 : vector<2x32xf32>
    %cst_83 = arith.constant 1.000000e+00 : f32
    %383 = vector.broadcast %cst_83 : f32 to vector<2x32xf32>
    %384 = arith.addf %383, %382 : vector<2x32xf32>
    %385 = arith.divf %383, %384 : vector<2x32xf32>
    %386 = vector.extract_strided_slice %367 {offsets = [0, 64], sizes = [2, 32], strides = [1, 1]} : vector<2x96xf32> to vector<2x32xf32>
    %387 = vector.extract_strided_slice %368 {offsets = [0, 64], sizes = [2, 32], strides = [1, 1]} : vector<2x96xf32> to vector<2x32xf32>
    %388 = arith.mulf %377, %387 : vector<2x32xf32>
    %389 = arith.addf %386, %388 : vector<2x32xf32>
    %390 = math.tanh %389 : vector<2x32xf32>
    %cst_84 = arith.constant 1.000000e+00 : f32
    %391 = vector.broadcast %cst_84 : f32 to vector<2x32xf32>
    %392 = arith.subf %391, %385 : vector<2x32xf32>
    %393 = arith.mulf %392, %390 : vector<2x32xf32>
    %394 = arith.mulf %385, %369 : vector<2x32xf32>
    %395 = arith.addf %393, %394 : vector<2x32xf32>
    %396 = arith.truncf %362 : vector<2x32xf32> to vector<2x32xbf16>
    %397 = arith.index_cast %c4_i32 : i32 to index
    %c0_85 = arith.constant 0 : index
    %c0_86 = arith.constant 0 : index
    %398 = vector.load %arg5[%397, %c0_85, %c0_86] : memref<8x2x32xbf16, #tpu.memory_space<vmem>>, vector<1x2x32xbf16>
    %399 = vector.shape_cast %398 : vector<1x2x32xbf16> to vector<2x32xbf16>
    %400 = vector.shape_cast %396 : vector<2x32xbf16> to vector<1x2x32xbf16>
    tpu.vector_store %arg5[%397, %c0_85, %c0_86], %400 {strides = array<i32>} : memref<8x2x32xbf16, #tpu.memory_space<vmem>>, vector<1x2x32xbf16>,
    %401 = arith.truncf %395 : vector<2x32xf32> to vector<2x32xbf16>
    %c7_i32_87 = arith.constant 7 : i32
    %402 = arith.subi %c7_i32_87, %c4_i32 : i32
    %403 = arith.index_cast %402 : i32 to index
    %c0_88 = arith.constant 0 : index
    %c0_89 = arith.constant 0 : index
    %404 = vector.load %arg6[%403, %c0_88, %c0_89] : memref<8x2x32xbf16, #tpu.memory_space<vmem>>, vector<1x2x32xbf16>
    %405 = vector.shape_cast %404 : vector<1x2x32xbf16> to vector<2x32xbf16>
    %406 = vector.shape_cast %401 : vector<2x32xbf16> to vector<1x2x32xbf16>
    tpu.vector_store %arg6[%403, %c0_88, %c0_89], %406 {strides = array<i32>} : memref<8x2x32xbf16, #tpu.memory_space<vmem>>, vector<1x2x32xbf16>,
    %407 = tpu.concatenate %362, %395 in 1 : vector<2x32xf32>, vector<2x32xf32> -> vector<2x64xf32>
    %c5_i32 = arith.constant 5 : i32
    %408 = arith.truncf %407 : vector<2x64xf32> to vector<2x64xbf16>
    %cst_90 = arith.constant dense<0.000000e+00> : vector<2x192xf32>
    %409 = tpu.matmul %408, %3, %cst_90 {dimension_numbers = #tpu.dot_dimension_numbers<[1], [0], [0], [1], [0, 0, 1, 1], [], []>} : vector<2x64xbf16>, vector<64x192xbf16>, vector<2x192xf32> -> vector<2x192xf32>
    %410 = arith.addf %409, %6 : vector<2x192xf32>
    %411 = arith.index_cast %c5_i32 : i32 to index
    %c0_91 = arith.constant 0 : index
    %c0_92 = arith.constant 0 : index
    %412 = vector.load %arg1[%411, %c0_91, %c0_92] : memref<8x2x96xbf16, #tpu.memory_space<vmem>>, vector<1x2x96xbf16>
    %413 = vector.shape_cast %412 : vector<1x2x96xbf16> to vector<2x96xbf16>
    %414 = arith.extf %413 : vector<2x96xbf16> to vector<2x96xf32>
    %415 = vector.extract_strided_slice %410 {offsets = [0, 0], sizes = [2, 96], strides = [1, 1]} : vector<2x192xf32> to vector<2x96xf32>
    %416 = vector.extract_strided_slice %407 {offsets = [0, 0], sizes = [2, 32], strides = [1, 1]} : vector<2x64xf32> to vector<2x32xf32>
    %417 = vector.extract_strided_slice %414 {offsets = [0, 0], sizes = [2, 32], strides = [1, 1]} : vector<2x96xf32> to vector<2x32xf32>
    %418 = vector.extract_strided_slice %415 {offsets = [0, 0], sizes = [2, 32], strides = [1, 1]} : vector<2x96xf32> to vector<2x32xf32>
    %419 = arith.addf %417, %418 : vector<2x32xf32>
    %420 = arith.negf %419 : vector<2x32xf32>
    %421 = math.exp %420 : vector<2x32xf32>
    %cst_93 = arith.constant 1.000000e+00 : f32
    %422 = vector.broadcast %cst_93 : f32 to vector<2x32xf32>
    %423 = arith.addf %422, %421 : vector<2x32xf32>
    %424 = arith.divf %422, %423 : vector<2x32xf32>
    %425 = vector.extract_strided_slice %414 {offsets = [0, 32], sizes = [2, 32], strides = [1, 1]} : vector<2x96xf32> to vector<2x32xf32>
    %426 = vector.extract_strided_slice %415 {offsets = [0, 32], sizes = [2, 32], strides = [1, 1]} : vector<2x96xf32> to vector<2x32xf32>
    %427 = arith.addf %425, %426 : vector<2x32xf32>
    %428 = arith.negf %427 : vector<2x32xf32>
    %429 = math.exp %428 : vector<2x32xf32>
    %cst_94 = arith.constant 1.000000e+00 : f32
    %430 = vector.broadcast %cst_94 : f32 to vector<2x32xf32>
    %431 = arith.addf %430, %429 : vector<2x32xf32>
    %432 = arith.divf %430, %431 : vector<2x32xf32>
    %433 = vector.extract_strided_slice %414 {offsets = [0, 64], sizes = [2, 32], strides = [1, 1]} : vector<2x96xf32> to vector<2x32xf32>
    %434 = vector.extract_strided_slice %415 {offsets = [0, 64], sizes = [2, 32], strides = [1, 1]} : vector<2x96xf32> to vector<2x32xf32>
    %435 = arith.mulf %424, %434 : vector<2x32xf32>
    %436 = arith.addf %433, %435 : vector<2x32xf32>
    %437 = math.tanh %436 : vector<2x32xf32>
    %cst_95 = arith.constant 1.000000e+00 : f32
    %438 = vector.broadcast %cst_95 : f32 to vector<2x32xf32>
    %439 = arith.subf %438, %432 : vector<2x32xf32>
    %440 = arith.mulf %439, %437 : vector<2x32xf32>
    %441 = arith.mulf %432, %416 : vector<2x32xf32>
    %442 = arith.addf %440, %441 : vector<2x32xf32>
    %c7_i32_96 = arith.constant 7 : i32
    %443 = arith.subi %c7_i32_96, %c5_i32 : i32
    %444 = arith.index_cast %443 : i32 to index
    %c0_97 = arith.constant 0 : index
    %c0_98 = arith.constant 0 : index
    %445 = vector.load %arg2[%444, %c0_97, %c0_98] : memref<8x2x96xbf16, #tpu.memory_space<vmem>>, vector<1x2x96xbf16>
    %446 = vector.shape_cast %445 : vector<1x2x96xbf16> to vector<2x96xbf16>
    %447 = arith.extf %446 : vector<2x96xbf16> to vector<2x96xf32>
    %448 = vector.extract_strided_slice %410 {offsets = [0, 96], sizes = [2, 96], strides = [1, 1]} : vector<2x192xf32> to vector<2x96xf32>
    %449 = vector.extract_strided_slice %407 {offsets = [0, 32], sizes = [2, 32], strides = [1, 1]} : vector<2x64xf32> to vector<2x32xf32>
    %450 = vector.extract_strided_slice %447 {offsets = [0, 0], sizes = [2, 32], strides = [1, 1]} : vector<2x96xf32> to vector<2x32xf32>
    %451 = vector.extract_strided_slice %448 {offsets = [0, 0], sizes = [2, 32], strides = [1, 1]} : vector<2x96xf32> to vector<2x32xf32>
    %452 = arith.addf %450, %451 : vector<2x32xf32>
    %453 = arith.negf %452 : vector<2x32xf32>
    %454 = math.exp %453 : vector<2x32xf32>
    %cst_99 = arith.constant 1.000000e+00 : f32
    %455 = vector.broadcast %cst_99 : f32 to vector<2x32xf32>
    %456 = arith.addf %455, %454 : vector<2x32xf32>
    %457 = arith.divf %455, %456 : vector<2x32xf32>
    %458 = vector.extract_strided_slice %447 {offsets = [0, 32], sizes = [2, 32], strides = [1, 1]} : vector<2x96xf32> to vector<2x32xf32>
    %459 = vector.extract_strided_slice %448 {offsets = [0, 32], sizes = [2, 32], strides = [1, 1]} : vector<2x96xf32> to vector<2x32xf32>
    %460 = arith.addf %458, %459 : vector<2x32xf32>
    %461 = arith.negf %460 : vector<2x32xf32>
    %462 = math.exp %461 : vector<2x32xf32>
    %cst_100 = arith.constant 1.000000e+00 : f32
    %463 = vector.broadcast %cst_100 : f32 to vector<2x32xf32>
    %464 = arith.addf %463, %462 : vector<2x32xf32>
    %465 = arith.divf %463, %464 : vector<2x32xf32>
    %466 = vector.extract_strided_slice %447 {offsets = [0, 64], sizes = [2, 32], strides = [1, 1]} : vector<2x96xf32> to vector<2x32xf32>
    %467 = vector.extract_strided_slice %448 {offsets = [0, 64], sizes = [2, 32], strides = [1, 1]} : vector<2x96xf32> to vector<2x32xf32>
    %468 = arith.mulf %457, %467 : vector<2x32xf32>
    %469 = arith.addf %466, %468 : vector<2x32xf32>
    %470 = math.tanh %469 : vector<2x32xf32>
    %cst_101 = arith.constant 1.000000e+00 : f32
    %471 = vector.broadcast %cst_101 : f32 to vector<2x32xf32>
    %472 = arith.subf %471, %465 : vector<2x32xf32>
    %473 = arith.mulf %472, %470 : vector<2x32xf32>
    %474 = arith.mulf %465, %449 : vector<2x32xf32>
    %475 = arith.addf %473, %474 : vector<2x32xf32>
    %476 = arith.truncf %442 : vector<2x32xf32> to vector<2x32xbf16>
    %477 = arith.index_cast %c5_i32 : i32 to index
    %c0_102 = arith.constant 0 : index
    %c0_103 = arith.constant 0 : index
    %478 = vector.load %arg5[%477, %c0_102, %c0_103] : memref<8x2x32xbf16, #tpu.memory_space<vmem>>, vector<1x2x32xbf16>
    %479 = vector.shape_cast %478 : vector<1x2x32xbf16> to vector<2x32xbf16>
    %480 = vector.shape_cast %476 : vector<2x32xbf16> to vector<1x2x32xbf16>
    tpu.vector_store %arg5[%477, %c0_102, %c0_103], %480 {strides = array<i32>} : memref<8x2x32xbf16, #tpu.memory_space<vmem>>, vector<1x2x32xbf16>,
    %481 = arith.truncf %475 : vector<2x32xf32> to vector<2x32xbf16>
    %c7_i32_104 = arith.constant 7 : i32
    %482 = arith.subi %c7_i32_104, %c5_i32 : i32
    %483 = arith.index_cast %482 : i32 to index
    %c0_105 = arith.constant 0 : index
    %c0_106 = arith.constant 0 : index
    %484 = vector.load %arg6[%483, %c0_105, %c0_106] : memref<8x2x32xbf16, #tpu.memory_space<vmem>>, vector<1x2x32xbf16>
    %485 = vector.shape_cast %484 : vector<1x2x32xbf16> to vector<2x32xbf16>
    %486 = vector.shape_cast %481 : vector<2x32xbf16> to vector<1x2x32xbf16>
    tpu.vector_store %arg6[%483, %c0_105, %c0_106], %486 {strides = array<i32>} : memref<8x2x32xbf16, #tpu.memory_space<vmem>>, vector<1x2x32xbf16>,
    %487 = tpu.concatenate %442, %475 in 1 : vector<2x32xf32>, vector<2x32xf32> -> vector<2x64xf32>
    %c6_i32 = arith.constant 6 : i32
    %488 = arith.truncf %487 : vector<2x64xf32> to vector<2x64xbf16>
    %cst_107 = arith.constant dense<0.000000e+00> : vector<2x192xf32>
    %489 = tpu.matmul %488, %3, %cst_107 {dimension_numbers = #tpu.dot_dimension_numbers<[1], [0], [0], [1], [0, 0, 1, 1], [], []>} : vector<2x64xbf16>, vector<64x192xbf16>, vector<2x192xf32> -> vector<2x192xf32>
    %490 = arith.addf %489, %6 : vector<2x192xf32>
    %491 = arith.index_cast %c6_i32 : i32 to index
    %c0_108 = arith.constant 0 : index
    %c0_109 = arith.constant 0 : index
    %492 = vector.load %arg1[%491, %c0_108, %c0_109] : memref<8x2x96xbf16, #tpu.memory_space<vmem>>, vector<1x2x96xbf16>
    %493 = vector.shape_cast %492 : vector<1x2x96xbf16> to vector<2x96xbf16>
    %494 = arith.extf %493 : vector<2x96xbf16> to vector<2x96xf32>
    %495 = vector.extract_strided_slice %490 {offsets = [0, 0], sizes = [2, 96], strides = [1, 1]} : vector<2x192xf32> to vector<2x96xf32>
    %496 = vector.extract_strided_slice %487 {offsets = [0, 0], sizes = [2, 32], strides = [1, 1]} : vector<2x64xf32> to vector<2x32xf32>
    %497 = vector.extract_strided_slice %494 {offsets = [0, 0], sizes = [2, 32], strides = [1, 1]} : vector<2x96xf32> to vector<2x32xf32>
    %498 = vector.extract_strided_slice %495 {offsets = [0, 0], sizes = [2, 32], strides = [1, 1]} : vector<2x96xf32> to vector<2x32xf32>
    %499 = arith.addf %497, %498 : vector<2x32xf32>
    %500 = arith.negf %499 : vector<2x32xf32>
    %501 = math.exp %500 : vector<2x32xf32>
    %cst_110 = arith.constant 1.000000e+00 : f32
    %502 = vector.broadcast %cst_110 : f32 to vector<2x32xf32>
    %503 = arith.addf %502, %501 : vector<2x32xf32>
    %504 = arith.divf %502, %503 : vector<2x32xf32>
    %505 = vector.extract_strided_slice %494 {offsets = [0, 32], sizes = [2, 32], strides = [1, 1]} : vector<2x96xf32> to vector<2x32xf32>
    %506 = vector.extract_strided_slice %495 {offsets = [0, 32], sizes = [2, 32], strides = [1, 1]} : vector<2x96xf32> to vector<2x32xf32>
    %507 = arith.addf %505, %506 : vector<2x32xf32>
    %508 = arith.negf %507 : vector<2x32xf32>
    %509 = math.exp %508 : vector<2x32xf32>
    %cst_111 = arith.constant 1.000000e+00 : f32
    %510 = vector.broadcast %cst_111 : f32 to vector<2x32xf32>
    %511 = arith.addf %510, %509 : vector<2x32xf32>
    %512 = arith.divf %510, %511 : vector<2x32xf32>
    %513 = vector.extract_strided_slice %494 {offsets = [0, 64], sizes = [2, 32], strides = [1, 1]} : vector<2x96xf32> to vector<2x32xf32>
    %514 = vector.extract_strided_slice %495 {offsets = [0, 64], sizes = [2, 32], strides = [1, 1]} : vector<2x96xf32> to vector<2x32xf32>
    %515 = arith.mulf %504, %514 : vector<2x32xf32>
    %516 = arith.addf %513, %515 : vector<2x32xf32>
    %517 = math.tanh %516 : vector<2x32xf32>
    %cst_112 = arith.constant 1.000000e+00 : f32
    %518 = vector.broadcast %cst_112 : f32 to vector<2x32xf32>
    %519 = arith.subf %518, %512 : vector<2x32xf32>
    %520 = arith.mulf %519, %517 : vector<2x32xf32>
    %521 = arith.mulf %512, %496 : vector<2x32xf32>
    %522 = arith.addf %520, %521 : vector<2x32xf32>
    %c7_i32_113 = arith.constant 7 : i32
    %523 = arith.subi %c7_i32_113, %c6_i32 : i32
    %524 = arith.index_cast %523 : i32 to index
    %c0_114 = arith.constant 0 : index
    %c0_115 = arith.constant 0 : index
    %525 = vector.load %arg2[%524, %c0_114, %c0_115] : memref<8x2x96xbf16, #tpu.memory_space<vmem>>, vector<1x2x96xbf16>
    %526 = vector.shape_cast %525 : vector<1x2x96xbf16> to vector<2x96xbf16>
    %527 = arith.extf %526 : vector<2x96xbf16> to vector<2x96xf32>
    %528 = vector.extract_strided_slice %490 {offsets = [0, 96], sizes = [2, 96], strides = [1, 1]} : vector<2x192xf32> to vector<2x96xf32>
    %529 = vector.extract_strided_slice %487 {offsets = [0, 32], sizes = [2, 32], strides = [1, 1]} : vector<2x64xf32> to vector<2x32xf32>
    %530 = vector.extract_strided_slice %527 {offsets = [0, 0], sizes = [2, 32], strides = [1, 1]} : vector<2x96xf32> to vector<2x32xf32>
    %531 = vector.extract_strided_slice %528 {offsets = [0, 0], sizes = [2, 32], strides = [1, 1]} : vector<2x96xf32> to vector<2x32xf32>
    %532 = arith.addf %530, %531 : vector<2x32xf32>
    %533 = arith.negf %532 : vector<2x32xf32>
    %534 = math.exp %533 : vector<2x32xf32>
    %cst_116 = arith.constant 1.000000e+00 : f32
    %535 = vector.broadcast %cst_116 : f32 to vector<2x32xf32>
    %536 = arith.addf %535, %534 : vector<2x32xf32>
    %537 = arith.divf %535, %536 : vector<2x32xf32>
    %538 = vector.extract_strided_slice %527 {offsets = [0, 32], sizes = [2, 32], strides = [1, 1]} : vector<2x96xf32> to vector<2x32xf32>
    %539 = vector.extract_strided_slice %528 {offsets = [0, 32], sizes = [2, 32], strides = [1, 1]} : vector<2x96xf32> to vector<2x32xf32>
    %540 = arith.addf %538, %539 : vector<2x32xf32>
    %541 = arith.negf %540 : vector<2x32xf32>
    %542 = math.exp %541 : vector<2x32xf32>
    %cst_117 = arith.constant 1.000000e+00 : f32
    %543 = vector.broadcast %cst_117 : f32 to vector<2x32xf32>
    %544 = arith.addf %543, %542 : vector<2x32xf32>
    %545 = arith.divf %543, %544 : vector<2x32xf32>
    %546 = vector.extract_strided_slice %527 {offsets = [0, 64], sizes = [2, 32], strides = [1, 1]} : vector<2x96xf32> to vector<2x32xf32>
    %547 = vector.extract_strided_slice %528 {offsets = [0, 64], sizes = [2, 32], strides = [1, 1]} : vector<2x96xf32> to vector<2x32xf32>
    %548 = arith.mulf %537, %547 : vector<2x32xf32>
    %549 = arith.addf %546, %548 : vector<2x32xf32>
    %550 = math.tanh %549 : vector<2x32xf32>
    %cst_118 = arith.constant 1.000000e+00 : f32
    %551 = vector.broadcast %cst_118 : f32 to vector<2x32xf32>
    %552 = arith.subf %551, %545 : vector<2x32xf32>
    %553 = arith.mulf %552, %550 : vector<2x32xf32>
    %554 = arith.mulf %545, %529 : vector<2x32xf32>
    %555 = arith.addf %553, %554 : vector<2x32xf32>
    %556 = arith.truncf %522 : vector<2x32xf32> to vector<2x32xbf16>
    %557 = arith.index_cast %c6_i32 : i32 to index
    %c0_119 = arith.constant 0 : index
    %c0_120 = arith.constant 0 : index
    %558 = vector.load %arg5[%557, %c0_119, %c0_120] : memref<8x2x32xbf16, #tpu.memory_space<vmem>>, vector<1x2x32xbf16>
    %559 = vector.shape_cast %558 : vector<1x2x32xbf16> to vector<2x32xbf16>
    %560 = vector.shape_cast %556 : vector<2x32xbf16> to vector<1x2x32xbf16>
    tpu.vector_store %arg5[%557, %c0_119, %c0_120], %560 {strides = array<i32>} : memref<8x2x32xbf16, #tpu.memory_space<vmem>>, vector<1x2x32xbf16>,
    %561 = arith.truncf %555 : vector<2x32xf32> to vector<2x32xbf16>
    %c7_i32_121 = arith.constant 7 : i32
    %562 = arith.subi %c7_i32_121, %c6_i32 : i32
    %563 = arith.index_cast %562 : i32 to index
    %c0_122 = arith.constant 0 : index
    %c0_123 = arith.constant 0 : index
    %564 = vector.load %arg6[%563, %c0_122, %c0_123] : memref<8x2x32xbf16, #tpu.memory_space<vmem>>, vector<1x2x32xbf16>
    %565 = vector.shape_cast %564 : vector<1x2x32xbf16> to vector<2x32xbf16>
    %566 = vector.shape_cast %561 : vector<2x32xbf16> to vector<1x2x32xbf16>
    tpu.vector_store %arg6[%563, %c0_122, %c0_123], %566 {strides = array<i32>} : memref<8x2x32xbf16, #tpu.memory_space<vmem>>, vector<1x2x32xbf16>,
    %567 = tpu.concatenate %522, %555 in 1 : vector<2x32xf32>, vector<2x32xf32> -> vector<2x64xf32>
    %c7_i32_124 = arith.constant 7 : i32
    %568 = arith.truncf %567 : vector<2x64xf32> to vector<2x64xbf16>
    %cst_125 = arith.constant dense<0.000000e+00> : vector<2x192xf32>
    %569 = tpu.matmul %568, %3, %cst_125 {dimension_numbers = #tpu.dot_dimension_numbers<[1], [0], [0], [1], [0, 0, 1, 1], [], []>} : vector<2x64xbf16>, vector<64x192xbf16>, vector<2x192xf32> -> vector<2x192xf32>
    %570 = arith.addf %569, %6 : vector<2x192xf32>
    %571 = arith.index_cast %c7_i32_124 : i32 to index
    %c0_126 = arith.constant 0 : index
    %c0_127 = arith.constant 0 : index
    %572 = vector.load %arg1[%571, %c0_126, %c0_127] : memref<8x2x96xbf16, #tpu.memory_space<vmem>>, vector<1x2x96xbf16>
    %573 = vector.shape_cast %572 : vector<1x2x96xbf16> to vector<2x96xbf16>
    %574 = arith.extf %573 : vector<2x96xbf16> to vector<2x96xf32>
    %575 = vector.extract_strided_slice %570 {offsets = [0, 0], sizes = [2, 96], strides = [1, 1]} : vector<2x192xf32> to vector<2x96xf32>
    %576 = vector.extract_strided_slice %567 {offsets = [0, 0], sizes = [2, 32], strides = [1, 1]} : vector<2x64xf32> to vector<2x32xf32>
    %577 = vector.extract_strided_slice %574 {offsets = [0, 0], sizes = [2, 32], strides = [1, 1]} : vector<2x96xf32> to vector<2x32xf32>
    %578 = vector.extract_strided_slice %575 {offsets = [0, 0], sizes = [2, 32], strides = [1, 1]} : vector<2x96xf32> to vector<2x32xf32>
    %579 = arith.addf %577, %578 : vector<2x32xf32>
    %580 = arith.negf %579 : vector<2x32xf32>
    %581 = math.exp %580 : vector<2x32xf32>
    %cst_128 = arith.constant 1.000000e+00 : f32
    %582 = vector.broadcast %cst_128 : f32 to vector<2x32xf32>
    %583 = arith.addf %582, %581 : vector<2x32xf32>
    %584 = arith.divf %582, %583 : vector<2x32xf32>
    %585 = vector.extract_strided_slice %574 {offsets = [0, 32], sizes = [2, 32], strides = [1, 1]} : vector<2x96xf32> to vector<2x32xf32>
    %586 = vector.extract_strided_slice %575 {offsets = [0, 32], sizes = [2, 32], strides = [1, 1]} : vector<2x96xf32> to vector<2x32xf32>
    %587 = arith.addf %585, %586 : vector<2x32xf32>
    %588 = arith.negf %587 : vector<2x32xf32>
    %589 = math.exp %588 : vector<2x32xf32>
    %cst_129 = arith.constant 1.000000e+00 : f32
    %590 = vector.broadcast %cst_129 : f32 to vector<2x32xf32>
    %591 = arith.addf %590, %589 : vector<2x32xf32>
    %592 = arith.divf %590, %591 : vector<2x32xf32>
    %593 = vector.extract_strided_slice %574 {offsets = [0, 64], sizes = [2, 32], strides = [1, 1]} : vector<2x96xf32> to vector<2x32xf32>
    %594 = vector.extract_strided_slice %575 {offsets = [0, 64], sizes = [2, 32], strides = [1, 1]} : vector<2x96xf32> to vector<2x32xf32>
    %595 = arith.mulf %584, %594 : vector<2x32xf32>
    %596 = arith.addf %593, %595 : vector<2x32xf32>
    %597 = math.tanh %596 : vector<2x32xf32>
    %cst_130 = arith.constant 1.000000e+00 : f32
    %598 = vector.broadcast %cst_130 : f32 to vector<2x32xf32>
    %599 = arith.subf %598, %592 : vector<2x32xf32>
    %600 = arith.mulf %599, %597 : vector<2x32xf32>
    %601 = arith.mulf %592, %576 : vector<2x32xf32>
    %602 = arith.addf %600, %601 : vector<2x32xf32>
    %c7_i32_131 = arith.constant 7 : i32
    %603 = arith.subi %c7_i32_131, %c7_i32_124 : i32
    %604 = arith.index_cast %603 : i32 to index
    %c0_132 = arith.constant 0 : index
    %c0_133 = arith.constant 0 : index
    %605 = vector.load %arg2[%604, %c0_132, %c0_133] : memref<8x2x96xbf16, #tpu.memory_space<vmem>>, vector<1x2x96xbf16>
    %606 = vector.shape_cast %605 : vector<1x2x96xbf16> to vector<2x96xbf16>
    %607 = arith.extf %606 : vector<2x96xbf16> to vector<2x96xf32>
    %608 = vector.extract_strided_slice %570 {offsets = [0, 96], sizes = [2, 96], strides = [1, 1]} : vector<2x192xf32> to vector<2x96xf32>
    %609 = vector.extract_strided_slice %567 {offsets = [0, 32], sizes = [2, 32], strides = [1, 1]} : vector<2x64xf32> to vector<2x32xf32>
    %610 = vector.extract_strided_slice %607 {offsets = [0, 0], sizes = [2, 32], strides = [1, 1]} : vector<2x96xf32> to vector<2x32xf32>
    %611 = vector.extract_strided_slice %608 {offsets = [0, 0], sizes = [2, 32], strides = [1, 1]} : vector<2x96xf32> to vector<2x32xf32>
    %612 = arith.addf %610, %611 : vector<2x32xf32>
    %613 = arith.negf %612 : vector<2x32xf32>
    %614 = math.exp %613 : vector<2x32xf32>
    %cst_134 = arith.constant 1.000000e+00 : f32
    %615 = vector.broadcast %cst_134 : f32 to vector<2x32xf32>
    %616 = arith.addf %615, %614 : vector<2x32xf32>
    %617 = arith.divf %615, %616 : vector<2x32xf32>
    %618 = vector.extract_strided_slice %607 {offsets = [0, 32], sizes = [2, 32], strides = [1, 1]} : vector<2x96xf32> to vector<2x32xf32>
    %619 = vector.extract_strided_slice %608 {offsets = [0, 32], sizes = [2, 32], strides = [1, 1]} : vector<2x96xf32> to vector<2x32xf32>
    %620 = arith.addf %618, %619 : vector<2x32xf32>
    %621 = arith.negf %620 : vector<2x32xf32>
    %622 = math.exp %621 : vector<2x32xf32>
    %cst_135 = arith.constant 1.000000e+00 : f32
    %623 = vector.broadcast %cst_135 : f32 to vector<2x32xf32>
    %624 = arith.addf %623, %622 : vector<2x32xf32>
    %625 = arith.divf %623, %624 : vector<2x32xf32>
    %626 = vector.extract_strided_slice %607 {offsets = [0, 64], sizes = [2, 32], strides = [1, 1]} : vector<2x96xf32> to vector<2x32xf32>
    %627 = vector.extract_strided_slice %608 {offsets = [0, 64], sizes = [2, 32], strides = [1, 1]} : vector<2x96xf32> to vector<2x32xf32>
    %628 = arith.mulf %617, %627 : vector<2x32xf32>
    %629 = arith.addf %626, %628 : vector<2x32xf32>
    %630 = math.tanh %629 : vector<2x32xf32>
    %cst_136 = arith.constant 1.000000e+00 : f32
    %631 = vector.broadcast %cst_136 : f32 to vector<2x32xf32>
    %632 = arith.subf %631, %625 : vector<2x32xf32>
    %633 = arith.mulf %632, %630 : vector<2x32xf32>
    %634 = arith.mulf %625, %609 : vector<2x32xf32>
    %635 = arith.addf %633, %634 : vector<2x32xf32>
    %636 = arith.truncf %602 : vector<2x32xf32> to vector<2x32xbf16>
    %637 = arith.index_cast %c7_i32_124 : i32 to index
    %c0_137 = arith.constant 0 : index
    %c0_138 = arith.constant 0 : index
    %638 = vector.load %arg5[%637, %c0_137, %c0_138] : memref<8x2x32xbf16, #tpu.memory_space<vmem>>, vector<1x2x32xbf16>
    %639 = vector.shape_cast %638 : vector<1x2x32xbf16> to vector<2x32xbf16>
    %640 = vector.shape_cast %636 : vector<2x32xbf16> to vector<1x2x32xbf16>
    tpu.vector_store %arg5[%637, %c0_137, %c0_138], %640 {strides = array<i32>} : memref<8x2x32xbf16, #tpu.memory_space<vmem>>, vector<1x2x32xbf16>,
    %641 = arith.truncf %635 : vector<2x32xf32> to vector<2x32xbf16>
    %c7_i32_139 = arith.constant 7 : i32
    %642 = arith.subi %c7_i32_139, %c7_i32_124 : i32
    %643 = arith.index_cast %642 : i32 to index
    %c0_140 = arith.constant 0 : index
    %c0_141 = arith.constant 0 : index
    %644 = vector.load %arg6[%643, %c0_140, %c0_141] : memref<8x2x32xbf16, #tpu.memory_space<vmem>>, vector<1x2x32xbf16>
    %645 = vector.shape_cast %644 : vector<1x2x32xbf16> to vector<2x32xbf16>
    %646 = vector.shape_cast %641 : vector<2x32xbf16> to vector<1x2x32xbf16>
    tpu.vector_store %arg6[%643, %c0_140, %c0_141], %646 {strides = array<i32>} : memref<8x2x32xbf16, #tpu.memory_space<vmem>>, vector<1x2x32xbf16>,
    %647 = tpu.concatenate %602, %635 in 1 : vector<2x32xf32>, vector<2x32xf32> -> vector<2x64xf32>
    %c8_i32 = arith.constant 8 : i32
    %c0_142 = arith.constant 0 : index
    %c0_143 = arith.constant 0 : index
    %648 = vector.load %arg7[%c0_142, %c0_143] : memref<2x64xf32, #tpu.memory_space<vmem>>, vector<2x64xf32>
    tpu.vector_store %arg7[%c0_142, %c0_143], %647 {strides = array<i32>} : memref<2x64xf32, #tpu.memory_space<vmem>>, vector<2x64xf32>,
    return
  }
  func.func @transform_0(%arg0: i32) -> (i32, i32, i32) {
    %c0_i32 = arith.constant 0 : i32
    %c0_i32_0 = arith.constant 0 : i32
    %c0_i32_1 = arith.constant 0 : i32
    return %arg0, %c0_i32, %c0_i32_0 : i32, i32, i32
  }
  func.func @transform_1(%arg0: i32) -> (i32, i32, i32) {
    %c0_i32 = arith.constant 0 : i32
    %0 = arith.subi %c0_i32, %arg0 : i32
    %c0_i32_0 = arith.constant 0 : i32
    %c0_i32_1 = arith.constant 0 : i32
    %c0_i32_2 = arith.constant 0 : i32
    return %0, %c0_i32_0, %c0_i32_1 : i32, i32, i32
  }
  func.func @transform_2(%arg0: i32) -> (i32, i32) {
    %c0_i32 = arith.constant 0 : i32
    %c0_i32_0 = arith.constant 0 : i32
    %c0_i32_1 = arith.constant 0 : i32
    return %c0_i32, %c0_i32_0 : i32, i32
  }
  func.func @transform_3(%arg0: i32) -> (i32, i32) {
    %c0_i32 = arith.constant 0 : i32
    %c0_i32_0 = arith.constant 0 : i32
    %c0_i32_1 = arith.constant 0 : i32
    return %c0_i32, %c0_i32_0 : i32, i32
  }
  func.func @transform_4(%arg0: i32) -> (i32, i32, i32) {
    %c0_i32 = arith.constant 0 : i32
    %c0_i32_0 = arith.constant 0 : i32
    %c0_i32_1 = arith.constant 0 : i32
    return %arg0, %c0_i32, %c0_i32_0 : i32, i32, i32
  }
  func.func @transform_5(%arg0: i32) -> (i32, i32, i32) {
    %c0_i32 = arith.constant 0 : i32
    %0 = arith.subi %c0_i32, %arg0 : i32
    %c0_i32_0 = arith.constant 0 : i32
    %c0_i32_1 = arith.constant 0 : i32
    %c0_i32_2 = arith.constant 0 : i32
    return %0, %c0_i32_0, %c0_i32_1 : i32, i32, i32
  }
}

module attributes {stable_mosaic.version = 11 : i64} {
  func.func @_mlp_kernel(%arg0: i32, %arg1: memref<8x2x32xbf16, #tpu.memory_space<vmem>>, %arg2: memref<8x2x32xbf16, #tpu.memory_space<vmem>>, %arg3: memref<8x2x32xf32, #tpu.memory_space<vmem>>, %arg4: memref<64x128xbf16, #tpu.memory_space<vmem>>, %arg5: memref<1x128xf32, #tpu.memory_space<vmem>>, %arg6: memref<1x128xf32, #tpu.memory_space<vmem>>, %arg7: memref<1x128xf32, #tpu.memory_space<vmem>>, %arg8: memref<128x32xbf16, #tpu.memory_space<vmem>>, %arg9: memref<1x32xf32, #tpu.memory_space<vmem>>, %arg10: memref<1x32xf32, #tpu.memory_space<vmem>>, %arg11: memref<1x32xf32, #tpu.memory_space<vmem>>, %arg12: memref<8x2x32xf32, #tpu.memory_space<vmem>>) attributes {dimension_semantics = [#tpu.dimension_semantics<parallel>], iteration_bounds = array<i64: 1>, scalar_prefetch = 0 : i64, scratch_operands = 0 : i64, tpu.core_type = #tpu.core_type<tc>, window_params = [{transform_indices = @transform_0, window_bounds = array<i64: 8, 2, 32>}, {transform_indices = @transform_1, window_bounds = array<i64: 8, 2, 32>}, {transform_indices = @transform_2, window_bounds = array<i64: 8, 2, 32>}, {pipeline_mode = #tpu.pipeline_mode<synchronous>, transform_indices = @transform_3, window_bounds = array<i64: 64, 128>}, {pipeline_mode = #tpu.pipeline_mode<synchronous>, transform_indices = @transform_4, window_bounds = array<i64: 1, 128>}, {pipeline_mode = #tpu.pipeline_mode<synchronous>, transform_indices = @transform_5, window_bounds = array<i64: 1, 128>}, {pipeline_mode = #tpu.pipeline_mode<synchronous>, transform_indices = @transform_6, window_bounds = array<i64: 1, 128>}, {pipeline_mode = #tpu.pipeline_mode<synchronous>, transform_indices = @transform_7, window_bounds = array<i64: 128, 32>}, {pipeline_mode = #tpu.pipeline_mode<synchronous>, transform_indices = @transform_8, window_bounds = array<i64: 1, 32>}, {pipeline_mode = #tpu.pipeline_mode<synchronous>, transform_indices = @transform_9, window_bounds = array<i64: 1, 32>}, {pipeline_mode = #tpu.pipeline_mode<synchronous>, transform_indices = @transform_10, window_bounds = array<i64: 1, 32>}, {transform_indices = @transform_11, window_bounds = array<i64: 8, 2, 32>}]} {
    %c0 = arith.constant 0 : index
    %c0_0 = arith.constant 0 : index
    %c0_1 = arith.constant 0 : index
    %0 = vector.load %arg1[%c0, %c0_0, %c0_1] : memref<8x2x32xbf16, #tpu.memory_space<vmem>>, vector<8x2x32xbf16>
    %c0_2 = arith.constant 0 : index
    %c0_3 = arith.constant 0 : index
    %c0_4 = arith.constant 0 : index
    %1 = vector.load %arg2[%c0_2, %c0_3, %c0_4] : memref<8x2x32xbf16, #tpu.memory_space<vmem>>, vector<8x2x32xbf16>
    %2 = tpu.concatenate %0, %1 in 2 : vector<8x2x32xbf16>, vector<8x2x32xbf16> -> vector<8x2x64xbf16>
    %3 = vector.shape_cast %2 : vector<8x2x64xbf16> to vector<16x64xbf16>
    %c0_5 = arith.constant 0 : index
    %c0_6 = arith.constant 0 : index
    %4 = vector.load %arg4[%c0_5, %c0_6] : memref<64x128xbf16, #tpu.memory_space<vmem>>, vector<64x128xbf16>
    %cst = arith.constant dense<0.000000e+00> : vector<16x128xf32>
    %5 = tpu.matmul %3, %4, %cst {dimension_numbers = #tpu.dot_dimension_numbers<[1], [0], [0], [1], [0, 0, 1, 1], [], []>} : vector<16x64xbf16>, vector<64x128xbf16>, vector<16x128xf32> -> vector<16x128xf32>
    %c0_7 = arith.constant 0 : index
    %c0_8 = arith.constant 0 : index
    %6 = vector.load %arg5[%c0_7, %c0_8] : memref<1x128xf32, #tpu.memory_space<vmem>>, vector<1x128xf32>
    %7 = vector.broadcast %6 : vector<1x128xf32> to vector<16x128xf32>
    %8 = arith.addf %5, %7 : vector<16x128xf32>
    %c0_9 = arith.constant 0 : index
    %c0_10 = arith.constant 0 : index
    %9 = vector.load %arg6[%c0_9, %c0_10] : memref<1x128xf32, #tpu.memory_space<vmem>>, vector<1x128xf32>
    %c0_11 = arith.constant 0 : index
    %c0_12 = arith.constant 0 : index
    %10 = vector.load %arg7[%c0_11, %c0_12] : memref<1x128xf32, #tpu.memory_space<vmem>>, vector<1x128xf32>
    %cst_13 = arith.constant dense<0.000000e+00> : vector<16xf32>
    %11 = vector.multi_reduction <add>, %8, %cst_13 [1] : vector<16x128xf32> to vector<16xf32>
    %12 = vector.shape_cast %11 : vector<16xf32> to vector<16x1xf32>
    %cst_14 = arith.constant 1.280000e+02 : f32
    %13 = vector.broadcast %cst_14 : f32 to vector<16x1xf32>
    %14 = arith.divf %12, %13 : vector<16x1xf32>
    %15 = vector.broadcast %14 : vector<16x1xf32> to vector<16x128xf32>
    %16 = arith.subf %8, %15 : vector<16x128xf32>
    %17 = arith.mulf %16, %16 : vector<16x128xf32>
    %cst_15 = arith.constant dense<0.000000e+00> : vector<16xf32>
    %18 = vector.multi_reduction <add>, %17, %cst_15 [1] : vector<16x128xf32> to vector<16xf32>
    %19 = vector.shape_cast %18 : vector<16xf32> to vector<16x1xf32>
    %cst_16 = arith.constant 1.280000e+02 : f32
    %20 = vector.broadcast %cst_16 : f32 to vector<16x1xf32>
    %21 = arith.divf %19, %20 : vector<16x1xf32>
    %22 = vector.broadcast %14 : vector<16x1xf32> to vector<16x128xf32>
    %23 = arith.subf %8, %22 : vector<16x128xf32>
    %cst_17 = arith.constant 9.99999974E-6 : f32
    %24 = vector.broadcast %cst_17 : f32 to vector<16x1xf32>
    %25 = arith.addf %21, %24 : vector<16x1xf32>
    %26 = math.rsqrt %25 : vector<16x1xf32>
    %27 = vector.broadcast %26 : vector<16x1xf32> to vector<16x128xf32>
    %28 = arith.mulf %23, %27 : vector<16x128xf32>
    %29 = vector.broadcast %9 : vector<1x128xf32> to vector<16x128xf32>
    %30 = arith.mulf %28, %29 : vector<16x128xf32>
    %31 = vector.broadcast %10 : vector<1x128xf32> to vector<16x128xf32>
    %32 = arith.addf %30, %31 : vector<16x128xf32>
    %cst_18 = arith.constant 0.000000e+00 : f32
    %33 = vector.broadcast %cst_18 : f32 to vector<16x128xf32>
    %34 = arith.maximumf %32, %33 : vector<16x128xf32>
    %35 = arith.truncf %34 : vector<16x128xf32> to vector<16x128xbf16>
    %c0_19 = arith.constant 0 : index
    %c0_20 = arith.constant 0 : index
    %36 = vector.load %arg8[%c0_19, %c0_20] : memref<128x32xbf16, #tpu.memory_space<vmem>>, vector<128x32xbf16>
    %cst_21 = arith.constant dense<0.000000e+00> : vector<16x32xf32>
    %37 = tpu.matmul %35, %36, %cst_21 {dimension_numbers = #tpu.dot_dimension_numbers<[1], [0], [0], [1], [0, 0, 1, 1], [], []>} : vector<16x128xbf16>, vector<128x32xbf16>, vector<16x32xf32> -> vector<16x32xf32>
    %c0_22 = arith.constant 0 : index
    %c0_23 = arith.constant 0 : index
    %38 = vector.load %arg9[%c0_22, %c0_23] : memref<1x32xf32, #tpu.memory_space<vmem>>, vector<1x32xf32>
    %39 = vector.broadcast %38 : vector<1x32xf32> to vector<16x32xf32>
    %40 = arith.addf %37, %39 : vector<16x32xf32>
    %c0_24 = arith.constant 0 : index
    %c0_25 = arith.constant 0 : index
    %41 = vector.load %arg10[%c0_24, %c0_25] : memref<1x32xf32, #tpu.memory_space<vmem>>, vector<1x32xf32>
    %c0_26 = arith.constant 0 : index
    %c0_27 = arith.constant 0 : index
    %42 = vector.load %arg11[%c0_26, %c0_27] : memref<1x32xf32, #tpu.memory_space<vmem>>, vector<1x32xf32>
    %cst_28 = arith.constant dense<0.000000e+00> : vector<16xf32>
    %43 = vector.multi_reduction <add>, %40, %cst_28 [1] : vector<16x32xf32> to vector<16xf32>
    %44 = vector.shape_cast %43 : vector<16xf32> to vector<16x1xf32>
    %cst_29 = arith.constant 3.200000e+01 : f32
    %45 = vector.broadcast %cst_29 : f32 to vector<16x1xf32>
    %46 = arith.divf %44, %45 : vector<16x1xf32>
    %47 = vector.broadcast %46 : vector<16x1xf32> to vector<16x32xf32>
    %48 = arith.subf %40, %47 : vector<16x32xf32>
    %49 = arith.mulf %48, %48 : vector<16x32xf32>
    %cst_30 = arith.constant dense<0.000000e+00> : vector<16xf32>
    %50 = vector.multi_reduction <add>, %49, %cst_30 [1] : vector<16x32xf32> to vector<16xf32>
    %51 = vector.shape_cast %50 : vector<16xf32> to vector<16x1xf32>
    %cst_31 = arith.constant 3.200000e+01 : f32
    %52 = vector.broadcast %cst_31 : f32 to vector<16x1xf32>
    %53 = arith.divf %51, %52 : vector<16x1xf32>
    %54 = vector.broadcast %46 : vector<16x1xf32> to vector<16x32xf32>
    %55 = arith.subf %40, %54 : vector<16x32xf32>
    %cst_32 = arith.constant 9.99999974E-6 : f32
    %56 = vector.broadcast %cst_32 : f32 to vector<16x1xf32>
    %57 = arith.addf %53, %56 : vector<16x1xf32>
    %58 = math.rsqrt %57 : vector<16x1xf32>
    %59 = vector.broadcast %58 : vector<16x1xf32> to vector<16x32xf32>
    %60 = arith.mulf %55, %59 : vector<16x32xf32>
    %61 = vector.broadcast %41 : vector<1x32xf32> to vector<16x32xf32>
    %62 = arith.mulf %60, %61 : vector<16x32xf32>
    %63 = vector.broadcast %42 : vector<1x32xf32> to vector<16x32xf32>
    %64 = arith.addf %62, %63 : vector<16x32xf32>
    %cst_33 = arith.constant 0.000000e+00 : f32
    %65 = vector.broadcast %cst_33 : f32 to vector<16x32xf32>
    %66 = arith.maximumf %64, %65 : vector<16x32xf32>
    %67 = vector.shape_cast %66 : vector<16x32xf32> to vector<8x2x32xf32>
    %c0_34 = arith.constant 0 : index
    %c0_35 = arith.constant 0 : index
    %c0_36 = arith.constant 0 : index
    %68 = vector.load %arg3[%c0_34, %c0_35, %c0_36] : memref<8x2x32xf32, #tpu.memory_space<vmem>>, vector<8x2x32xf32>
    %69 = arith.addf %67, %68 : vector<8x2x32xf32>
    %c0_37 = arith.constant 0 : index
    %c0_38 = arith.constant 0 : index
    %c0_39 = arith.constant 0 : index
    %70 = vector.load %arg12[%c0_37, %c0_38, %c0_39] : memref<8x2x32xf32, #tpu.memory_space<vmem>>, vector<8x2x32xf32>
    tpu.vector_store %arg12[%c0_37, %c0_38, %c0_39], %69 {strides = array<i32>} : memref<8x2x32xf32, #tpu.memory_space<vmem>>, vector<8x2x32xf32>,
    return
  }
  func.func @transform_0(%arg0: i32) -> (i32, i32, i32) {
    %c0_i32 = arith.constant 0 : i32
    %c0_i32_0 = arith.constant 0 : i32
    %c0_i32_1 = arith.constant 0 : i32
    return %arg0, %c0_i32, %c0_i32_0 : i32, i32, i32
  }
  func.func @transform_1(%arg0: i32) -> (i32, i32, i32) {
    %c0_i32 = arith.constant 0 : i32
    %c0_i32_0 = arith.constant 0 : i32
    %c0_i32_1 = arith.constant 0 : i32
    return %arg0, %c0_i32, %c0_i32_0 : i32, i32, i32
  }
  func.func @transform_2(%arg0: i32) -> (i32, i32, i32) {
    %c0_i32 = arith.constant 0 : i32
    %c0_i32_0 = arith.constant 0 : i32
    %c0_i32_1 = arith.constant 0 : i32
    return %arg0, %c0_i32, %c0_i32_0 : i32, i32, i32
  }
  func.func @transform_3(%arg0: i32) -> (i32, i32) {
    %c0_i32 = arith.constant 0 : i32
    %c0_i32_0 = arith.constant 0 : i32
    %c0_i32_1 = arith.constant 0 : i32
    return %c0_i32, %c0_i32_0 : i32, i32
  }
  func.func @transform_4(%arg0: i32) -> (i32, i32) {
    %c0_i32 = arith.constant 0 : i32
    %c0_i32_0 = arith.constant 0 : i32
    %c0_i32_1 = arith.constant 0 : i32
    return %c0_i32, %c0_i32_0 : i32, i32
  }
  func.func @transform_5(%arg0: i32) -> (i32, i32) {
    %c0_i32 = arith.constant 0 : i32
    %c0_i32_0 = arith.constant 0 : i32
    %c0_i32_1 = arith.constant 0 : i32
    return %c0_i32, %c0_i32_0 : i32, i32
  }
  func.func @transform_6(%arg0: i32) -> (i32, i32) {
    %c0_i32 = arith.constant 0 : i32
    %c0_i32_0 = arith.constant 0 : i32
    %c0_i32_1 = arith.constant 0 : i32
    return %c0_i32, %c0_i32_0 : i32, i32
  }
  func.func @transform_7(%arg0: i32) -> (i32, i32) {
    %c0_i32 = arith.constant 0 : i32
    %c0_i32_0 = arith.constant 0 : i32
    %c0_i32_1 = arith.constant 0 : i32
    return %c0_i32, %c0_i32_0 : i32, i32
  }
  func.func @transform_8(%arg0: i32) -> (i32, i32) {
    %c0_i32 = arith.constant 0 : i32
    %c0_i32_0 = arith.constant 0 : i32
    %c0_i32_1 = arith.constant 0 : i32
    return %c0_i32, %c0_i32_0 : i32, i32
  }
  func.func @transform_9(%arg0: i32) -> (i32, i32) {
    %c0_i32 = arith.constant 0 : i32
    %c0_i32_0 = arith.constant 0 : i32
    %c0_i32_1 = arith.constant 0 : i32
    return %c0_i32, %c0_i32_0 : i32, i32
  }
  func.func @transform_10(%arg0: i32) -> (i32, i32) {
    %c0_i32 = arith.constant 0 : i32
    %c0_i32_0 = arith.constant 0 : i32
    %c0_i32_1 = arith.constant 0 : i32
    return %c0_i32, %c0_i32_0 : i32, i32
  }
  func.func @transform_11(%arg0: i32) -> (i32, i32, i32) {
    %c0_i32 = arith.constant 0 : i32
    %c0_i32_0 = arith.constant 0 : i32
    %c0_i32_1 = arith.constant 0 : i32
    return %arg0, %c0_i32, %c0_i32_0 : i32, i32, i32
  }
}

</mosaic_0001>

<llo_original>
// kernel: residual_bigru_forward.3
$region0: #{residual_bigru_forward.3}
  #allocation0 [shape = 'u32[]', space=smem, size = 0x4, offset = 0x4, fixed_abs, tag = 'smem constant byte address 0x4 - core index']
  #allocation1 [shape = 'u32[144,128]{1,0:T(1,128)}', space=vmem, size = 0x12000, scoped, tag = 'internal scratch']
  %s0 = inlined_call_operand.hbm [shape: bf16[8,2,32], index: 0, kind: input, shape index: {}]
  %s1 = inlined_call_operand.hbm [shape: bf16[8,2,32], index: 1, kind: input, shape index: {}]
  %s2 = inlined_call_operand.hbm [shape: f32[8,2,32], index: 2, kind: input, shape index: {}]
  %s3 = inlined_call_operand.hbm [shape: bf16[64,128], index: 3, kind: input, shape index: {}]
  %s4 = inlined_call_operand.hbm [shape: f32[1,128], index: 4, kind: input, shape index: {}]
  %s5 = inlined_call_operand.hbm [shape: f32[1,128], index: 5, kind: input, shape index: {}]
  %s6 = inlined_call_operand.hbm [shape: f32[1,128], index: 6, kind: input, shape index: {}]
  %s7 = inlined_call_operand.hbm [shape: bf16[128,32], index: 7, kind: input, shape index: {}]
  %s8 = inlined_call_operand.hbm [shape: f32[1,32], index: 8, kind: input, shape index: {}]
  %s9 = inlined_call_operand.hbm [shape: f32[1,32], index: 9, kind: input, shape index: {}]
  %s10 = inlined_call_operand.hbm [shape: f32[1,32], index: 10, kind: input, shape index: {}]
  %s11 = inlined_call_operand.hbm [shape: f32[8,2,32], index: 11, kind: output, shape index: {}]
  %s12 = sld [smem:[#allocation0]]
  $region98: #{residual_bigru_forward.3} parent=0
    _
  %s14 = ssub.s32 1, %s12
  %s15 = scalar_select 0, %s14, %s12
  $region1: #{residual_bigru_forward.3} parent=0
    #allocation2 [shape = 'u8[4096]{0}', space=vmem, size = 0x1000, scoped, tag = 'input window, operand 0, single buffered']
    #allocation3 [shape = 's32[1]{0}', space=sflag, size = 0x4, scoped, tag = 'scoped memory for residual_bigru_forward.3']
    #allocation4 [shape = 's32[1]{0}', space=sflag, size = 0x4, scoped, tag = 'scoped memory for residual_bigru_forward.3']
    #allocation5 [shape = 'u8[4096]{0}', space=vmem, size = 0x1000, scoped, tag = 'input window, operand 1, single buffered']
    #allocation6 [shape = 's32[1]{0}', space=sflag, size = 0x4, scoped, tag = 'scoped memory for residual_bigru_forward.3']
    #allocation7 [shape = 'u8[8192]{0}', space=vmem, size = 0x2000, scoped, tag = 'input window, operand 2, single buffered']
    #allocation8 [shape = 'u8[16384]{0}', space=vmem, size = 0x4000, scoped, tag = 'input window, operand 3, single buffered']
    #allocation9 [shape = 's32[1]{0}', space=sflag, size = 0x4, scoped, tag = 'scoped memory for residual_bigru_forward.3']
    #allocation10 [shape = 'u8[512]{0}', space=vmem, size = 0x400, scoped, tag = 'input window, operand 4, single buffered']
    #allocation11 [shape = 'u8[512]{0}', space=vmem, size = 0x400, scoped, tag = 'input window, operand 5, single buffered']
    #allocation12 [shape = 's32[1]{0}', space=sflag, size = 0x4, scoped, tag = 'scoped memory for residual_bigru_forward.3']
    #allocation13 [shape = 'u8[512]{0}', space=vmem, size = 0x400, scoped, tag = 'input window, operand 6, single buffered']
    #allocation14 [shape = 'u8[32768]{0}', space=vmem, size = 0x8000, scoped, tag = 'input window, operand 7, single buffered']
    #allocation15 [shape = 's32[1]{0}', space=sflag, size = 0x4, scoped, tag = 'scoped memory for residual_bigru_forward.3']
    #allocation16 [shape = 'u8[512]{0}', space=vmem, size = 0x400, scoped, tag = 'input window, operand 8, single buffered']
    #allocation17 [shape = 'u8[512]{0}', space=vmem, size = 0x400, scoped, tag = 'input window, operand 9, single buffered']
    #allocation18 [shape = 's32[1]{0}', space=sflag, size = 0x4, scoped, tag = 'scoped memory for residual_bigru_forward.3']
    #allocation19 [shape = 'u8[512]{0}', space=vmem, size = 0x400, scoped, tag = 'input window, operand 10, single buffered']
    #allocation20 [shape = 'u8[8192]{0}', space=vmem, size = 0x2000, scoped, tag = 'output window, operand 0, single buffered']
    %16 = vsyncpa [#allocation3], 0
    %17 = vsyncpa [#allocation6], 0
    %18 = vsyncpa [#allocation9], 0
    %19 = vsyncpa [#allocation12], 0
    %20 = vsyncpa [#allocation15], 0
    %21 = vsyncpa [#allocation18], 0
    %22 = vsyncpa [#allocation4], 0
    // Predicated region
    $region2: #{residual_bigru_forward.3} parent=1 // pred_check
      _
    $region3: #{residual_bigru_forward.3} parent=1 // pred_check_branch
      %24 = sbr.rel (0) target = $region5
    $region4: #{residual_bigru_forward.3} parent=1 // pred_region
      %s26 = ssub.s32 128, 128
      %27 = vsyncadd [#allocation3], %s26
      %s28 = sshll.u32 [#allocation2], 4
      %s29 = int_to_ptr.vmem [resolvable:$true] %s28
      %34 = dma.hbm_to_vmem [thread:$0]  %s0, 128, %s29, [#allocation3], 16, 16, 1
    $region5: #{residual_bigru_forward.3} parent=1 // pred_fallthru
      _
    // Predicated region
    $region6: #{residual_bigru_forward.3} parent=1 // pred_check
      _
    $region7: #{residual_bigru_forward.3} parent=1 // pred_check_branch
      %36 = sbr.rel (0) target = $region9
    $region8: #{residual_bigru_forward.3} parent=1 // pred_region
      %s38 = ssub.s32 128, 128
      %39 = vsyncadd [#allocation6], %s38
      %s40 = sshll.u32 [#allocation5], 4
      %s41 = int_to_ptr.vmem [resolvable:$true] %s40
      %46 = dma.hbm_to_vmem [thread:$0]  %s1, 128, %s41, [#allocation6], 16, 16, 1
    $region9: #{residual_bigru_forward.3} parent=1 // pred_fallthru
      _
    // Predicated region
    $region10: #{residual_bigru_forward.3} parent=1 // pred_check
      _
    $region11: #{residual_bigru_forward.3} parent=1 // pred_check_branch
      %48 = sbr.rel (0) target = $region13
    $region12: #{residual_bigru_forward.3} parent=1 // pred_region
      %s50 = ssub.s32 256, 256
      %51 = vsyncadd [#allocation6], %s50
      %s52 = sshll.u32 [#allocation7], 4
      %s53 = int_to_ptr.vmem [resolvable:$true] %s52
      %58 = dma.hbm_to_vmem [thread:$0]  %s2, 256, %s53, [#allocation6], 32, 32, 2
    $region13: #{residual_bigru_forward.3} parent=1 // pred_fallthru
      _
    // Predicated region
    $region14: #{residual_bigru_forward.3} parent=1 // pred_check
      _
    $region15: #{residual_bigru_forward.3} parent=1 // pred_check_branch
      %60 = sbr.rel (0) target = $region17
    $region16: #{residual_bigru_forward.3} parent=1 // pred_region
      %s62 = ssub.s32 512, 512
      %63 = vsyncadd [#allocation9], %s62
      %s64 = sshll.u32 [#allocation8], 4
      %s65 = int_to_ptr.vmem [resolvable:$true] %s64
      %70 = dma.hbm_to_vmem [thread:$0]  %s3, 512, %s65, [#allocation9], 64, 64, 4
    $region17: #{residual_bigru_forward.3} parent=1 // pred_fallthru
      _
    // Predicated region
    $region18: #{residual_bigru_forward.3} parent=1 // pred_check
      _
    $region19: #{residual_bigru_forward.3} parent=1 // pred_check_branch
      %72 = sbr.rel (0) target = $region21
    $region20: #{residual_bigru_forward.3} parent=1 // pred_region
      %s74 = ssub.s32 16, 16
      %75 = vsyncadd [#allocation9], %s74
      %s77 = sshll.u32 [#allocation10], 4
      %s78 = int_to_ptr.vmem [resolvable:$true] %s77
      %80 = dma.hbm_to_vmem [thread:$0]  %s4, 16, %s78, [#allocation9]
    $region21: #{residual_bigru_forward.3} parent=1 // pred_fallthru
      _
    // Predicated region
    $region22: #{residual_bigru_forward.3} parent=1 // pred_check
      _
    $region23: #{residual_bigru_forward.3} parent=1 // pred_check_branch
      %82 = sbr.rel (0) target = $region25
    $region24: #{residual_bigru_forward.3} parent=1 // pred_region
      %s84 = ssub.s32 16, 16
      %85 = vsyncadd [#allocation12], %s84
      %s87 = sshll.u32 [#allocation11], 4
      %s88 = int_to_ptr.vmem [resolvable:$true] %s87
      %90 = dma.hbm_to_vmem [thread:$0]  %s5, 16, %s88, [#allocation12]
    $region25: #{residual_bigru_forward.3} parent=1 // pred_fallthru
      _
    // Predicated region
    $region26: #{residual_bigru_forward.3} parent=1 // pred_check
      _
    $region27: #{residual_bigru_forward.3} parent=1 // pred_check_branch
      %92 = sbr.rel (0) target = $region29
    $region28: #{residual_bigru_forward.3} parent=1 // pred_region
      %s94 = ssub.s32 16, 16
      %95 = vsyncadd [#allocation12], %s94
      %s97 = sshll.u32 [#allocation13], 4
      %s98 = int_to_ptr.vmem [resolvable:$true] %s97
      %100 = dma.hbm_to_vmem [thread:$0]  %s6, 16, %s98, [#allocation12]
    $region29: #{residual_bigru_forward.3} parent=1 // pred_fallthru
      _
    // Predicated region
    $region30: #{residual_bigru_forward.3} parent=1 // pred_check
      _
    $region31: #{residual_bigru_forward.3} parent=1 // pred_check_branch
      %102 = sbr.rel (0) target = $region33
    $region32: #{residual_bigru_forward.3} parent=1 // pred_region
      %s104 = ssub.s32 1024, 1024
      %105 = vsyncadd [#allocation15], %s104
      %s106 = sshll.u32 [#allocation14], 4
      %s107 = int_to_ptr.vmem [resolvable:$true] %s106
      %112 = dma.hbm_to_vmem [thread:$0]  %s7, 1024, %s107, [#allocation15], 64, 64, 4
    $region33: #{residual_bigru_forward.3} parent=1 // pred_fallthru
      _
    // Predicated region
    $region34: #{residual_bigru_forward.3} parent=1 // pred_check
      _
    $region35: #{residual_bigru_forward.3} parent=1 // pred_check_branch
      %114 = sbr.rel (0) target = $region37
    $region36: #{residual_bigru_forward.3} parent=1 // pred_region
      %s116 = ssub.s32 16, 16
      %117 = vsyncadd [#allocation15], %s116
      %s119 = sshll.u32 [#allocation16], 4
      %s120 = int_to_ptr.vmem [resolvable:$true] %s119
      %122 = dma.hbm_to_vmem [thread:$0]  %s8, 16, %s120, [#allocation15]
    $region37: #{residual_bigru_forward.3} parent=1 // pred_fallthru
      _
    // Predicated region
    $region38: #{residual_bigru_forward.3} parent=1 // pred_check
      _
    $region39: #{residual_bigru_forward.3} parent=1 // pred_check_branch
      %124 = sbr.rel (0) target = $region41
    $region40: #{residual_bigru_forward.3} parent=1 // pred_region
      %s126 = ssub.s32 16, 16
      %127 = vsyncadd [#allocation18], %s126
      %s129 = sshll.u32 [#allocation17], 4
      %s130 = int_to_ptr.vmem [resolvable:$true] %s129
      %132 = dma.hbm_to_vmem [thread:$0]  %s9, 16, %s130, [#allocation18]
    $region41: #{residual_bigru_forward.3} parent=1 // pred_fallthru
      _
    // Predicated region
    $region42: #{residual_bigru_forward.3} parent=1 // pred_check
      _
    $region43: #{residual_bigru_forward.3} parent=1 // pred_check_branch
      %134 = sbr.rel (0) target = $region45
    $region44: #{residual_bigru_forward.3} parent=1 // pred_region
      %s136 = ssub.s32 16, 16
      %137 = vsyncadd [#allocation18], %s136
      %s139 = sshll.u32 [#allocation19], 4
      %s140 = int_to_ptr.vmem [resolvable:$true] %s139
      %142 = dma.hbm_to_vmem [thread:$0]  %s10, 16, %s140, [#allocation18]
    $region45: #{residual_bigru_forward.3} parent=1 // pred_fallthru
      _
    // Predicated region
    $region46: #{residual_bigru_forward.3} parent=1 // pred_check
      _
    $region47: #{residual_bigru_forward.3} parent=1 // pred_check_branch
      %144 = sbr.rel (0) target = $region49
    $region48: #{residual_bigru_forward.3} parent=1 // pred_region
      %145 = dma.done [#allocation3], 128
    $region49: #{residual_bigru_forward.3} parent=1 // pred_fallthru
      _
    // Predicated region
    $region50: #{residual_bigru_forward.3} parent=1 // pred_check
      _
    $region51: #{residual_bigru_forward.3} parent=1 // pred_check_branch
      %147 = sbr.rel (0) target = $region53
    $region52: #{residual_bigru_forward.3} parent=1 // pred_region
      %148 = dma.done [#allocation6], 128
    $region53: #{residual_bigru_forward.3} parent=1 // pred_fallthru
      _
    // Predicated region
    $region54: #{residual_bigru_forward.3} parent=1 // pred_check
      _
    $region55: #{residual_bigru_forward.3} parent=1 // pred_check_branch
      %150 = sbr.rel (0) target = $region57
    $region56: #{residual_bigru_forward.3} parent=1 // pred_region
      %151 = dma.done [#allocation6], 256
    $region57: #{residual_bigru_forward.3} parent=1 // pred_fallthru
      _
    // Predicated region
    $region58: #{residual_bigru_forward.3} parent=1 // pred_check
      _
    $region59: #{residual_bigru_forward.3} parent=1 // pred_check_branch
      %153 = sbr.rel (0) target = $region61
    $region60: #{residual_bigru_forward.3} parent=1 // pred_region
      %154 = dma.done [#allocation9], 512
    $region61: #{residual_bigru_forward.3} parent=1 // pred_fallthru
      _
    // Predicated region
    $region62: #{residual_bigru_forward.3} parent=1 // pred_check
      _
    $region63: #{residual_bigru_forward.3} parent=1 // pred_check_branch
      %156 = sbr.rel (0) target = $region65
    $region64: #{residual_bigru_forward.3} parent=1 // pred_region
      %157 = dma.done [#allocation9], 16
    $region65: #{residual_bigru_forward.3} parent=1 // pred_fallthru
      _
    // Predicated region
    $region66: #{residual_bigru_forward.3} parent=1 // pred_check
      _
    $region67: #{residual_bigru_forward.3} parent=1 // pred_check_branch
      %159 = sbr.rel (0) target = $region69
    $region68: #{residual_bigru_forward.3} parent=1 // pred_region
      %160 = dma.done [#allocation12], 16
    $region69: #{residual_bigru_forward.3} parent=1 // pred_fallthru
      _
    // Predicated region
    $region70: #{residual_bigru_forward.3} parent=1 // pred_check
      _
    $region71: #{residual_bigru_forward.3} parent=1 // pred_check_branch
      %162 = sbr.rel (0) target = $region73
    $region72: #{residual_bigru_forward.3} parent=1 // pred_region
      %163 = dma.done [#allocation12], 16
    $region73: #{residual_bigru_forward.3} parent=1 // pred_fallthru
      _
    // Predicated region
    $region74: #{residual_bigru_forward.3} parent=1 // pred_check
      _
    $region75: #{residual_bigru_forward.3} parent=1 // pred_check_branch
      %165 = sbr.rel (0) target = $region77
    $region76: #{residual_bigru_forward.3} parent=1 // pred_region
      %166 = dma.done [#allocation15], 1024
    $region77: #{residual_bigru_forward.3} parent=1 // pred_fallthru
      _
    // Predicated region
    $region78: #{residual_bigru_forward.3} parent=1 // pred_check
      _
    $region79: #{residual_bigru_forward.3} parent=1 // pred_check_branch
      %168 = sbr.rel (0) target = $region81
    $region80: #{residual_bigru_forward.3} parent=1 // pred_region
      %169 = dma.done [#allocation15], 16
    $region81: #{residual_bigru_forward.3} parent=1 // pred_fallthru
      _
    // Predicated region
    $region82: #{residual_bigru_forward.3} parent=1 // pred_check
      _
    $region83: #{residual_bigru_forward.3} parent=1 // pred_check_branch
      %171 = sbr.rel (0) target = $region85
    $region84: #{residual_bigru_forward.3} parent=1 // pred_region
      %172 = dma.done [#allocation18], 16
    $region85: #{residual_bigru_forward.3} parent=1 // pred_fallthru
      _
    // Predicated region
    $region86: #{residual_bigru_forward.3} parent=1 // pred_check
      _
    $region87: #{residual_bigru_forward.3} parent=1 // pred_check_branch
      %174 = sbr.rel (0) target = $region89
    $region88: #{residual_bigru_forward.3} parent=1 // pred_region
      %175 = dma.done [#allocation18], 16
    $region89: #{residual_bigru_forward.3} parent=1 // pred_fallthru
      _
    %v177 = vld [vmem:[#allocation2] sm:$0x1]
    %v178 = vld [vmem:[#allocation2 + $0x1] sm:$0x1]
    %v179 = vld [vmem:[#allocation2 + $0x2] sm:$0x1]
    %v180 = vld [vmem:[#allocation2 + $0x3] sm:$0x1]
    %v181 = vld [vmem:[#allocation2 + $0x4] sm:$0x1]
    %v182 = vld [vmem:[#allocation2 + $0x5] sm:$0x1]
    %v183 = vld [vmem:[#allocation2 + $0x6] sm:$0x1]
    %v184 = vld [vmem:[#allocation2 + $0x7] sm:$0x1]
    %v185 = vld [vmem:[#allocation5] sm:$0x1]
    %v186 = vld [vmem:[#allocation5 + $0x1] sm:$0x1]
    %v187 = vld [vmem:[#allocation5 + $0x2] sm:$0x1]
    %v188 = vld [vmem:[#allocation5 + $0x3] sm:$0x1]
    %v189 = vld [vmem:[#allocation5 + $0x4] sm:$0x1]
    %v190 = vld [vmem:[#allocation5 + $0x5] sm:$0x1]
    %v191 = vld [vmem:[#allocation5 + $0x6] sm:$0x1]
    %v192 = vld [vmem:[#allocation5 + $0x7] sm:$0x1]
    %v202 = vunpack.c.l.s4 1966171168
    %v203 = vunpack.c.0.s8 %v202
    %v204 = vlaneseq
    %v205 = vshrl.u32 %v204, 7
    %v206 = vsub.s32 %v203, %v205
    %v207 = vrot.slane %v185, %v206
    %v209 = vunpack.c.l.s4 1966171168
    %v210 = vunpack.c.0.s8 %v209
    %v211 = vlaneseq
    %v212 = vshrl.u32 %v211, 7
    %v213 = vsub.s32 %v210, %v212
    %v214 = vrot.slane %v207, %v213
    %v216 = vunpack.c.l.s4 1966171168
    %v217 = vunpack.c.0.s8 %v216
    %v218 = vlaneseq
    %v219 = vshrl.u32 %v218, 7
    %v220 = vsub.s32 %v217, %v219
    %v221 = vrot.slane %v186, %v220
    %v223 = vunpack.c.l.s4 1966171168
    %v224 = vunpack.c.0.s8 %v223
    %v225 = vlaneseq
    %v226 = vshrl.u32 %v225, 7
    %v227 = vsub.s32 %v224, %v226
    %v228 = vrot.slane %v221, %v227
    %v230 = vunpack.c.l.s4 1966171168
    %v231 = vunpack.c.0.s8 %v230
    %v232 = vlaneseq
    %v233 = vshrl.u32 %v232, 7
    %v234 = vsub.s32 %v231, %v233
    %v235 = vrot.slane %v187, %v234
    %v237 = vunpack.c.l.s4 1966171168
    %v238 = vunpack.c.0.s8 %v237
    %v239 = vlaneseq
    %v240 = vshrl.u32 %v239, 7
    %v241 = vsub.s32 %v238, %v240
    %v242 = vrot.slane %v235, %v241
    %v244 = vunpack.c.l.s4 1966171168
    %v245 = vunpack.c.0.s8 %v244
    %v246 = vlaneseq
    %v247 = vshrl.u32 %v246, 7
    %v248 = vsub.s32 %v245, %v247
    %v249 = vrot.slane %v188, %v248
    %v251 = vunpack.c.l.s4 1966171168
    %v252 = vunpack.c.0.s8 %v251
    %v253 = vlaneseq
    %v254 = vshrl.u32 %v253, 7
    %v255 = vsub.s32 %v252, %v254
    %v256 = vrot.slane %v249, %v255
    %v258 = vunpack.c.l.s4 1966171168
    %v259 = vunpack.c.0.s8 %v258
    %v260 = vlaneseq
    %v261 = vshrl.u32 %v260, 7
    %v262 = vsub.s32 %v259, %v261
    %v263 = vrot.slane %v189, %v262
    %v265 = vunpack.c.l.s4 1966171168
    %v266 = vunpack.c.0.s8 %v265
    %v267 = vlaneseq
    %v268 = vshrl.u32 %v267, 7
    %v269 = vsub.s32 %v266, %v268
    %v270 = vrot.slane %v263, %v269
    %v272 = vunpack.c.l.s4 1966171168
    %v273 = vunpack.c.0.s8 %v272
    %v274 = vlaneseq
    %v275 = vshrl.u32 %v274, 7
    %v276 = vsub.s32 %v273, %v275
    %v277 = vrot.slane %v190, %v276
    %v279 = vunpack.c.l.s4 1966171168
    %v280 = vunpack.c.0.s8 %v279
    %v281 = vlaneseq
    %v282 = vshrl.u32 %v281, 7
    %v283 = vsub.s32 %v280, %v282
    %v284 = vrot.slane %v277, %v283
    %v286 = vunpack.c.l.s4 1966171168
    %v287 = vunpack.c.0.s8 %v286
    %v288 = vlaneseq
    %v289 = vshrl.u32 %v288, 7
    %v290 = vsub.s32 %v287, %v289
    %v291 = vrot.slane %v191, %v290
    %v293 = vunpack.c.l.s4 1966171168
    %v294 = vunpack.c.0.s8 %v293
    %v295 = vlaneseq
    %v296 = vshrl.u32 %v295, 7
    %v297 = vsub.s32 %v294, %v296
    %v298 = vrot.slane %v291, %v297
    %v300 = vunpack.c.l.s4 1966171168
    %v301 = vunpack.c.0.s8 %v300
    %v302 = vlaneseq
    %v303 = vshrl.u32 %v302, 7
    %v304 = vsub.s32 %v301, %v303
    %v305 = vrot.slane %v192, %v304
    %v307 = vunpack.c.l.s4 1966171168
    %v308 = vunpack.c.0.s8 %v307
    %v309 = vlaneseq
    %v310 = vshrl.u32 %v309, 7
    %v311 = vsub.s32 %v308, %v310
    %v312 = vrot.slane %v305, %v311
    %313 = vrot.lane.b32.xlu0 %v214, 32
    %v314 = vpop.permute.xlu0 %313
    %315 = vrot.lane.b32.xlu0 %v228, 32
    %v316 = vpop.permute.xlu0 %315
    %317 = vrot.lane.b32.xlu0 %v242, 32
    %v318 = vpop.permute.xlu0 %317
    %319 = vrot.lane.b32.xlu0 %v256, 32
    %v320 = vpop.permute.xlu0 %319
    %321 = vrot.lane.b32.xlu0 %v270, 32
    %v322 = vpop.permute.xlu0 %321
    %323 = vrot.lane.b32.xlu0 %v284, 32
    %v324 = vpop.permute.xlu0 %323
    %325 = vrot.lane.b32.xlu0 %v298, 32
    %v326 = vpop.permute.xlu0 %325
    %327 = vrot.lane.b32.xlu0 %v312, 32
    %v328 = vpop.permute.xlu0 %327
    %vm329 = vcmask 261120
    %v332 = vsel %vm329, %v177, %v314
    %v335 = vsel %vm329, %v178, %v316
    %v338 = vsel %vm329, %v179, %v318
    %v341 = vsel %vm329, %v180, %v320
    %v344 = vsel %vm329, %v181, %v322
    %v347 = vsel %vm329, %v182, %v324
    %v350 = vsel %vm329, %v183, %v326
    %v353 = vsel %vm329, %v184, %v328
    %v354 = vld [vmem:[#allocation8] sm:$0xf]
    %v355 = vld [vmem:[#allocation8 + $0x4] sm:$0xf]
    %v356 = vld [vmem:[#allocation8 + $0x8] sm:$0xf]
    %v357 = vld [vmem:[#allocation8 + $0xc] sm:$0xf]
    %v358 = vld [vmem:[#allocation8 + $0x10] sm:$0xf]
    %v359 = vld [vmem:[#allocation8 + $0x14] sm:$0xf]
    %v360 = vld [vmem:[#allocation8 + $0x18] sm:$0xf]
    %v361 = vld [vmem:[#allocation8 + $0x1c] sm:$0xf]
    %v362 = vld [vmem:[#allocation10] sm:$0x1]
    %v364 = vlaneseq
    %v365 = vshrl.u32 %v364, 7
    %v366 = vsub.s32 0, %v365
    %v367 = vrot.slane %v362, %v366
    %v377 = vcombine.low %v332, %v335
    %v378 = vcombine.low %v338, %v341
    %v379 = vcombine.low %v344, %v347
    %v380 = vcombine.low %v350, %v353
    %v382 = vunpack.c.l.s4 1966171168
    %v383 = vunpack.c.0.s8 %v382
    %v384 = vlaneseq
    %v385 = vshrl.u32 %v384, 7
    %v386 = vsub.s32 %v383, %v385
    %v387 = vrot.slane %v377, %v386
    %v389 = vunpack.c.l.s4 1966171168
    %v390 = vunpack.c.0.s8 %v389
    %v391 = vlaneseq
    %v392 = vshrl.u32 %v391, 7
    %v393 = vsub.s32 %v390, %v392
    %v394 = vrot.slane %v378, %v393
    %v396 = vunpack.c.l.s4 1966171168
    %v397 = vunpack.c.0.s8 %v396
    %v398 = vlaneseq
    %v399 = vshrl.u32 %v398, 7
    %v400 = vsub.s32 %v397, %v399
    %v401 = vrot.slane %v379, %v400
    %v403 = vunpack.c.l.s4 1966171168
    %v404 = vunpack.c.0.s8 %v403
    %v405 = vlaneseq
    %v406 = vshrl.u32 %v405, 7
    %v407 = vsub.s32 %v404, %v406
    %v408 = vrot.slane %v380, %v407
    %v409 = vcombine.low %v387, %v394
    %v410 = vcombine.low %v401, %v408
    %v412 = vunpack.c.l.s4 1966171168
    %v413 = vunpack.c.0.s8 %v412
    %v414 = vlaneseq
    %v415 = vshrl.u32 %v414, 7
    %v416 = vsub.s32 %v413, %v415
    %v417 = vrot.slane %v409, %v416
    %v419 = vunpack.c.l.s4 1966171168
    %v420 = vunpack.c.0.s8 %v419
    %v421 = vlaneseq
    %v422 = vshrl.u32 %v421, 7
    %v423 = vsub.s32 %v420, %v422
    %v424 = vrot.slane %v410, %v423
    %v425 = vcombine.low %v417, %v424
    %v434 = vunpack.c.l.b16 %v354
    %v435 = vunpack.c.l.b16 %v355
    %v436 = vunpack.c.l.b16 %v356
    %v437 = vunpack.c.l.b16 %v357
    %v438 = vunpack.c.l.b16 %v358
    %v439 = vunpack.c.l.b16 %v359
    %v440 = vunpack.c.l.b16 %v360
    %v441 = vunpack.c.l.b16 %v361
    %v442 = vpack.c.b16 %v435, %v434
    %v443 = vpack.c.b16 %v437, %v436
    %v444 = vpack.c.b16 %v439, %v438
    %v445 = vpack.c.b16 %v441, %v440
    %vm450 = vcmask 523264
    %v452 = vsel %vm450, %v425, 0
    %454 = vmatprep.subr.bf16.mxu0 0
    %455 = vmatpush1.bf16.msra.mxu0 %v442
    %456 = vmatprep.subr.bf16.mxu0 0
    %457 = vmatpush1.bf16.msra.mxu0 %v443
    %458 = vmatprep.subr.bf16.mxu0 0
    %459 = vmatpush1.bf16.msra.mxu0 %v444
    %460 = vmatprep.subr.bf16.mxu0 0
    %461 = vmatpush1.bf16.msra.mxu0 %v445
    %462 = vmatprep.subr.bf16.mxu0 0
    %463 = vmatpush1.bf16.msra.mxu0 0
    %464 = vmatprep.subr.bf16.mxu0 0
    %465 = vmatpush1.bf16.msra.mxu0 0
    %466 = vmatprep.subr.bf16.mxu0 0
    %467 = vmatpush1.bf16.msra.mxu0 0
    %468 = vmatprep.subr.bf16.mxu0 0
    %469 = vmatpush1.bf16.msra.mxu0 0
    %470 = vmatprep.subr.bf16.mxu0 0
    %471 = vmatpush1.bf16.msra.mxu0 0
    %472 = vmatprep.subr.bf16.mxu0 0
    %473 = vmatpush1.bf16.msra.mxu0 0
    %474 = vmatprep.subr.bf16.mxu0 0
    %475 = vmatpush1.bf16.msra.mxu0 0
    %476 = vmatprep.subr.bf16.mxu0 0
    %477 = vmatpush1.bf16.msra.mxu0 0
    %478 = vmatprep.subr.bf16.mxu0 0
    %479 = vmatpush1.bf16.msra.mxu0 0
    %480 = vmatprep.subr.bf16.mxu0 0
    %481 = vmatpush1.bf16.msra.mxu0 0
    %482 = vmatprep.subr.bf16.mxu0 0
    %483 = vmatpush1.bf16.msra.mxu0 0
    %484 = vmatprep.subr.bf16.mxu0 0
    %485 = vmatpush1.bf16.msra.mxu0 0
    %486 = vmatprep.mubr.bf16.mxu0 0
    %487 = vmatmul.mubr.bf16.gmra.mrb[0].mxu0 %v452
    %v488 = vpop.f32.mrb[0].mxu0
    %v489 = vadd.f32 %v367, %v488
    %v490 = vpop.f32.mrb[0].mxu0
    %v491 = vpop.f32.mrb[0].mxu0
    %v492 = vadd.f32 %v367, %v491
    %v493 = vpop.f32.mrb[0].mxu0
    %494 = vdwg.mxu0
    %v495 = vld [vmem:[#allocation11] sm:$0x1]
    %v496 = vld [vmem:[#allocation13] sm:$0x1]
    %497 = vadd.xlane.f32.xlu0 %v489
    %v498 = vpop.xlane.xlu0 %497
    %499 = vadd.xlane.f32.xlu0 %v492
    %v500 = vpop.xlane.xlu0 %499
    %v501 = vrcp.pop 128.0
    %v502 = vmul.f32 %v498, %v501
    %v503 = vmul.f32 %v500, %v501
    %v504 = vsub.f32 %v489, %v502
    %v505 = vsub.f32 %v492, %v503
    %v506 = vmul.f32 %v504, %v504
    %v507 = vmul.f32 %v505, %v505
    %508 = vadd.xlane.f32.xlu0 %v506
    %v509 = vpop.xlane.xlu0 %508
    %510 = vadd.xlane.f32.xlu0 %v507
    %v511 = vpop.xlane.xlu0 %510
    %v512 = vmul.f32 %v509, %v501
    %v513 = vmul.f32 %v511, %v501
    %v514 = vadd.f32 %v512, 1e-05
    %v515 = vadd.f32 %v513, 1e-05
    %v516 = vrsqrt.pop %v514
    %v517 = vrsqrt.pop %v515
    %v518 = vmul.f32 %v504, %v516
    %v519 = vmul.f32 %v505, %v517
    %v521 = vlaneseq
    %v522 = vshrl.u32 %v521, 7
    %v523 = vsub.s32 0, %v522
    %v524 = vrot.slane %v495, %v523
    %v526 = vmul.f32 %v518, %v524
    %v527 = vmul.f32 %v519, %v524
    %v529 = vlaneseq
    %v530 = vshrl.u32 %v529, 7
    %v531 = vsub.s32 0, %v530
    %v532 = vrot.slane %v496, %v531
    %v534 = vadd.f32 %v526, %v532
    %v535 = vadd.f32 %v527, %v532
    %v536 = vmax.f32 %v534, 0.0
    %v537 = vmax.f32 %v535, 0.0
    %v538 = vpack.c.bf16 %v537, %v536
    %v539 = vld [vmem:[#allocation14] sm:$0xf]
    %v540 = vld [vmem:[#allocation14 + $0x4] sm:$0xf]
    %v541 = vld [vmem:[#allocation14 + $0x8] sm:$0xf]
    %v542 = vld [vmem:[#allocation14 + $0xc] sm:$0xf]
    %v543 = vld [vmem:[#allocation14 + $0x10] sm:$0xf]
    %v544 = vld [vmem:[#allocation14 + $0x14] sm:$0xf]
    %v545 = vld [vmem:[#allocation14 + $0x18] sm:$0xf]
    %v546 = vld [vmem:[#allocation14 + $0x1c] sm:$0xf]
    %v547 = vld [vmem:[#allocation14 + $0x20] sm:$0xf]
    %v548 = vld [vmem:[#allocation14 + $0x24] sm:$0xf]
    %v549 = vld [vmem:[#allocation14 + $0x28] sm:$0xf]
    %v550 = vld [vmem:[#allocation14 + $0x2c] sm:$0xf]
    %v551 = vld [vmem:[#allocation14 + $0x30] sm:$0xf]
    %v552 = vld [vmem:[#allocation14 + $0x34] sm:$0xf]
    %v553 = vld [vmem:[#allocation14 + $0x38] sm:$0xf]
    %v554 = vld [vmem:[#allocation14 + $0x3c] sm:$0xf]
    %v555 = vld [vmem:[#allocation16] sm:$0x1]
    %v557 = vlaneseq
    %v558 = vshrl.u32 %v557, 7
    %v559 = vsub.s32 0, %v558
    %v560 = vrot.slane %v555, %v559
    %v578 = vunpack.c.l.b16 %v539
    %v579 = vunpack.c.l.b16 %v540
    %v580 = vunpack.c.l.b16 %v541
    %v581 = vunpack.c.l.b16 %v542
    %v582 = vunpack.c.l.b16 %v543
    %v583 = vunpack.c.l.b16 %v544
    %v584 = vunpack.c.l.b16 %v545
    %v585 = vunpack.c.l.b16 %v546
    %v586 = vunpack.c.l.b16 %v547
    %v587 = vunpack.c.l.b16 %v548
    %v588 = vunpack.c.l.b16 %v549
    %v589 = vunpack.c.l.b16 %v550
    %v590 = vunpack.c.l.b16 %v551
    %v591 = vunpack.c.l.b16 %v552
    %v592 = vunpack.c.l.b16 %v553
    %v593 = vunpack.c.l.b16 %v554
    %v594 = vpack.c.b16 %v579, %v578
    %v595 = vpack.c.b16 %v581, %v580
    %v596 = vpack.c.b16 %v583, %v582
    %v597 = vpack.c.b16 %v585, %v584
    %v598 = vpack.c.b16 %v587, %v586
    %v599 = vpack.c.b16 %v589, %v588
    %v600 = vpack.c.b16 %v591, %v590
    %v601 = vpack.c.b16 %v593, %v592
    %610 = vmatprep.subr.bf16.mxu0 0
    %611 = vmatpush1.bf16.msra.mxu0 %v594
    %612 = vmatprep.subr.bf16.mxu0 0
    %613 = vmatpush1.bf16.msra.mxu0 %v595
    %614 = vmatprep.subr.bf16.mxu0 0
    %615 = vmatpush1.bf16.msra.mxu0 %v596
    %616 = vmatprep.subr.bf16.mxu0 0
    %617 = vmatpush1.bf16.msra.mxu0 %v597
    %618 = vmatprep.subr.bf16.mxu0 0
    %619 = vmatpush1.bf16.msra.mxu0 %v598
    %620 = vmatprep.subr.bf16.mxu0 0
    %621 = vmatpush1.bf16.msra.mxu0 %v599
    %622 = vmatprep.subr.bf16.mxu0 0
    %623 = vmatpush1.bf16.msra.mxu0 %v600
    %624 = vmatprep.subr.bf16.mxu0 0
    %625 = vmatpush1.bf16.msra.mxu0 %v601
    %626 = vmatprep.subr.bf16.mxu0 0
    %627 = vmatpush1.bf16.msra.mxu0 0
    %628 = vmatprep.subr.bf16.mxu0 0
    %629 = vmatpush1.bf16.msra.mxu0 0
    %630 = vmatprep.subr.bf16.mxu0 0
    %631 = vmatpush1.bf16.msra.mxu0 0
    %632 = vmatprep.subr.bf16.mxu0 0
    %633 = vmatpush1.bf16.msra.mxu0 0
    %634 = vmatprep.subr.bf16.mxu0 0
    %635 = vmatpush1.bf16.msra.mxu0 0
    %636 = vmatprep.subr.bf16.mxu0 0
    %637 = vmatpush1.bf16.msra.mxu0 0
    %638 = vmatprep.subr.bf16.mxu0 0
    %639 = vmatpush1.bf16.msra.mxu0 0
    %640 = vmatprep.subr.bf16.mxu0 0
    %641 = vmatpush1.bf16.msra.mxu0 0
    %642 = vmatprep.mubr.bf16.mxu0 0
    %643 = vmatmul.mubr.bf16.gmra.mrb[0].mxu0 %v538
    %v644 = vpop.f32.mrb[0].mxu0
    %v645 = vadd.f32 %v560, %v644
    %v646 = vpop.f32.mrb[0].mxu0
    %v647 = vpop.f32.mrb[0].mxu0
    %v648 = vadd.f32 %v560, %v647
    %v649 = vpop.f32.mrb[0].mxu0
    %650 = vdwg.mxu0
    %v651 = vld [vmem:[#allocation17] sm:$0x1]
    %v652 = vld [vmem:[#allocation19] sm:$0x1]
    %v653 = vsel %vm329, %v645, 0.0
    %654 = vadd.xlane.f32.xlu0 %v653
    %v655 = vpop.xlane.xlu0 %654
    %v656 = vsel %vm329, %v648, 0.0
    %657 = vadd.xlane.f32.xlu0 %v656
    %v658 = vpop.xlane.xlu0 %657
    %v659 = vrcp.pop 32.0
    %v660 = vmul.f32 %v655, %v659
    %v661 = vmul.f32 %v658, %v659
    %v662 = vsub.f32 %v645, %v660
    %v663 = vsub.f32 %v648, %v661
    %v664 = vmul.f32 %v662, %v662
    %v665 = vmul.f32 %v663, %v663
    %v666 = vsel %vm329, %v664, 0.0
    %667 = vadd.xlane.f32.xlu0 %v666
    %v668 = vpop.xlane.xlu0 %667
    %v669 = vsel %vm329, %v665, 0.0
    %670 = vadd.xlane.f32.xlu0 %v669
    %v671 = vpop.xlane.xlu0 %670
    %v672 = vmul.f32 %v668, %v659
    %v673 = vmul.f32 %v671, %v659
    %v674 = vadd.f32 %v672, 1e-05
    %v675 = vadd.f32 %v673, 1e-05
    %v676 = vrsqrt.pop %v674
    %v677 = vrsqrt.pop %v675
    %v678 = vmul.f32 %v662, %v676
    %v679 = vmul.f32 %v663, %v677
    %v681 = vlaneseq
    %v682 = vshrl.u32 %v681, 7
    %v683 = vsub.s32 0, %v682
    %v684 = vrot.slane %v651, %v683
    %v686 = vmul.f32 %v678, %v684
    %v687 = vmul.f32 %v679, %v684
    %v689 = vlaneseq
    %v690 = vshrl.u32 %v689, 7
    %v691 = vsub.s32 0, %v690
    %v692 = vrot.slane %v652, %v691
    %v694 = vadd.f32 %v686, %v692
    %v695 = vadd.f32 %v687, %v692
    %v696 = vmax.f32 %v694, 0.0
    %v697 = vmax.f32 %v695, 0.0
    %v700 = vcombine.high %v696, %v696
    %v702 = vunpack.c.l.s4 1983009808
    %v703 = vunpack.c.0.s8 %v702
    %v704 = vlaneseq
    %v705 = vshrl.u32 %v704, 7
    %v706 = vsub.s32 %v703, %v705
    %v707 = vrot.slane %v696, %v706
    %v709 = vunpack.c.l.s4 1983009808
    %v710 = vunpack.c.0.s8 %v709
    %v711 = vlaneseq
    %v712 = vshrl.u32 %v711, 7
    %v713 = vsub.s32 %v710, %v712
    %v714 = vrot.slane %v700, %v713
    %v715 = vcombine.high %v707, %v707
    %v716 = vcombine.high %v714, %v714
    %v717 = vcombine.high %v697, %v697
    %v719 = vunpack.c.l.s4 1983009808
    %v720 = vunpack.c.0.s8 %v719
    %v721 = vlaneseq
    %v722 = vshrl.u32 %v721, 7
    %v723 = vsub.s32 %v720, %v722
    %v724 = vrot.slane %v697, %v723
    %v726 = vunpack.c.l.s4 1983009808
    %v727 = vunpack.c.0.s8 %v726
    %v728 = vlaneseq
    %v729 = vshrl.u32 %v728, 7
    %v730 = vsub.s32 %v727, %v729
    %v731 = vrot.slane %v717, %v730
    %v732 = vcombine.high %v724, %v724
    %v733 = vcombine.high %v731, %v731
    %v742 = vld [vmem:[#allocation7] sm:$0x3]
    %v743 = vld [vmem:[#allocation7 + $0x2] sm:$0x3]
    %v744 = vld [vmem:[#allocation7 + $0x4] sm:$0x3]
    %v745 = vld [vmem:[#allocation7 + $0x6] sm:$0x3]
    %v746 = vld [vmem:[#allocation7 + $0x8] sm:$0x3]
    %v747 = vld [vmem:[#allocation7 + $0xa] sm:$0x3]
    %v748 = vld [vmem:[#allocation7 + $0xc] sm:$0x3]
    %v749 = vld [vmem:[#allocation7 + $0xe] sm:$0x3]
    %v750 = vadd.f32 %v707, %v742
    %v751 = vadd.f32 %v715, %v743
    %v752 = vadd.f32 %v714, %v744
    %v753 = vadd.f32 %v716, %v745
    %v754 = vadd.f32 %v724, %v746
    %v755 = vadd.f32 %v732, %v747
    %v756 = vadd.f32 %v731, %v748
    %v757 = vadd.f32 %v733, %v749
    %vm758 = vcmask 254976
    %759 = vst.msk [vmem:[#allocation20] sm:$0x3] %vm758, %v750
    %760 = vst.msk [vmem:[#allocation20 + $0x2] sm:$0x3] %vm758, %v751
    %761 = vst.msk [vmem:[#allocation20 + $0x4] sm:$0x3] %vm758, %v752
    %762 = vst.msk [vmem:[#allocation20 + $0x6] sm:$0x3] %vm758, %v753
    %763 = vst.msk [vmem:[#allocation20 + $0x8] sm:$0x3] %vm758, %v754
    %764 = vst.msk [vmem:[#allocation20 + $0xa] sm:$0x3] %vm758, %v755
    %765 = vst.msk [vmem:[#allocation20 + $0xc] sm:$0x3] %vm758, %v756
    %766 = vst.msk [vmem:[#allocation20 + $0xe] sm:$0x3] %vm758, %v757
    // Predicated region
    $region90: #{residual_bigru_forward.3} parent=1 // pred_check
      _
    $region91: #{residual_bigru_forward.3} parent=1 // pred_check_branch
      %768 = sbr.rel (0) target = $region93
    $region92: #{residual_bigru_forward.3} parent=1 // pred_region
      %s770 = ssub.s32 256, 256
      %771 = vsyncadd [#allocation4], %s770
      %s772 = sshll.u32 [#allocation20], 4
      %s773 = int_to_ptr.vmem [resolvable:$true] %s772
      %778 = dma.vmem_to_hbm [thread:$0]  %s773, 256, %s11, [#allocation4], 32, 32, 2
    $region93: #{residual_bigru_forward.3} parent=1 // pred_fallthru
      _
    // Predicated region
    $region94: #{residual_bigru_forward.3} parent=1 // pred_check
      _
    $region95: #{residual_bigru_forward.3} parent=1 // pred_check_branch
      %780 = sbr.rel (0) target = $region97
    $region96: #{residual_bigru_forward.3} parent=1 // pred_region
      %781 = dma.done [#allocation4], 256
    $region97: #{residual_bigru_forward.3} parent=1 // pred_fallthru
      _
    %782 = vsyncpa [#allocation3], 1
    %783 = vsyncpa [#allocation6], 1
    %784 = vsyncpa [#allocation9], 1
    %785 = vsyncpa [#allocation12], 1
    %786 = vsyncpa [#allocation15], 1
    %787 = vsyncpa [#allocation18], 1
    %788 = vsyncpa [#allocation4], 1

// kernel: residual_bigru_forward.2
$region0: #{residual_bigru_forward.2}
  #allocation0 [shape = 'u32[]', space=smem, size = 0x4, offset = 0x4, fixed_abs, tag = 'smem constant byte address 0x4 - core index']
  #allocation1 [shape = 'u32[144,128]{1,0:T(1,128)}', space=vmem, size = 0x12000, scoped, tag = 'internal scratch']
  #allocation2 [shape = 'f32[2,64]{1,0:T(2,128)}', space=vmem, size = 0x400, scoped, tag = 'scratch operand']
  %s0 = inlined_call_operand.hbm [shape: bf16[8,2,96], index: 0, kind: input, shape index: {}]
  %s1 = inlined_call_operand.hbm [shape: bf16[8,2,96], index: 1, kind: input, shape index: {}]
  %s2 = inlined_call_operand.hbm [shape: bf16[64,192], index: 2, kind: input, shape index: {}]
  %s3 = inlined_call_operand.hbm [shape: f32[1,192], index: 3, kind: input, shape index: {}]
  %s4 = inlined_call_operand.hbm [shape: bf16[8,2,32], index: 4, kind: output, shape index: {0}]
  %s5 = inlined_call_operand.hbm [shape: bf16[8,2,32], index: 5, kind: output, shape index: {1}]
  %6 = xla_tuple %s4, %s5
  %s7 = sld [smem:[#allocation0]]
  $region54: #{residual_bigru_forward.2} parent=0
    _
  %s9 = ssub.s32 1, %s7
  %s10 = scalar_select 0, %s9, %s7
  $region1: #{residual_bigru_forward.2} parent=0
    #allocation3 [shape = 'u8[4096]{0}', space=vmem, size = 0x1000, scoped, tag = 'input window, operand 0, single buffered']
    #allocation4 [shape = 's32[1]{0}', space=sflag, size = 0x4, scoped, tag = 'scoped memory for residual_bigru_forward.2']
    #allocation5 [shape = 's32[1]{0}', space=sflag, size = 0x4, scoped, tag = 'scoped memory for residual_bigru_forward.2']
    #allocation6 [shape = 'u8[4096]{0}', space=vmem, size = 0x1000, scoped, tag = 'input window, operand 1, single buffered']
    #allocation7 [shape = 's32[1]{0}', space=sflag, size = 0x4, scoped, tag = 'scoped memory for residual_bigru_forward.2']
    #allocation8 [shape = 'u8[32768]{0}', space=vmem, size = 0x8000, scoped, tag = 'input window, operand 2, single buffered']
    #allocation9 [shape = 'u8[1024]{0}', space=vmem, size = 0x400, scoped, tag = 'input window, operand 3, single buffered']
    #allocation10 [shape = 's32[1]{0}', space=sflag, size = 0x4, scoped, tag = 'scoped memory for residual_bigru_forward.2']
    #allocation11 [shape = 'u8[4096]{0}', space=vmem, size = 0x1000, scoped, tag = 'output window, operand 0, single buffered']
    #allocation12 [shape = 'u8[4096]{0}', space=vmem, size = 0x1000, scoped, tag = 'output window, operand 1, single buffered']
    #allocation13 [shape = 's32[1]{0}', space=sflag, size = 0x4, scoped, tag = 'scoped memory for residual_bigru_forward.2']
    %11 = vsyncpa [#allocation4], 0
    %12 = vsyncpa [#allocation7], 0
    %13 = vsyncpa [#allocation10], 0
    %14 = vsyncpa [#allocation5], 0
    %15 = vsyncpa [#allocation13], 0
    // Predicated region
    $region2: #{residual_bigru_forward.2} parent=1 // pred_check
      _
    $region3: #{residual_bigru_forward.2} parent=1 // pred_check_branch
      %17 = sbr.rel (0) target = $region5
    $region4: #{residual_bigru_forward.2} parent=1 // pred_region
      %s19 = ssub.s32 128, 128
      %20 = vsyncadd [#allocation4], %s19
      %s21 = sshll.u32 [#allocation3], 4
      %s22 = int_to_ptr.vmem [resolvable:$true] %s21
      %27 = dma.hbm_to_vmem [thread:$0]  %s0, 128, %s22, [#allocation4], 16, 16, 1
    $region5: #{residual_bigru_forward.2} parent=1 // pred_fallthru
      _
    // Predicated region
    $region6: #{residual_bigru_forward.2} parent=1 // pred_check
      _
    $region7: #{residual_bigru_forward.2} parent=1 // pred_check_branch
      %29 = sbr.rel (0) target = $region9
    $region8: #{residual_bigru_forward.2} parent=1 // pred_region
      %s30 = ssub.s32 0, 0
      %s31 = smul.u32 8, %s30
      %s33 = ssub.s32 128, 128
      %34 = vsyncadd [#allocation7], %s33
      %s35 = smul.addr %s31, 16
      %s36 = scalar_lea.hbm %s1, %s35
      %s37 = sshll.u32 [#allocation6], 4
      %s38 = int_to_ptr.vmem [resolvable:$true] %s37
      %43 = dma.hbm_to_vmem [thread:$0]  %s36, 128, %s38, [#allocation7], 16, 16, 1
    $region9: #{residual_bigru_forward.2} parent=1 // pred_fallthru
      _
    // Predicated region
    $region10: #{residual_bigru_forward.2} parent=1 // pred_check
      _
    $region11: #{residual_bigru_forward.2} parent=1 // pred_check_branch
      %45 = sbr.rel (0) target = $region13
    $region12: #{residual_bigru_forward.2} parent=1 // pred_region
      %s47 = ssub.s32 1024, 1024
      %48 = vsyncadd [#allocation7], %s47
      %s49 = sshll.u32 [#allocation8], 4
      %s50 = int_to_ptr.vmem [resolvable:$true] %s49
      %55 = dma.hbm_to_vmem [thread:$0]  %s2, 1024, %s50, [#allocation7], 128, 128, 8
    $region13: #{residual_bigru_forward.2} parent=1 // pred_fallthru
      _
    // Predicated region
    $region14: #{residual_bigru_forward.2} parent=1 // pred_check
      _
    $region15: #{residual_bigru_forward.2} parent=1 // pred_check_branch
      %57 = sbr.rel (0) target = $region17
    $region16: #{residual_bigru_forward.2} parent=1 // pred_region
      %s59 = ssub.s32 32, 32
      %60 = vsyncadd [#allocation10], %s59
      %s62 = sshll.u32 [#allocation9], 4
      %s63 = int_to_ptr.vmem [resolvable:$true] %s62
      %65 = dma.hbm_to_vmem [thread:$0]  %s3, 32, %s63, [#allocation10]
    $region17: #{residual_bigru_forward.2} parent=1 // pred_fallthru
      _
    // Predicated region
    $region18: #{residual_bigru_forward.2} parent=1 // pred_check
      _
    $region19: #{residual_bigru_forward.2} parent=1 // pred_check_branch
      %67 = sbr.rel (0) target = $region21
    $region20: #{residual_bigru_forward.2} parent=1 // pred_region
      %68 = dma.done [#allocation4], 128
    $region21: #{residual_bigru_forward.2} parent=1 // pred_fallthru
      _
    // Predicated region
    $region22: #{residual_bigru_forward.2} parent=1 // pred_check
      _
    $region23: #{residual_bigru_forward.2} parent=1 // pred_check_branch
      %70 = sbr.rel (0) target = $region25
    $region24: #{residual_bigru_forward.2} parent=1 // pred_region
      %71 = dma.done [#allocation7], 128
    $region25: #{residual_bigru_forward.2} parent=1 // pred_fallthru
      _
    // Predicated region
    $region26: #{residual_bigru_forward.2} parent=1 // pred_check
      _
    $region27: #{residual_bigru_forward.2} parent=1 // pred_check_branch
      %73 = sbr.rel (0) target = $region29
    $region28: #{residual_bigru_forward.2} parent=1 // pred_region
      %74 = dma.done [#allocation7], 1024
    $region29: #{residual_bigru_forward.2} parent=1 // pred_fallthru
      _
    // Predicated region
    $region30: #{residual_bigru_forward.2} parent=1 // pred_check
      _
    $region31: #{residual_bigru_forward.2} parent=1 // pred_check_branch
      %76 = sbr.rel (0) target = $region33
    $region32: #{residual_bigru_forward.2} parent=1 // pred_region
      %77 = dma.done [#allocation10], 32
    $region33: #{residual_bigru_forward.2} parent=1 // pred_fallthru
      _
    %s78 = ssub.s32 0, 0
    %s79 = smul.u32 8, %s78
    %s80 = ssub.s32 0, 0
    %s81 = smul.u32 8, %s80
    %p83 = scmp.eq.s32.totalorder 0, 0
    // Predicated region
    $region34: #{residual_bigru_forward.2} parent=1 // pred_check
      %p84 = pneg %p83
    $region35: #{residual_bigru_forward.2} parent=1 // pred_check_branch
      %86 = sbr.rel (%p84) target = $region37
    $region36: #{residual_bigru_forward.2} parent=1 // pred_region
      %vm87 = vcmask 517120
      %88 = vst.msk [vmem:[#allocation2] sm:$0x3] %vm87, 0.0
    $region37: #{residual_bigru_forward.2} parent=1 // pred_fallthru
      _
    %v89 = vld [vmem:[#allocation8] sm:$0xff]
    %v90 = vld [vmem:[#allocation8 + $0x8] sm:$0xff]
    %v91 = vld [vmem:[#allocation8 + $0x10] sm:$0xff]
    %v92 = vld [vmem:[#allocation8 + $0x18] sm:$0xff]
    %v93 = vld [vmem:[#allocation8 + $0x20] sm:$0xff]
    %v94 = vld [vmem:[#allocation8 + $0x28] sm:$0xff]
    %v95 = vld [vmem:[#allocation8 + $0x30] sm:$0xff]
    %v96 = vld [vmem:[#allocation8 + $0x38] sm:$0xff]
    %v97 = vld [vmem:[#allocation9] sm:$0x3]
    %v99 = vlaneseq
    %v100 = vshrl.u32 %v99, 7
    %v101 = vsub.s32 0, %v100
    %v102 = vrot.slane %v97, %v101
    %v103 = vlaneseq
    %v104 = vshrl.u32 %v103, 7
    %v105 = vsub.s32 1, %v104
    %v106 = vrot.slane %v97, %v105
    %v109 = vld [vmem:[#allocation2] sm:$0x3]
    %v110 = vpack.c.bf16 %v109, %v109
    %v119 = vunpack.c.l.b16 %v89
    %v120 = vunpack.c.h.b16 %v89
    %v121 = vunpack.c.l.b16 %v90
    %v122 = vunpack.c.h.b16 %v90
    %v123 = vunpack.c.l.b16 %v91
    %v124 = vunpack.c.h.b16 %v91
    %v125 = vunpack.c.l.b16 %v92
    %v126 = vunpack.c.h.b16 %v92
    %v127 = vunpack.c.l.b16 %v93
    %v128 = vunpack.c.h.b16 %v93
    %v129 = vunpack.c.l.b16 %v94
    %v130 = vunpack.c.h.b16 %v94
    %v131 = vunpack.c.l.b16 %v95
    %v132 = vunpack.c.h.b16 %v95
    %v133 = vunpack.c.l.b16 %v96
    %v134 = vunpack.c.h.b16 %v96
    %v135 = vpack.c.b16 %v121, %v119
    %v136 = vpack.c.b16 %v122, %v120
    %v137 = vpack.c.b16 %v125, %v123
    %v138 = vpack.c.b16 %v126, %v124
    %v139 = vpack.c.b16 %v129, %v127
    %v140 = vpack.c.b16 %v130, %v128
    %v141 = vpack.c.b16 %v133, %v131
    %v142 = vpack.c.b16 %v134, %v132
    %vm151 = vcmask 523264
    %v153 = vsel %vm151, %v110, 0
    %155 = vmatprep.subr.bf16.mxu0 %v136
    %156 = vmatpush1.bf16.msra.mxu0 %v135
    %157 = vmatprep.subr.bf16.mxu0 %v138
    %158 = vmatpush1.bf16.msra.mxu0 %v137
    %159 = vmatprep.subr.bf16.mxu0 %v140
    %160 = vmatpush1.bf16.msra.mxu0 %v139
    %161 = vmatprep.subr.bf16.mxu0 %v142
    %162 = vmatpush1.bf16.msra.mxu0 %v141
    %163 = vmatprep.subr.bf16.mxu0 0
    %164 = vmatpush1.bf16.msra.mxu0 0
    %165 = vmatprep.subr.bf16.mxu0 0
    %166 = vmatpush1.bf16.msra.mxu0 0
    %167 = vmatprep.subr.bf16.mxu0 0
    %168 = vmatpush1.bf16.msra.mxu0 0
    %169 = vmatprep.subr.bf16.mxu0 0
    %170 = vmatpush1.bf16.msra.mxu0 0
    %171 = vmatprep.subr.bf16.mxu0 0
    %172 = vmatpush1.bf16.msra.mxu0 0
    %173 = vmatprep.subr.bf16.mxu0 0
    %174 = vmatpush1.bf16.msra.mxu0 0
    %175 = vmatprep.subr.bf16.mxu0 0
    %176 = vmatpush1.bf16.msra.mxu0 0
    %177 = vmatprep.subr.bf16.mxu0 0
    %178 = vmatpush1.bf16.msra.mxu0 0
    %179 = vmatprep.subr.bf16.mxu0 0
    %180 = vmatpush1.bf16.msra.mxu0 0
    %181 = vmatprep.subr.bf16.mxu0 0
    %182 = vmatpush1.bf16.msra.mxu0 0
    %183 = vmatprep.subr.bf16.mxu0 0
    %184 = vmatpush1.bf16.msra.mxu0 0
    %185 = vmatprep.subr.bf16.mxu0 0
    %186 = vmatpush1.bf16.msra.mxu0 0
    %187 = vmatprep.mubr.bf16.mxu0 0
    %188 = vmatmul.mubr.bf16.gmra.mrb[0].mxu0 %v153
    %v189 = vpop.f32.mrb[0].mxu0
    %v190 = vadd.f32 %v102, %v189
    %v191 = vpop.f32.mrb[0].mxu0
    %v192 = vadd.f32 %v106, %v191
    %v193 = vpop.f32.mrb[0].mxu0
    %v194 = vpop.f32.mrb[0].mxu0
    %195 = vdwg.mxu0
    %v196 = vld [vmem:[#allocation3] sm:$0x1]
    %v197 = vunpack.c.l.bf16 %v196
    %v198 = vadd.f32 %v197, %v190
    %v199 = vxor.u32 %v198, 2147483648
    %v200 = vmul.f32 %v199, 1.442695
    %v201 = vpow.pop %v200
    %v202 = vadd.f32 %v201, 1.0
    %v203 = vrcp.pop %v202
    %v204 = vmul.f32 1.0, %v203
    %v207 = vunpack.c.l.s4 1983009808
    %v208 = vunpack.c.0.s8 %v207
    %v209 = vlaneseq
    %v210 = vshrl.u32 %v209, 7
    %v211 = vsub.s32 %v208, %v210
    %v212 = vrot.slane %v190, %v211
    %213 = vrot.lane.b32.xlu0 %v212, 64
    %v214 = vpop.permute.xlu0 %213
    %v216 = vmul.f32 %v204, %v214
    %218 = vrot.lane.b32.xlu0 %v216, 64
    %v219 = vpop.permute.xlu0 %218
    %v221 = vadd.f32 %v197, %v219
    %v222 = vtanh.pop %v221
    %v223 = vsub.f32 1.0, %v204
    %225 = vrot.lane.b32.xlu0 %v222, 96
    %v226 = vpop.permute.xlu0 %225
    %v228 = vmul.f32 %v223, %v226
    %v231 = vunpack.c.l.s4 1983009808
    %v232 = vunpack.c.0.s8 %v231
    %v233 = vlaneseq
    %v234 = vshrl.u32 %v233, 7
    %v235 = vsub.s32 %v232, %v234
    %v236 = vrot.slane %v109, %v235
    %237 = vrot.lane.b32.xlu0 %v236, 32
    %v238 = vpop.permute.xlu0 %237
    %v240 = vmul.f32 %v204, %v238
    %v241 = vadd.f32 %v228, %v240
    %s242 = scalar_lea.vmem [#allocation6], 7
    %v243 = vld [vmem:[%s242] sm:$0x1]
    %v244 = vunpack.c.l.bf16 %v243
    %245 = vrot.lane.b32.xlu0 %v212, 32
    %v246 = vpop.permute.xlu0 %245
    %v248 = vadd.f32 %v244, %v246
    %v249 = vxor.u32 %v248, 2147483648
    %v250 = vmul.f32 %v249, 1.442695
    %v251 = vpow.pop %v250
    %v252 = vadd.f32 %v251, 1.0
    %v253 = vrcp.pop %v252
    %v254 = vmul.f32 1.0, %v253
    %v257 = vunpack.c.l.s4 1983009808
    %v258 = vunpack.c.0.s8 %v257
    %v259 = vlaneseq
    %v260 = vshrl.u32 %v259, 7
    %v261 = vsub.s32 %v258, %v260
    %v262 = vrot.slane %v192, %v261
    %263 = vrot.lane.b32.xlu0 %v262, 32
    %v264 = vpop.permute.xlu0 %263
    %v266 = vadd.f32 %v244, %v264
    %v267 = vxor.u32 %v266, 2147483648
    %v268 = vmul.f32 %v267, 1.442695
    %v269 = vpow.pop %v268
    %v270 = vadd.f32 %v269, 1.0
    %v271 = vrcp.pop %v270
    %v272 = vmul.f32 1.0, %v271
    %273 = vrot.lane.b32.xlu0 %v262, 96
    %v274 = vpop.permute.xlu0 %273
    %v276 = vmul.f32 %v254, %v274
    %278 = vrot.lane.b32.xlu0 %v276, 64
    %v279 = vpop.permute.xlu0 %278
    %v281 = vadd.f32 %v244, %v279
    %v282 = vtanh.pop %v281
    %v283 = vsub.f32 1.0, %v272
    %285 = vrot.lane.b32.xlu0 %v282, 96
    %v286 = vpop.permute.xlu0 %285
    %v288 = vmul.f32 %v283, %v286
    %v289 = vmul.f32 %v272, %v109
    %v290 = vadd.f32 %v288, %v289
    %v291 = vpack.c.bf16 %v241, %v241
    %v294 = vunpack.c.l.s4 1966171168
    %v295 = vunpack.c.0.s8 %v294
    %v296 = vlaneseq
    %v297 = vshrl.u32 %v296, 7
    %v298 = vsub.s32 %v295, %v297
    %v299 = vrot.slane %v291, %v298
    %v301 = vunpack.c.l.s4 1966171168
    %v302 = vunpack.c.0.s8 %v301
    %v303 = vlaneseq
    %v304 = vshrl.u32 %v303, 7
    %v305 = vsub.s32 %v302, %v304
    %v306 = vrot.slane %v299, %v305
    %307 = vrot.lane.b32.xlu0 %v306, 96
    %v308 = vpop.permute.xlu0 %307
    %vm310 = vcmask 253952
    %311 = vst.msk [vmem:[#allocation11] sm:$0x1] %vm310, %v308
    %v312 = vpack.c.bf16 %v290, %v290
    %v315 = vunpack.c.l.s4 1966171168
    %v316 = vunpack.c.0.s8 %v315
    %v317 = vlaneseq
    %v318 = vshrl.u32 %v317, 7
    %v319 = vsub.s32 %v316, %v318
    %v320 = vrot.slane %v312, %v319
    %v322 = vunpack.c.l.s4 1966171168
    %v323 = vunpack.c.0.s8 %v322
    %v324 = vlaneseq
    %v325 = vshrl.u32 %v324, 7
    %v326 = vsub.s32 %v323, %v325
    %v327 = vrot.slane %v320, %v326
    %328 = vrot.lane.b32.xlu0 %v327, 96
    %v329 = vpop.permute.xlu0 %328
    %s331 = scalar_lea.vmem [#allocation12], 7
    %332 = vst.msk [vmem:[%s331] sm:$0x1] %vm310, %v329
    %v335 = vunpack.c.l.s4 1983009808
    %v336 = vunpack.c.0.s8 %v335
    %v337 = vlaneseq
    %v338 = vshrl.u32 %v337, 7
    %v339 = vsub.s32 %v336, %v338
    %v340 = vrot.slane %v241, %v339
    %341 = vrot.lane.b32.xlu0 %v340, 96
    %v342 = vpop.permute.xlu0 %341
    %vm344 = vcmask 261120
    %v345 = vsel %vm344, %v342, %v290
    %v346 = vpack.c.bf16 %v345, %v345
    %v348 = vsel %vm151, %v346, 0
    %350 = vmatprep.subr.bf16.mxu0 %v136
    %351 = vmatpush1.bf16.msra.mxu0 %v135
    %352 = vmatprep.subr.bf16.mxu0 %v138
    %353 = vmatpush1.bf16.msra.mxu0 %v137
    %354 = vmatprep.subr.bf16.mxu0 %v140
    %355 = vmatpush1.bf16.msra.mxu0 %v139
    %356 = vmatprep.subr.bf16.mxu0 %v142
    %357 = vmatpush1.bf16.msra.mxu0 %v141
    %358 = vmatprep.subr.bf16.mxu0 0
    %359 = vmatpush1.bf16.msra.mxu0 0
    %360 = vmatprep.subr.bf16.mxu0 0
    %361 = vmatpush1.bf16.msra.mxu0 0
    %362 = vmatprep.subr.bf16.mxu0 0
    %363 = vmatpush1.bf16.msra.mxu0 0
    %364 = vmatprep.subr.bf16.mxu0 0
    %365 = vmatpush1.bf16.msra.mxu0 0
    %366 = vmatprep.subr.bf16.mxu0 0
    %367 = vmatpush1.bf16.msra.mxu0 0
    %368 = vmatprep.subr.bf16.mxu0 0
    %369 = vmatpush1.bf16.msra.mxu0 0
    %370 = vmatprep.subr.bf16.mxu0 0
    %371 = vmatpush1.bf16.msra.mxu0 0
    %372 = vmatprep.subr.bf16.mxu0 0
    %373 = vmatpush1.bf16.msra.mxu0 0
    %374 = vmatprep.subr.bf16.mxu0 0
    %375 = vmatpush1.bf16.msra.mxu0 0
    %376 = vmatprep.subr.bf16.mxu0 0
    %377 = vmatpush1.bf16.msra.mxu0 0
    %378 = vmatprep.subr.bf16.mxu0 0
    %379 = vmatpush1.bf16.msra.mxu0 0
    %380 = vmatprep.subr.bf16.mxu0 0
    %381 = vmatpush1.bf16.msra.mxu0 0
    %382 = vmatprep.mubr.bf16.mxu0 0
    %383 = vmatmul.mubr.bf16.gmra.mrb[0].mxu0 %v348
    %v384 = vpop.f32.mrb[0].mxu0
    %v385 = vadd.f32 %v102, %v384
    %v386 = vpop.f32.mrb[0].mxu0
    %v387 = vadd.f32 %v106, %v386
    %v388 = vpop.f32.mrb[0].mxu0
    %v389 = vpop.f32.mrb[0].mxu0
    %390 = vdwg.mxu0
    %s391 = scalar_lea.vmem [#allocation3], 1
    %v392 = vld [vmem:[%s391] sm:$0x1]
    %v393 = vunpack.c.l.bf16 %v392
    %v394 = vadd.f32 %v393, %v385
    %v395 = vxor.u32 %v394, 2147483648
    %v396 = vmul.f32 %v395, 1.442695
    %v397 = vpow.pop %v396
    %v398 = vadd.f32 %v397, 1.0
    %v399 = vrcp.pop %v398
    %v400 = vmul.f32 1.0, %v399
    %v403 = vunpack.c.l.s4 1983009808
    %v404 = vunpack.c.0.s8 %v403
    %v405 = vlaneseq
    %v406 = vshrl.u32 %v405, 7
    %v407 = vsub.s32 %v404, %v406
    %v408 = vrot.slane %v385, %v407
    %409 = vrot.lane.b32.xlu0 %v408, 64
    %v410 = vpop.permute.xlu0 %409
    %v412 = vmul.f32 %v400, %v410
    %414 = vrot.lane.b32.xlu0 %v412, 64
    %v415 = vpop.permute.xlu0 %414
    %v417 = vadd.f32 %v393, %v415
    %v418 = vtanh.pop %v417
    %v419 = vsub.f32 1.0, %v400
    %421 = vrot.lane.b32.xlu0 %v418, 96
    %v422 = vpop.permute.xlu0 %421
    %v424 = vmul.f32 %v419, %v422
    %v427 = vunpack.c.l.s4 1983009808
    %v428 = vunpack.c.0.s8 %v427
    %v429 = vlaneseq
    %v430 = vshrl.u32 %v429, 7
    %v431 = vsub.s32 %v428, %v430
    %v432 = vrot.slane %v345, %v431
    %433 = vrot.lane.b32.xlu0 %v432, 32
    %v434 = vpop.permute.xlu0 %433
    %v436 = vmul.f32 %v400, %v434
    %v437 = vadd.f32 %v424, %v436
    %s438 = scalar_lea.vmem [#allocation6], 6
    %v439 = vld [vmem:[%s438] sm:$0x1]
    %v440 = vunpack.c.l.bf16 %v439
    %441 = vrot.lane.b32.xlu0 %v408, 32
    %v442 = vpop.permute.xlu0 %441
    %v444 = vadd.f32 %v440, %v442
    %v445 = vxor.u32 %v444, 2147483648
    %v446 = vmul.f32 %v445, 1.442695
    %v447 = vpow.pop %v446
    %v448 = vadd.f32 %v447, 1.0
    %v449 = vrcp.pop %v448
    %v450 = vmul.f32 1.0, %v449
    %v453 = vunpack.c.l.s4 1983009808
    %v454 = vunpack.c.0.s8 %v453
    %v455 = vlaneseq
    %v456 = vshrl.u32 %v455, 7
    %v457 = vsub.s32 %v454, %v456
    %v458 = vrot.slane %v387, %v457
    %459 = vrot.lane.b32.xlu0 %v458, 32
    %v460 = vpop.permute.xlu0 %459
    %v462 = vadd.f32 %v440, %v460
    %v463 = vxor.u32 %v462, 2147483648
    %v464 = vmul.f32 %v463, 1.442695
    %v465 = vpow.pop %v464
    %v466 = vadd.f32 %v465, 1.0
    %v467 = vrcp.pop %v466
    %v468 = vmul.f32 1.0, %v467
    %469 = vrot.lane.b32.xlu0 %v458, 96
    %v470 = vpop.permute.xlu0 %469
    %v472 = vmul.f32 %v450, %v470
    %474 = vrot.lane.b32.xlu0 %v472, 64
    %v475 = vpop.permute.xlu0 %474
    %v477 = vadd.f32 %v440, %v475
    %v478 = vtanh.pop %v477
    %v479 = vsub.f32 1.0, %v468
    %481 = vrot.lane.b32.xlu0 %v478, 96
    %v482 = vpop.permute.xlu0 %481
    %v484 = vmul.f32 %v479, %v482
    %v485 = vmul.f32 %v468, %v345
    %v486 = vadd.f32 %v484, %v485
    %v487 = vpack.c.bf16 %v437, %v437
    %v490 = vunpack.c.l.s4 1966171168
    %v491 = vunpack.c.0.s8 %v490
    %v492 = vlaneseq
    %v493 = vshrl.u32 %v492, 7
    %v494 = vsub.s32 %v491, %v493
    %v495 = vrot.slane %v487, %v494
    %v497 = vunpack.c.l.s4 1966171168
    %v498 = vunpack.c.0.s8 %v497
    %v499 = vlaneseq
    %v500 = vshrl.u32 %v499, 7
    %v501 = vsub.s32 %v498, %v500
    %v502 = vrot.slane %v495, %v501
    %503 = vrot.lane.b32.xlu0 %v502, 96
    %v504 = vpop.permute.xlu0 %503
    %s506 = scalar_lea.vmem [#allocation11], 1
    %507 = vst.msk [vmem:[%s506] sm:$0x1] %vm310, %v504
    %v508 = vpack.c.bf16 %v486, %v486
    %v511 = vunpack.c.l.s4 1966171168
    %v512 = vunpack.c.0.s8 %v511
    %v513 = vlaneseq
    %v514 = vshrl.u32 %v513, 7
    %v515 = vsub.s32 %v512, %v514
    %v516 = vrot.slane %v508, %v515
    %v518 = vunpack.c.l.s4 1966171168
    %v519 = vunpack.c.0.s8 %v518
    %v520 = vlaneseq
    %v521 = vshrl.u32 %v520, 7
    %v522 = vsub.s32 %v519, %v521
    %v523 = vrot.slane %v516, %v522
    %524 = vrot.lane.b32.xlu0 %v523, 96
    %v525 = vpop.permute.xlu0 %524
    %s527 = scalar_lea.vmem [#allocation12], 6
    %528 = vst.msk [vmem:[%s527] sm:$0x1] %vm310, %v525
    %v531 = vunpack.c.l.s4 1983009808
    %v532 = vunpack.c.0.s8 %v531
    %v533 = vlaneseq
    %v534 = vshrl.u32 %v533, 7
    %v535 = vsub.s32 %v532, %v534
    %v536 = vrot.slane %v437, %v535
    %537 = vrot.lane.b32.xlu0 %v536, 96
    %v538 = vpop.permute.xlu0 %537
    %v540 = vsel %vm344, %v538, %v486
    %v541 = vpack.c.bf16 %v540, %v540
    %v543 = vsel %vm151, %v541, 0
    %545 = vmatprep.subr.bf16.mxu0 %v136
    %546 = vmatpush1.bf16.msra.mxu0 %v135
    %547 = vmatprep.subr.bf16.mxu0 %v138
    %548 = vmatpush1.bf16.msra.mxu0 %v137
    %549 = vmatprep.subr.bf16.mxu0 %v140
    %550 = vmatpush1.bf16.msra.mxu0 %v139
    %551 = vmatprep.subr.bf16.mxu0 %v142
    %552 = vmatpush1.bf16.msra.mxu0 %v141
    %553 = vmatprep.subr.bf16.mxu0 0
    %554 = vmatpush1.bf16.msra.mxu0 0
    %555 = vmatprep.subr.bf16.mxu0 0
    %556 = vmatpush1.bf16.msra.mxu0 0
    %557 = vmatprep.subr.bf16.mxu0 0
    %558 = vmatpush1.bf16.msra.mxu0 0
    %559 = vmatprep.subr.bf16.mxu0 0
    %560 = vmatpush1.bf16.msra.mxu0 0
    %561 = vmatprep.subr.bf16.mxu0 0
    %562 = vmatpush1.bf16.msra.mxu0 0
    %563 = vmatprep.subr.bf16.mxu0 0
    %564 = vmatpush1.bf16.msra.mxu0 0
    %565 = vmatprep.subr.bf16.mxu0 0
    %566 = vmatpush1.bf16.msra.mxu0 0
    %567 = vmatprep.subr.bf16.mxu0 0
    %568 = vmatpush1.bf16.msra.mxu0 0
    %569 = vmatprep.subr.bf16.mxu0 0
    %570 = vmatpush1.bf16.msra.mxu0 0
    %571 = vmatprep.subr.bf16.mxu0 0
    %572 = vmatpush1.bf16.msra.mxu0 0
    %573 = vmatprep.subr.bf16.mxu0 0
    %574 = vmatpush1.bf16.msra.mxu0 0
    %575 = vmatprep.subr.bf16.mxu0 0
    %576 = vmatpush1.bf16.msra.mxu0 0
    %577 = vmatprep.mubr.bf16.mxu0 0
    %578 = vmatmul.mubr.bf16.gmra.mrb[0].mxu0 %v543
    %v579 = vpop.f32.mrb[0].mxu0
    %v580 = vadd.f32 %v102, %v579
    %v581 = vpop.f32.mrb[0].mxu0
    %v582 = vadd.f32 %v106, %v581
    %v583 = vpop.f32.mrb[0].mxu0
    %v584 = vpop.f32.mrb[0].mxu0
    %585 = vdwg.mxu0
    %s586 = scalar_lea.vmem [#allocation3], 2
    %v587 = vld [vmem:[%s586] sm:$0x1]
    %v588 = vunpack.c.l.bf16 %v587
    %v589 = vadd.f32 %v588, %v580
    %v590 = vxor.u32 %v589, 2147483648
    %v591 = vmul.f32 %v590, 1.442695
    %v592 = vpow.pop %v591
    %v593 = vadd.f32 %v592, 1.0
    %v594 = vrcp.pop %v593
    %v595 = vmul.f32 1.0, %v594
    %v598 = vunpack.c.l.s4 1983009808
    %v599 = vunpack.c.0.s8 %v598
    %v600 = vlaneseq
    %v601 = vshrl.u32 %v600, 7
    %v602 = vsub.s32 %v599, %v601
    %v603 = vrot.slane %v580, %v602
    %604 = vrot.lane.b32.xlu0 %v603, 64
    %v605 = vpop.permute.xlu0 %604
    %v607 = vmul.f32 %v595, %v605
    %609 = vrot.lane.b32.xlu0 %v607, 64
    %v610 = vpop.permute.xlu0 %609
    %v612 = vadd.f32 %v588, %v610
    %v613 = vtanh.pop %v612
    %v614 = vsub.f32 1.0, %v595
    %616 = vrot.lane.b32.xlu0 %v613, 96
    %v617 = vpop.permute.xlu0 %616
    %v619 = vmul.f32 %v614, %v617
    %v622 = vunpack.c.l.s4 1983009808
    %v623 = vunpack.c.0.s8 %v622
    %v624 = vlaneseq
    %v625 = vshrl.u32 %v624, 7
    %v626 = vsub.s32 %v623, %v625
    %v627 = vrot.slane %v540, %v626
    %628 = vrot.lane.b32.xlu0 %v627, 32
    %v629 = vpop.permute.xlu0 %628
    %v631 = vmul.f32 %v595, %v629
    %v632 = vadd.f32 %v619, %v631
    %s633 = scalar_lea.vmem [#allocation6], 5
    %v634 = vld [vmem:[%s633] sm:$0x1]
    %v635 = vunpack.c.l.bf16 %v634
    %636 = vrot.lane.b32.xlu0 %v603, 32
    %v637 = vpop.permute.xlu0 %636
    %v639 = vadd.f32 %v635, %v637
    %v640 = vxor.u32 %v639, 2147483648
    %v641 = vmul.f32 %v640, 1.442695
    %v642 = vpow.pop %v641
    %v643 = vadd.f32 %v642, 1.0
    %v644 = vrcp.pop %v643
    %v645 = vmul.f32 1.0, %v644
    %v648 = vunpack.c.l.s4 1983009808
    %v649 = vunpack.c.0.s8 %v648
    %v650 = vlaneseq
    %v651 = vshrl.u32 %v650, 7
    %v652 = vsub.s32 %v649, %v651
    %v653 = vrot.slane %v582, %v652
    %654 = vrot.lane.b32.xlu0 %v653, 32
    %v655 = vpop.permute.xlu0 %654
    %v657 = vadd.f32 %v635, %v655
    %v658 = vxor.u32 %v657, 2147483648
    %v659 = vmul.f32 %v658, 1.442695
    %v660 = vpow.pop %v659
    %v661 = vadd.f32 %v660, 1.0
    %v662 = vrcp.pop %v661
    %v663 = vmul.f32 1.0, %v662
    %664 = vrot.lane.b32.xlu0 %v653, 96
    %v665 = vpop.permute.xlu0 %664
    %v667 = vmul.f32 %v645, %v665
    %669 = vrot.lane.b32.xlu0 %v667, 64
    %v670 = vpop.permute.xlu0 %669
    %v672 = vadd.f32 %v635, %v670
    %v673 = vtanh.pop %v672
    %v674 = vsub.f32 1.0, %v663
    %676 = vrot.lane.b32.xlu0 %v673, 96
    %v677 = vpop.permute.xlu0 %676
    %v679 = vmul.f32 %v674, %v677
    %v680 = vmul.f32 %v663, %v540
    %v681 = vadd.f32 %v679, %v680
    %v682 = vpack.c.bf16 %v632, %v632
    %v685 = vunpack.c.l.s4 1966171168
    %v686 = vunpack.c.0.s8 %v685
    %v687 = vlaneseq
    %v688 = vshrl.u32 %v687, 7
    %v689 = vsub.s32 %v686, %v688
    %v690 = vrot.slane %v682, %v689
    %v692 = vunpack.c.l.s4 1966171168
    %v693 = vunpack.c.0.s8 %v692
    %v694 = vlaneseq
    %v695 = vshrl.u32 %v694, 7
    %v696 = vsub.s32 %v693, %v695
    %v697 = vrot.slane %v690, %v696
    %698 = vrot.lane.b32.xlu0 %v697, 96
    %v699 = vpop.permute.xlu0 %698
    %s701 = scalar_lea.vmem [#allocation11], 2
    %702 = vst.msk [vmem:[%s701] sm:$0x1] %vm310, %v699
    %v703 = vpack.c.bf16 %v681, %v681
    %v706 = vunpack.c.l.s4 1966171168
    %v707 = vunpack.c.0.s8 %v706
    %v708 = vlaneseq
    %v709 = vshrl.u32 %v708, 7
    %v710 = vsub.s32 %v707, %v709
    %v711 = vrot.slane %v703, %v710
    %v713 = vunpack.c.l.s4 1966171168
    %v714 = vunpack.c.0.s8 %v713
    %v715 = vlaneseq
    %v716 = vshrl.u32 %v715, 7
    %v717 = vsub.s32 %v714, %v716
    %v718 = vrot.slane %v711, %v717
    %719 = vrot.lane.b32.xlu0 %v718, 96
    %v720 = vpop.permute.xlu0 %719
    %s722 = scalar_lea.vmem [#allocation12], 5
    %723 = vst.msk [vmem:[%s722] sm:$0x1] %vm310, %v720
    %v726 = vunpack.c.l.s4 1983009808
    %v727 = vunpack.c.0.s8 %v726
    %v728 = vlaneseq
    %v729 = vshrl.u32 %v728, 7
    %v730 = vsub.s32 %v727, %v729
    %v731 = vrot.slane %v632, %v730
    %732 = vrot.lane.b32.xlu0 %v731, 96
    %v733 = vpop.permute.xlu0 %732
    %v735 = vsel %vm344, %v733, %v681
    %v736 = vpack.c.bf16 %v735, %v735
    %v738 = vsel %vm151, %v736, 0
    %740 = vmatprep.subr.bf16.mxu0 %v136
    %741 = vmatpush1.bf16.msra.mxu0 %v135
    %742 = vmatprep.subr.bf16.mxu0 %v138
    %743 = vmatpush1.bf16.msra.mxu0 %v137
    %744 = vmatprep.subr.bf16.mxu0 %v140
    %745 = vmatpush1.bf16.msra.mxu0 %v139
    %746 = vmatprep.subr.bf16.mxu0 %v142
    %747 = vmatpush1.bf16.msra.mxu0 %v141
    %748 = vmatprep.subr.bf16.mxu0 0
    %749 = vmatpush1.bf16.msra.mxu0 0
    %750 = vmatprep.subr.bf16.mxu0 0
    %751 = vmatpush1.bf16.msra.mxu0 0
    %752 = vmatprep.subr.bf16.mxu0 0
    %753 = vmatpush1.bf16.msra.mxu0 0
    %754 = vmatprep.subr.bf16.mxu0 0
    %755 = vmatpush1.bf16.msra.mxu0 0
    %756 = vmatprep.subr.bf16.mxu0 0
    %757 = vmatpush1.bf16.msra.mxu0 0
    %758 = vmatprep.subr.bf16.mxu0 0
    %759 = vmatpush1.bf16.msra.mxu0 0
    %760 = vmatprep.subr.bf16.mxu0 0
    %761 = vmatpush1.bf16.msra.mxu0 0
    %762 = vmatprep.subr.bf16.mxu0 0
    %763 = vmatpush1.bf16.msra.mxu0 0
    %764 = vmatprep.subr.bf16.mxu0 0
    %765 = vmatpush1.bf16.msra.mxu0 0
    %766 = vmatprep.subr.bf16.mxu0 0
    %767 = vmatpush1.bf16.msra.mxu0 0
    %768 = vmatprep.subr.bf16.mxu0 0
    %769 = vmatpush1.bf16.msra.mxu0 0
    %770 = vmatprep.subr.bf16.mxu0 0
    %771 = vmatpush1.bf16.msra.mxu0 0
    %772 = vmatprep.mubr.bf16.mxu0 0
    %773 = vmatmul.mubr.bf16.gmra.mrb[0].mxu0 %v738
    %v774 = vpop.f32.mrb[0].mxu0
    %v775 = vadd.f32 %v102, %v774
    %v776 = vpop.f32.mrb[0].mxu0
    %v777 = vadd.f32 %v106, %v776
    %v778 = vpop.f32.mrb[0].mxu0
    %v779 = vpop.f32.mrb[0].mxu0
    %780 = vdwg.mxu0
    %s781 = scalar_lea.vmem [#allocation3], 3
    %v782 = vld [vmem:[%s781] sm:$0x1]
    %v783 = vunpack.c.l.bf16 %v782
    %v784 = vadd.f32 %v783, %v775
    %v785 = vxor.u32 %v784, 2147483648
    %v786 = vmul.f32 %v785, 1.442695
    %v787 = vpow.pop %v786
    %v788 = vadd.f32 %v787, 1.0
    %v789 = vrcp.pop %v788
    %v790 = vmul.f32 1.0, %v789
    %v793 = vunpack.c.l.s4 1983009808
    %v794 = vunpack.c.0.s8 %v793
    %v795 = vlaneseq
    %v796 = vshrl.u32 %v795, 7
    %v797 = vsub.s32 %v794, %v796
    %v798 = vrot.slane %v775, %v797
    %799 = vrot.lane.b32.xlu0 %v798, 64
    %v800 = vpop.permute.xlu0 %799
    %v802 = vmul.f32 %v790, %v800
    %804 = vrot.lane.b32.xlu0 %v802, 64
    %v805 = vpop.permute.xlu0 %804
    %v807 = vadd.f32 %v783, %v805
    %v808 = vtanh.pop %v807
    %v809 = vsub.f32 1.0, %v790
    %811 = vrot.lane.b32.xlu0 %v808, 96
    %v812 = vpop.permute.xlu0 %811
    %v814 = vmul.f32 %v809, %v812
    %v817 = vunpack.c.l.s4 1983009808
    %v818 = vunpack.c.0.s8 %v817
    %v819 = vlaneseq
    %v820 = vshrl.u32 %v819, 7
    %v821 = vsub.s32 %v818, %v820
    %v822 = vrot.slane %v735, %v821
    %823 = vrot.lane.b32.xlu0 %v822, 32
    %v824 = vpop.permute.xlu0 %823
    %v826 = vmul.f32 %v790, %v824
    %v827 = vadd.f32 %v814, %v826
    %s828 = scalar_lea.vmem [#allocation6], 4
    %v829 = vld [vmem:[%s828] sm:$0x1]
    %v830 = vunpack.c.l.bf16 %v829
    %831 = vrot.lane.b32.xlu0 %v798, 32
    %v832 = vpop.permute.xlu0 %831
    %v834 = vadd.f32 %v830, %v832
    %v835 = vxor.u32 %v834, 2147483648
    %v836 = vmul.f32 %v835, 1.442695
    %v837 = vpow.pop %v836
    %v838 = vadd.f32 %v837, 1.0
    %v839 = vrcp.pop %v838
    %v840 = vmul.f32 1.0, %v839
    %v843 = vunpack.c.l.s4 1983009808
    %v844 = vunpack.c.0.s8 %v843
    %v845 = vlaneseq
    %v846 = vshrl.u32 %v845, 7
    %v847 = vsub.s32 %v844, %v846
    %v848 = vrot.slane %v777, %v847
    %849 = vrot.lane.b32.xlu0 %v848, 32
    %v850 = vpop.permute.xlu0 %849
    %v852 = vadd.f32 %v830, %v850
    %v853 = vxor.u32 %v852, 2147483648
    %v854 = vmul.f32 %v853, 1.442695
    %v855 = vpow.pop %v854
    %v856 = vadd.f32 %v855, 1.0
    %v857 = vrcp.pop %v856
    %v858 = vmul.f32 1.0, %v857
    %859 = vrot.lane.b32.xlu0 %v848, 96
    %v860 = vpop.permute.xlu0 %859
    %v862 = vmul.f32 %v840, %v860
    %864 = vrot.lane.b32.xlu0 %v862, 64
    %v865 = vpop.permute.xlu0 %864
    %v867 = vadd.f32 %v830, %v865
    %v868 = vtanh.pop %v867
    %v869 = vsub.f32 1.0, %v858
    %871 = vrot.lane.b32.xlu0 %v868, 96
    %v872 = vpop.permute.xlu0 %871
    %v874 = vmul.f32 %v869, %v872
    %v875 = vmul.f32 %v858, %v735
    %v876 = vadd.f32 %v874, %v875
    %v877 = vpack.c.bf16 %v827, %v827
    %v880 = vunpack.c.l.s4 1966171168
    %v881 = vunpack.c.0.s8 %v880
    %v882 = vlaneseq
    %v883 = vshrl.u32 %v882, 7
    %v884 = vsub.s32 %v881, %v883
    %v885 = vrot.slane %v877, %v884
    %v887 = vunpack.c.l.s4 1966171168
    %v888 = vunpack.c.0.s8 %v887
    %v889 = vlaneseq
    %v890 = vshrl.u32 %v889, 7
    %v891 = vsub.s32 %v888, %v890
    %v892 = vrot.slane %v885, %v891
    %893 = vrot.lane.b32.xlu0 %v892, 96
    %v894 = vpop.permute.xlu0 %893
    %s896 = scalar_lea.vmem [#allocation11], 3
    %897 = vst.msk [vmem:[%s896] sm:$0x1] %vm310, %v894
    %v898 = vpack.c.bf16 %v876, %v876
    %v901 = vunpack.c.l.s4 1966171168
    %v902 = vunpack.c.0.s8 %v901
    %v903 = vlaneseq
    %v904 = vshrl.u32 %v903, 7
    %v905 = vsub.s32 %v902, %v904
    %v906 = vrot.slane %v898, %v905
    %v908 = vunpack.c.l.s4 1966171168
    %v909 = vunpack.c.0.s8 %v908
    %v910 = vlaneseq
    %v911 = vshrl.u32 %v910, 7
    %v912 = vsub.s32 %v909, %v911
    %v913 = vrot.slane %v906, %v912
    %914 = vrot.lane.b32.xlu0 %v913, 96
    %v915 = vpop.permute.xlu0 %914
    %s917 = scalar_lea.vmem [#allocation12], 4
    %918 = vst.msk [vmem:[%s917] sm:$0x1] %vm310, %v915
    %v921 = vunpack.c.l.s4 1983009808
    %v922 = vunpack.c.0.s8 %v921
    %v923 = vlaneseq
    %v924 = vshrl.u32 %v923, 7
    %v925 = vsub.s32 %v922, %v924
    %v926 = vrot.slane %v827, %v925
    %927 = vrot.lane.b32.xlu0 %v926, 96
    %v928 = vpop.permute.xlu0 %927
    %v930 = vsel %vm344, %v928, %v876
    %v931 = vpack.c.bf16 %v930, %v930
    %v933 = vsel %vm151, %v931, 0
    %935 = vmatprep.subr.bf16.mxu0 %v136
    %936 = vmatpush1.bf16.msra.mxu0 %v135
    %937 = vmatprep.subr.bf16.mxu0 %v138
    %938 = vmatpush1.bf16.msra.mxu0 %v137
    %939 = vmatprep.subr.bf16.mxu0 %v140
    %940 = vmatpush1.bf16.msra.mxu0 %v139
    %941 = vmatprep.subr.bf16.mxu0 %v142
    %942 = vmatpush1.bf16.msra.mxu0 %v141
    %943 = vmatprep.subr.bf16.mxu0 0
    %944 = vmatpush1.bf16.msra.mxu0 0
    %945 = vmatprep.subr.bf16.mxu0 0
    %946 = vmatpush1.bf16.msra.mxu0 0
    %947 = vmatprep.subr.bf16.mxu0 0
    %948 = vmatpush1.bf16.msra.mxu0 0
    %949 = vmatprep.subr.bf16.mxu0 0
    %950 = vmatpush1.bf16.msra.mxu0 0
    %951 = vmatprep.subr.bf16.mxu0 0
    %952 = vmatpush1.bf16.msra.mxu0 0
    %953 = vmatprep.subr.bf16.mxu0 0
    %954 = vmatpush1.bf16.msra.mxu0 0
    %955 = vmatprep.subr.bf16.mxu0 0
    %956 = vmatpush1.bf16.msra.mxu0 0
    %957 = vmatprep.subr.bf16.mxu0 0
    %958 = vmatpush1.bf16.msra.mxu0 0
    %959 = vmatprep.subr.bf16.mxu0 0
    %960 = vmatpush1.bf16.msra.mxu0 0
    %961 = vmatprep.subr.bf16.mxu0 0
    %962 = vmatpush1.bf16.msra.mxu0 0
    %963 = vmatprep.subr.bf16.mxu0 0
    %964 = vmatpush1.bf16.msra.mxu0 0
    %965 = vmatprep.subr.bf16.mxu0 0
    %966 = vmatpush1.bf16.msra.mxu0 0
    %967 = vmatprep.mubr.bf16.mxu0 0
    %968 = vmatmul.mubr.bf16.gmra.mrb[0].mxu0 %v933
    %v969 = vpop.f32.mrb[0].mxu0
    %v970 = vadd.f32 %v102, %v969
    %v971 = vpop.f32.mrb[0].mxu0
    %v972 = vadd.f32 %v106, %v971
    %v973 = vpop.f32.mrb[0].mxu0
    %v974 = vpop.f32.mrb[0].mxu0
    %975 = vdwg.mxu0
    %s976 = scalar_lea.vmem [#allocation3], 4
    %v977 = vld [vmem:[%s976] sm:$0x1]
    %v978 = vunpack.c.l.bf16 %v977
    %v979 = vadd.f32 %v978, %v970
    %v980 = vxor.u32 %v979, 2147483648
    %v981 = vmul.f32 %v980, 1.442695
    %v982 = vpow.pop %v981
    %v983 = vadd.f32 %v982, 1.0
    %v984 = vrcp.pop %v983
    %v985 = vmul.f32 1.0, %v984
    %v988 = vunpack.c.l.s4 1983009808
    %v989 = vunpack.c.0.s8 %v988
    %v990 = vlaneseq
    %v991 = vshrl.u32 %v990, 7
    %v992 = vsub.s32 %v989, %v991
    %v993 = vrot.slane %v970, %v992
    %994 = vrot.lane.b32.xlu0 %v993, 64
    %v995 = vpop.permute.xlu0 %994
    %v997 = vmul.f32 %v985, %v995
    %999 = vrot.lane.b32.xlu0 %v997, 64
    %v1000 = vpop.permute.xlu0 %999
    %v1002 = vadd.f32 %v978, %v1000
    %v1003 = vtanh.pop %v1002
    %v1004 = vsub.f32 1.0, %v985
    %1006 = vrot.lane.b32.xlu0 %v1003, 96
    %v1007 = vpop.permute.xlu0 %1006
    %v1009 = vmul.f32 %v1004, %v1007
    %v1012 = vunpack.c.l.s4 1983009808
    %v1013 = vunpack.c.0.s8 %v1012
    %v1014 = vlaneseq
    %v1015 = vshrl.u32 %v1014, 7
    %v1016 = vsub.s32 %v1013, %v1015
    %v1017 = vrot.slane %v930, %v1016
    %1018 = vrot.lane.b32.xlu0 %v1017, 32
    %v1019 = vpop.permute.xlu0 %1018
    %v1021 = vmul.f32 %v985, %v1019
    %v1022 = vadd.f32 %v1009, %v1021
    %s1023 = scalar_lea.vmem [#allocation6], 3
    %v1024 = vld [vmem:[%s1023] sm:$0x1]
    %v1025 = vunpack.c.l.bf16 %v1024
    %1026 = vrot.lane.b32.xlu0 %v993, 32
    %v1027 = vpop.permute.xlu0 %1026
    %v1029 = vadd.f32 %v1025, %v1027
    %v1030 = vxor.u32 %v1029, 2147483648
    %v1031 = vmul.f32 %v1030, 1.442695
    %v1032 = vpow.pop %v1031
    %v1033 = vadd.f32 %v1032, 1.0
    %v1034 = vrcp.pop %v1033
    %v1035 = vmul.f32 1.0, %v1034
    %v1038 = vunpack.c.l.s4 1983009808
    %v1039 = vunpack.c.0.s8 %v1038
    %v1040 = vlaneseq
    %v1041 = vshrl.u32 %v1040, 7
    %v1042 = vsub.s32 %v1039, %v1041
    %v1043 = vrot.slane %v972, %v1042
    %1044 = vrot.lane.b32.xlu0 %v1043, 32
    %v1045 = vpop.permute.xlu0 %1044
    %v1047 = vadd.f32 %v1025, %v1045
    %v1048 = vxor.u32 %v1047, 2147483648
    %v1049 = vmul.f32 %v1048, 1.442695
    %v1050 = vpow.pop %v1049
    %v1051 = vadd.f32 %v1050, 1.0
    %v1052 = vrcp.pop %v1051
    %v1053 = vmul.f32 1.0, %v1052
    %1054 = vrot.lane.b32.xlu0 %v1043, 96
    %v1055 = vpop.permute.xlu0 %1054
    %v1057 = vmul.f32 %v1035, %v1055
    %1059 = vrot.lane.b32.xlu0 %v1057, 64
    %v1060 = vpop.permute.xlu0 %1059
    %v1062 = vadd.f32 %v1025, %v1060
    %v1063 = vtanh.pop %v1062
    %v1064 = vsub.f32 1.0, %v1053
    %1066 = vrot.lane.b32.xlu0 %v1063, 96
    %v1067 = vpop.permute.xlu0 %1066
    %v1069 = vmul.f32 %v1064, %v1067
    %v1070 = vmul.f32 %v1053, %v930
    %v1071 = vadd.f32 %v1069, %v1070
    %v1072 = vpack.c.bf16 %v1022, %v1022
    %v1075 = vunpack.c.l.s4 1966171168
    %v1076 = vunpack.c.0.s8 %v1075
    %v1077 = vlaneseq
    %v1078 = vshrl.u32 %v1077, 7
    %v1079 = vsub.s32 %v1076, %v1078
    %v1080 = vrot.slane %v1072, %v1079
    %v1082 = vunpack.c.l.s4 1966171168
    %v1083 = vunpack.c.0.s8 %v1082
    %v1084 = vlaneseq
    %v1085 = vshrl.u32 %v1084, 7
    %v1086 = vsub.s32 %v1083, %v1085
    %v1087 = vrot.slane %v1080, %v1086
    %1088 = vrot.lane.b32.xlu0 %v1087, 96
    %v1089 = vpop.permute.xlu0 %1088
    %s1091 = scalar_lea.vmem [#allocation11], 4
    %1092 = vst.msk [vmem:[%s1091] sm:$0x1] %vm310, %v1089
    %v1093 = vpack.c.bf16 %v1071, %v1071
    %v1096 = vunpack.c.l.s4 1966171168
    %v1097 = vunpack.c.0.s8 %v1096
    %v1098 = vlaneseq
    %v1099 = vshrl.u32 %v1098, 7
    %v1100 = vsub.s32 %v1097, %v1099
    %v1101 = vrot.slane %v1093, %v1100
    %v1103 = vunpack.c.l.s4 1966171168
    %v1104 = vunpack.c.0.s8 %v1103
    %v1105 = vlaneseq
    %v1106 = vshrl.u32 %v1105, 7
    %v1107 = vsub.s32 %v1104, %v1106
    %v1108 = vrot.slane %v1101, %v1107
    %1109 = vrot.lane.b32.xlu0 %v1108, 96
    %v1110 = vpop.permute.xlu0 %1109
    %s1112 = scalar_lea.vmem [#allocation12], 3
    %1113 = vst.msk [vmem:[%s1112] sm:$0x1] %vm310, %v1110
    %v1116 = vunpack.c.l.s4 1983009808
    %v1117 = vunpack.c.0.s8 %v1116
    %v1118 = vlaneseq
    %v1119 = vshrl.u32 %v1118, 7
    %v1120 = vsub.s32 %v1117, %v1119
    %v1121 = vrot.slane %v1022, %v1120
    %1122 = vrot.lane.b32.xlu0 %v1121, 96
    %v1123 = vpop.permute.xlu0 %1122
    %v1125 = vsel %vm344, %v1123, %v1071
    %v1126 = vpack.c.bf16 %v1125, %v1125
    %v1128 = vsel %vm151, %v1126, 0
    %1130 = vmatprep.subr.bf16.mxu0 %v136
    %1131 = vmatpush1.bf16.msra.mxu0 %v135
    %1132 = vmatprep.subr.bf16.mxu0 %v138
    %1133 = vmatpush1.bf16.msra.mxu0 %v137
    %1134 = vmatprep.subr.bf16.mxu0 %v140
    %1135 = vmatpush1.bf16.msra.mxu0 %v139
    %1136 = vmatprep.subr.bf16.mxu0 %v142
    %1137 = vmatpush1.bf16.msra.mxu0 %v141
    %1138 = vmatprep.subr.bf16.mxu0 0
    %1139 = vmatpush1.bf16.msra.mxu0 0
    %1140 = vmatprep.subr.bf16.mxu0 0
    %1141 = vmatpush1.bf16.msra.mxu0 0
    %1142 = vmatprep.subr.bf16.mxu0 0
    %1143 = vmatpush1.bf16.msra.mxu0 0
    %1144 = vmatprep.subr.bf16.mxu0 0
    %1145 = vmatpush1.bf16.msra.mxu0 0
    %1146 = vmatprep.subr.bf16.mxu0 0
    %1147 = vmatpush1.bf16.msra.mxu0 0
    %1148 = vmatprep.subr.bf16.mxu0 0
    %1149 = vmatpush1.bf16.msra.mxu0 0
    %1150 = vmatprep.subr.bf16.mxu0 0
    %1151 = vmatpush1.bf16.msra.mxu0 0
    %1152 = vmatprep.subr.bf16.mxu0 0
    %1153 = vmatpush1.bf16.msra.mxu0 0
    %1154 = vmatprep.subr.bf16.mxu0 0
    %1155 = vmatpush1.bf16.msra.mxu0 0
    %1156 = vmatprep.subr.bf16.mxu0 0
    %1157 = vmatpush1.bf16.msra.mxu0 0
    %1158 = vmatprep.subr.bf16.mxu0 0
    %1159 = vmatpush1.bf16.msra.mxu0 0
    %1160 = vmatprep.subr.bf16.mxu0 0
    %1161 = vmatpush1.bf16.msra.mxu0 0
    %1162 = vmatprep.mubr.bf16.mxu0 0
    %1163 = vmatmul.mubr.bf16.gmra.mrb[0].mxu0 %v1128
    %v1164 = vpop.f32.mrb[0].mxu0
    %v1165 = vadd.f32 %v102, %v1164
    %v1166 = vpop.f32.mrb[0].mxu0
    %v1167 = vadd.f32 %v106, %v1166
    %v1168 = vpop.f32.mrb[0].mxu0
    %v1169 = vpop.f32.mrb[0].mxu0
    %1170 = vdwg.mxu0
    %s1171 = scalar_lea.vmem [#allocation3], 5
    %v1172 = vld [vmem:[%s1171] sm:$0x1]
    %v1173 = vunpack.c.l.bf16 %v1172
    %v1174 = vadd.f32 %v1173, %v1165
    %v1175 = vxor.u32 %v1174, 2147483648
    %v1176 = vmul.f32 %v1175, 1.442695
    %v1177 = vpow.pop %v1176
    %v1178 = vadd.f32 %v1177, 1.0
    %v1179 = vrcp.pop %v1178
    %v1180 = vmul.f32 1.0, %v1179
    %v1183 = vunpack.c.l.s4 1983009808
    %v1184 = vunpack.c.0.s8 %v1183
    %v1185 = vlaneseq
    %v1186 = vshrl.u32 %v1185, 7
    %v1187 = vsub.s32 %v1184, %v1186
    %v1188 = vrot.slane %v1165, %v1187
    %1189 = vrot.lane.b32.xlu0 %v1188, 64
    %v1190 = vpop.permute.xlu0 %1189
    %v1192 = vmul.f32 %v1180, %v1190
    %1194 = vrot.lane.b32.xlu0 %v1192, 64
    %v1195 = vpop.permute.xlu0 %1194
    %v1197 = vadd.f32 %v1173, %v1195
    %v1198 = vtanh.pop %v1197
    %v1199 = vsub.f32 1.0, %v1180
    %1201 = vrot.lane.b32.xlu0 %v1198, 96
    %v1202 = vpop.permute.xlu0 %1201
    %v1204 = vmul.f32 %v1199, %v1202
    %v1207 = vunpack.c.l.s4 1983009808
    %v1208 = vunpack.c.0.s8 %v1207
    %v1209 = vlaneseq
    %v1210 = vshrl.u32 %v1209, 7
    %v1211 = vsub.s32 %v1208, %v1210
    %v1212 = vrot.slane %v1125, %v1211
    %1213 = vrot.lane.b32.xlu0 %v1212, 32
    %v1214 = vpop.permute.xlu0 %1213
    %v1216 = vmul.f32 %v1180, %v1214
    %v1217 = vadd.f32 %v1204, %v1216
    %s1218 = scalar_lea.vmem [#allocation6], 2
    %v1219 = vld [vmem:[%s1218] sm:$0x1]
    %v1220 = vunpack.c.l.bf16 %v1219
    %1221 = vrot.lane.b32.xlu0 %v1188, 32
    %v1222 = vpop.permute.xlu0 %1221
    %v1224 = vadd.f32 %v1220, %v1222
    %v1225 = vxor.u32 %v1224, 2147483648
    %v1226 = vmul.f32 %v1225, 1.442695
    %v1227 = vpow.pop %v1226
    %v1228 = vadd.f32 %v1227, 1.0
    %v1229 = vrcp.pop %v1228
    %v1230 = vmul.f32 1.0, %v1229
    %v1233 = vunpack.c.l.s4 1983009808
    %v1234 = vunpack.c.0.s8 %v1233
    %v1235 = vlaneseq
    %v1236 = vshrl.u32 %v1235, 7
    %v1237 = vsub.s32 %v1234, %v1236
    %v1238 = vrot.slane %v1167, %v1237
    %1239 = vrot.lane.b32.xlu0 %v1238, 32
    %v1240 = vpop.permute.xlu0 %1239
    %v1242 = vadd.f32 %v1220, %v1240
    %v1243 = vxor.u32 %v1242, 2147483648
    %v1244 = vmul.f32 %v1243, 1.442695
    %v1245 = vpow.pop %v1244
    %v1246 = vadd.f32 %v1245, 1.0
    %v1247 = vrcp.pop %v1246
    %v1248 = vmul.f32 1.0, %v1247
    %1249 = vrot.lane.b32.xlu0 %v1238, 96
    %v1250 = vpop.permute.xlu0 %1249
    %v1252 = vmul.f32 %v1230, %v1250
    %1254 = vrot.lane.b32.xlu0 %v1252, 64
    %v1255 = vpop.permute.xlu0 %1254
    %v1257 = vadd.f32 %v1220, %v1255
    %v1258 = vtanh.pop %v1257
    %v1259 = vsub.f32 1.0, %v1248
    %1261 = vrot.lane.b32.xlu0 %v1258, 96
    %v1262 = vpop.permute.xlu0 %1261
    %v1264 = vmul.f32 %v1259, %v1262
    %v1265 = vmul.f32 %v1248, %v1125
    %v1266 = vadd.f32 %v1264, %v1265
    %v1267 = vpack.c.bf16 %v1217, %v1217
    %v1270 = vunpack.c.l.s4 1966171168
    %v1271 = vunpack.c.0.s8 %v1270
    %v1272 = vlaneseq
    %v1273 = vshrl.u32 %v1272, 7
    %v1274 = vsub.s32 %v1271, %v1273
    %v1275 = vrot.slane %v1267, %v1274
    %v1277 = vunpack.c.l.s4 1966171168
    %v1278 = vunpack.c.0.s8 %v1277
    %v1279 = vlaneseq
    %v1280 = vshrl.u32 %v1279, 7
    %v1281 = vsub.s32 %v1278, %v1280
    %v1282 = vrot.slane %v1275, %v1281
    %1283 = vrot.lane.b32.xlu0 %v1282, 96
    %v1284 = vpop.permute.xlu0 %1283
    %s1286 = scalar_lea.vmem [#allocation11], 5
    %1287 = vst.msk [vmem:[%s1286] sm:$0x1] %vm310, %v1284
    %v1288 = vpack.c.bf16 %v1266, %v1266
    %v1291 = vunpack.c.l.s4 1966171168
    %v1292 = vunpack.c.0.s8 %v1291
    %v1293 = vlaneseq
    %v1294 = vshrl.u32 %v1293, 7
    %v1295 = vsub.s32 %v1292, %v1294
    %v1296 = vrot.slane %v1288, %v1295
    %v1298 = vunpack.c.l.s4 1966171168
    %v1299 = vunpack.c.0.s8 %v1298
    %v1300 = vlaneseq
    %v1301 = vshrl.u32 %v1300, 7
    %v1302 = vsub.s32 %v1299, %v1301
    %v1303 = vrot.slane %v1296, %v1302
    %1304 = vrot.lane.b32.xlu0 %v1303, 96
    %v1305 = vpop.permute.xlu0 %1304
    %s1307 = scalar_lea.vmem [#allocation12], 2
    %1308 = vst.msk [vmem:[%s1307] sm:$0x1] %vm310, %v1305
    %v1311 = vunpack.c.l.s4 1983009808
    %v1312 = vunpack.c.0.s8 %v1311
    %v1313 = vlaneseq
    %v1314 = vshrl.u32 %v1313, 7
    %v1315 = vsub.s32 %v1312, %v1314
    %v1316 = vrot.slane %v1217, %v1315
    %1317 = vrot.lane.b32.xlu0 %v1316, 96
    %v1318 = vpop.permute.xlu0 %1317
    %v1320 = vsel %vm344, %v1318, %v1266
    %v1321 = vpack.c.bf16 %v1320, %v1320
    %v1323 = vsel %vm151, %v1321, 0
    %1325 = vmatprep.subr.bf16.mxu0 %v136
    %1326 = vmatpush1.bf16.msra.mxu0 %v135
    %1327 = vmatprep.subr.bf16.mxu0 %v138
    %1328 = vmatpush1.bf16.msra.mxu0 %v137
    %1329 = vmatprep.subr.bf16.mxu0 %v140
    %1330 = vmatpush1.bf16.msra.mxu0 %v139
    %1331 = vmatprep.subr.bf16.mxu0 %v142
    %1332 = vmatpush1.bf16.msra.mxu0 %v141
    %1333 = vmatprep.subr.bf16.mxu0 0
    %1334 = vmatpush1.bf16.msra.mxu0 0
    %1335 = vmatprep.subr.bf16.mxu0 0
    %1336 = vmatpush1.bf16.msra.mxu0 0
    %1337 = vmatprep.subr.bf16.mxu0 0
    %1338 = vmatpush1.bf16.msra.mxu0 0
    %1339 = vmatprep.subr.bf16.mxu0 0
    %1340 = vmatpush1.bf16.msra.mxu0 0
    %1341 = vmatprep.subr.bf16.mxu0 0
    %1342 = vmatpush1.bf16.msra.mxu0 0
    %1343 = vmatprep.subr.bf16.mxu0 0
    %1344 = vmatpush1.bf16.msra.mxu0 0
    %1345 = vmatprep.subr.bf16.mxu0 0
    %1346 = vmatpush1.bf16.msra.mxu0 0
    %1347 = vmatprep.subr.bf16.mxu0 0
    %1348 = vmatpush1.bf16.msra.mxu0 0
    %1349 = vmatprep.subr.bf16.mxu0 0
    %1350 = vmatpush1.bf16.msra.mxu0 0
    %1351 = vmatprep.subr.bf16.mxu0 0
    %1352 = vmatpush1.bf16.msra.mxu0 0
    %1353 = vmatprep.subr.bf16.mxu0 0
    %1354 = vmatpush1.bf16.msra.mxu0 0
    %1355 = vmatprep.subr.bf16.mxu0 0
    %1356 = vmatpush1.bf16.msra.mxu0 0
    %1357 = vmatprep.mubr.bf16.mxu0 0
    %1358 = vmatmul.mubr.bf16.gmra.mrb[0].mxu0 %v1323
    %v1359 = vpop.f32.mrb[0].mxu0
    %v1360 = vadd.f32 %v102, %v1359
    %v1361 = vpop.f32.mrb[0].mxu0
    %v1362 = vadd.f32 %v106, %v1361
    %v1363 = vpop.f32.mrb[0].mxu0
    %v1364 = vpop.f32.mrb[0].mxu0
    %1365 = vdwg.mxu0
    %s1366 = scalar_lea.vmem [#allocation3], 6
    %v1367 = vld [vmem:[%s1366] sm:$0x1]
    %v1368 = vunpack.c.l.bf16 %v1367
    %v1369 = vadd.f32 %v1368, %v1360
    %v1370 = vxor.u32 %v1369, 2147483648
    %v1371 = vmul.f32 %v1370, 1.442695
    %v1372 = vpow.pop %v1371
    %v1373 = vadd.f32 %v1372, 1.0
    %v1374 = vrcp.pop %v1373
    %v1375 = vmul.f32 1.0, %v1374
    %v1378 = vunpack.c.l.s4 1983009808
    %v1379 = vunpack.c.0.s8 %v1378
    %v1380 = vlaneseq
    %v1381 = vshrl.u32 %v1380, 7
    %v1382 = vsub.s32 %v1379, %v1381
    %v1383 = vrot.slane %v1360, %v1382
    %1384 = vrot.lane.b32.xlu0 %v1383, 64
    %v1385 = vpop.permute.xlu0 %1384
    %v1387 = vmul.f32 %v1375, %v1385
    %1389 = vrot.lane.b32.xlu0 %v1387, 64
    %v1390 = vpop.permute.xlu0 %1389
    %v1392 = vadd.f32 %v1368, %v1390
    %v1393 = vtanh.pop %v1392
    %v1394 = vsub.f32 1.0, %v1375
    %1396 = vrot.lane.b32.xlu0 %v1393, 96
    %v1397 = vpop.permute.xlu0 %1396
    %v1399 = vmul.f32 %v1394, %v1397
    %v1402 = vunpack.c.l.s4 1983009808
    %v1403 = vunpack.c.0.s8 %v1402
    %v1404 = vlaneseq
    %v1405 = vshrl.u32 %v1404, 7
    %v1406 = vsub.s32 %v1403, %v1405
    %v1407 = vrot.slane %v1320, %v1406
    %1408 = vrot.lane.b32.xlu0 %v1407, 32
    %v1409 = vpop.permute.xlu0 %1408
    %v1411 = vmul.f32 %v1375, %v1409
    %v1412 = vadd.f32 %v1399, %v1411
    %s1413 = scalar_lea.vmem [#allocation6], 1
    %v1414 = vld [vmem:[%s1413] sm:$0x1]
    %v1415 = vunpack.c.l.bf16 %v1414
    %1416 = vrot.lane.b32.xlu0 %v1383, 32
    %v1417 = vpop.permute.xlu0 %1416
    %v1419 = vadd.f32 %v1415, %v1417
    %v1420 = vxor.u32 %v1419, 2147483648
    %v1421 = vmul.f32 %v1420, 1.442695
    %v1422 = vpow.pop %v1421
    %v1423 = vadd.f32 %v1422, 1.0
    %v1424 = vrcp.pop %v1423
    %v1425 = vmul.f32 1.0, %v1424
    %v1428 = vunpack.c.l.s4 1983009808
    %v1429 = vunpack.c.0.s8 %v1428
    %v1430 = vlaneseq
    %v1431 = vshrl.u32 %v1430, 7
    %v1432 = vsub.s32 %v1429, %v1431
    %v1433 = vrot.slane %v1362, %v1432
    %1434 = vrot.lane.b32.xlu0 %v1433, 32
    %v1435 = vpop.permute.xlu0 %1434
    %v1437 = vadd.f32 %v1415, %v1435
    %v1438 = vxor.u32 %v1437, 2147483648
    %v1439 = vmul.f32 %v1438, 1.442695
    %v1440 = vpow.pop %v1439
    %v1441 = vadd.f32 %v1440, 1.0
    %v1442 = vrcp.pop %v1441
    %v1443 = vmul.f32 1.0, %v1442
    %1444 = vrot.lane.b32.xlu0 %v1433, 96
    %v1445 = vpop.permute.xlu0 %1444
    %v1447 = vmul.f32 %v1425, %v1445
    %1449 = vrot.lane.b32.xlu0 %v1447, 64
    %v1450 = vpop.permute.xlu0 %1449
    %v1452 = vadd.f32 %v1415, %v1450
    %v1453 = vtanh.pop %v1452
    %v1454 = vsub.f32 1.0, %v1443
    %1456 = vrot.lane.b32.xlu0 %v1453, 96
    %v1457 = vpop.permute.xlu0 %1456
    %v1459 = vmul.f32 %v1454, %v1457
    %v1460 = vmul.f32 %v1443, %v1320
    %v1461 = vadd.f32 %v1459, %v1460
    %v1462 = vpack.c.bf16 %v1412, %v1412
    %v1465 = vunpack.c.l.s4 1966171168
    %v1466 = vunpack.c.0.s8 %v1465
    %v1467 = vlaneseq
    %v1468 = vshrl.u32 %v1467, 7
    %v1469 = vsub.s32 %v1466, %v1468
    %v1470 = vrot.slane %v1462, %v1469
    %v1472 = vunpack.c.l.s4 1966171168
    %v1473 = vunpack.c.0.s8 %v1472
    %v1474 = vlaneseq
    %v1475 = vshrl.u32 %v1474, 7
    %v1476 = vsub.s32 %v1473, %v1475
    %v1477 = vrot.slane %v1470, %v1476
    %1478 = vrot.lane.b32.xlu0 %v1477, 96
    %v1479 = vpop.permute.xlu0 %1478
    %s1481 = scalar_lea.vmem [#allocation11], 6
    %1482 = vst.msk [vmem:[%s1481] sm:$0x1] %vm310, %v1479
    %v1483 = vpack.c.bf16 %v1461, %v1461
    %v1486 = vunpack.c.l.s4 1966171168
    %v1487 = vunpack.c.0.s8 %v1486
    %v1488 = vlaneseq
    %v1489 = vshrl.u32 %v1488, 7
    %v1490 = vsub.s32 %v1487, %v1489
    %v1491 = vrot.slane %v1483, %v1490
    %v1493 = vunpack.c.l.s4 1966171168
    %v1494 = vunpack.c.0.s8 %v1493
    %v1495 = vlaneseq
    %v1496 = vshrl.u32 %v1495, 7
    %v1497 = vsub.s32 %v1494, %v1496
    %v1498 = vrot.slane %v1491, %v1497
    %1499 = vrot.lane.b32.xlu0 %v1498, 96
    %v1500 = vpop.permute.xlu0 %1499
    %s1502 = scalar_lea.vmem [#allocation12], 1
    %1503 = vst.msk [vmem:[%s1502] sm:$0x1] %vm310, %v1500
    %v1506 = vunpack.c.l.s4 1983009808
    %v1507 = vunpack.c.0.s8 %v1506
    %v1508 = vlaneseq
    %v1509 = vshrl.u32 %v1508, 7
    %v1510 = vsub.s32 %v1507, %v1509
    %v1511 = vrot.slane %v1412, %v1510
    %1512 = vrot.lane.b32.xlu0 %v1511, 96
    %v1513 = vpop.permute.xlu0 %1512
    %v1515 = vsel %vm344, %v1513, %v1461
    %v1516 = vpack.c.bf16 %v1515, %v1515
    %v1518 = vsel %vm151, %v1516, 0
    %1520 = vmatprep.subr.bf16.mxu0 %v136
    %1521 = vmatpush1.bf16.msra.mxu0 %v135
    %1522 = vmatprep.subr.bf16.mxu0 %v138
    %1523 = vmatpush1.bf16.msra.mxu0 %v137
    %1524 = vmatprep.subr.bf16.mxu0 %v140
    %1525 = vmatpush1.bf16.msra.mxu0 %v139
    %1526 = vmatprep.subr.bf16.mxu0 %v142
    %1527 = vmatpush1.bf16.msra.mxu0 %v141
    %1528 = vmatprep.subr.bf16.mxu0 0
    %1529 = vmatpush1.bf16.msra.mxu0 0
    %1530 = vmatprep.subr.bf16.mxu0 0
    %1531 = vmatpush1.bf16.msra.mxu0 0
    %1532 = vmatprep.subr.bf16.mxu0 0
    %1533 = vmatpush1.bf16.msra.mxu0 0
    %1534 = vmatprep.subr.bf16.mxu0 0
    %1535 = vmatpush1.bf16.msra.mxu0 0
    %1536 = vmatprep.subr.bf16.mxu0 0
    %1537 = vmatpush1.bf16.msra.mxu0 0
    %1538 = vmatprep.subr.bf16.mxu0 0
    %1539 = vmatpush1.bf16.msra.mxu0 0
    %1540 = vmatprep.subr.bf16.mxu0 0
    %1541 = vmatpush1.bf16.msra.mxu0 0
    %1542 = vmatprep.subr.bf16.mxu0 0
    %1543 = vmatpush1.bf16.msra.mxu0 0
    %1544 = vmatprep.subr.bf16.mxu0 0
    %1545 = vmatpush1.bf16.msra.mxu0 0
    %1546 = vmatprep.subr.bf16.mxu0 0
    %1547 = vmatpush1.bf16.msra.mxu0 0
    %1548 = vmatprep.subr.bf16.mxu0 0
    %1549 = vmatpush1.bf16.msra.mxu0 0
    %1550 = vmatprep.subr.bf16.mxu0 0
    %1551 = vmatpush1.bf16.msra.mxu0 0
    %1552 = vmatprep.mubr.bf16.mxu0 0
    %1553 = vmatmul.mubr.bf16.gmra.mrb[0].mxu0 %v1518
    %v1554 = vpop.f32.mrb[0].mxu0
    %v1555 = vadd.f32 %v102, %v1554
    %v1556 = vpop.f32.mrb[0].mxu0
    %v1557 = vadd.f32 %v106, %v1556
    %v1558 = vpop.f32.mrb[0].mxu0
    %v1559 = vpop.f32.mrb[0].mxu0
    %1560 = vdwg.mxu0
    %s1561 = scalar_lea.vmem [#allocation3], 7
    %v1562 = vld [vmem:[%s1561] sm:$0x1]
    %v1563 = vunpack.c.l.bf16 %v1562
    %v1564 = vadd.f32 %v1563, %v1555
    %v1565 = vxor.u32 %v1564, 2147483648
    %v1566 = vmul.f32 %v1565, 1.442695
    %v1567 = vpow.pop %v1566
    %v1568 = vadd.f32 %v1567, 1.0
    %v1569 = vrcp.pop %v1568
    %v1570 = vmul.f32 1.0, %v1569
    %v1573 = vunpack.c.l.s4 1983009808
    %v1574 = vunpack.c.0.s8 %v1573
    %v1575 = vlaneseq
    %v1576 = vshrl.u32 %v1575, 7
    %v1577 = vsub.s32 %v1574, %v1576
    %v1578 = vrot.slane %v1555, %v1577
    %1579 = vrot.lane.b32.xlu0 %v1578, 64
    %v1580 = vpop.permute.xlu0 %1579
    %v1582 = vmul.f32 %v1570, %v1580
    %1584 = vrot.lane.b32.xlu0 %v1582, 64
    %v1585 = vpop.permute.xlu0 %1584
    %v1587 = vadd.f32 %v1563, %v1585
    %v1588 = vtanh.pop %v1587
    %v1589 = vsub.f32 1.0, %v1570
    %1591 = vrot.lane.b32.xlu0 %v1588, 96
    %v1592 = vpop.permute.xlu0 %1591
    %v1594 = vmul.f32 %v1589, %v1592
    %v1597 = vunpack.c.l.s4 1983009808
    %v1598 = vunpack.c.0.s8 %v1597
    %v1599 = vlaneseq
    %v1600 = vshrl.u32 %v1599, 7
    %v1601 = vsub.s32 %v1598, %v1600
    %v1602 = vrot.slane %v1515, %v1601
    %1603 = vrot.lane.b32.xlu0 %v1602, 32
    %v1604 = vpop.permute.xlu0 %1603
    %v1606 = vmul.f32 %v1570, %v1604
    %v1607 = vadd.f32 %v1594, %v1606
    %v1608 = vld [vmem:[#allocation6] sm:$0x1]
    %v1609 = vunpack.c.l.bf16 %v1608
    %1610 = vrot.lane.b32.xlu0 %v1578, 32
    %v1611 = vpop.permute.xlu0 %1610
    %v1613 = vadd.f32 %v1609, %v1611
    %v1614 = vxor.u32 %v1613, 2147483648
    %v1615 = vmul.f32 %v1614, 1.442695
    %v1616 = vpow.pop %v1615
    %v1617 = vadd.f32 %v1616, 1.0
    %v1618 = vrcp.pop %v1617
    %v1619 = vmul.f32 1.0, %v1618
    %v1622 = vunpack.c.l.s4 1983009808
    %v1623 = vunpack.c.0.s8 %v1622
    %v1624 = vlaneseq
    %v1625 = vshrl.u32 %v1624, 7
    %v1626 = vsub.s32 %v1623, %v1625
    %v1627 = vrot.slane %v1557, %v1626
    %1628 = vrot.lane.b32.xlu0 %v1627, 32
    %v1629 = vpop.permute.xlu0 %1628
    %v1631 = vadd.f32 %v1609, %v1629
    %v1632 = vxor.u32 %v1631, 2147483648
    %v1633 = vmul.f32 %v1632, 1.442695
    %v1634 = vpow.pop %v1633
    %v1635 = vadd.f32 %v1634, 1.0
    %v1636 = vrcp.pop %v1635
    %v1637 = vmul.f32 1.0, %v1636
    %1638 = vrot.lane.b32.xlu0 %v1627, 96
    %v1639 = vpop.permute.xlu0 %1638
    %v1641 = vmul.f32 %v1619, %v1639
    %1643 = vrot.lane.b32.xlu0 %v1641, 64
    %v1644 = vpop.permute.xlu0 %1643
    %v1646 = vadd.f32 %v1609, %v1644
    %v1647 = vtanh.pop %v1646
    %v1648 = vsub.f32 1.0, %v1637
    %1650 = vrot.lane.b32.xlu0 %v1647, 96
    %v1651 = vpop.permute.xlu0 %1650
    %v1653 = vmul.f32 %v1648, %v1651
    %v1654 = vmul.f32 %v1637, %v1515
    %v1655 = vadd.f32 %v1653, %v1654
    %v1656 = vpack.c.bf16 %v1607, %v1607
    %v1659 = vunpack.c.l.s4 1966171168
    %v1660 = vunpack.c.0.s8 %v1659
    %v1661 = vlaneseq
    %v1662 = vshrl.u32 %v1661, 7
    %v1663 = vsub.s32 %v1660, %v1662
    %v1664 = vrot.slane %v1656, %v1663
    %v1666 = vunpack.c.l.s4 1966171168
    %v1667 = vunpack.c.0.s8 %v1666
    %v1668 = vlaneseq
    %v1669 = vshrl.u32 %v1668, 7
    %v1670 = vsub.s32 %v1667, %v1669
    %v1671 = vrot.slane %v1664, %v1670
    %1672 = vrot.lane.b32.xlu0 %v1671, 96
    %v1673 = vpop.permute.xlu0 %1672
    %s1675 = scalar_lea.vmem [#allocation11], 7
    %1676 = vst.msk [vmem:[%s1675] sm:$0x1] %vm310, %v1673
    %v1677 = vpack.c.bf16 %v1655, %v1655
    %v1680 = vunpack.c.l.s4 1966171168
    %v1681 = vunpack.c.0.s8 %v1680
    %v1682 = vlaneseq
    %v1683 = vshrl.u32 %v1682, 7
    %v1684 = vsub.s32 %v1681, %v1683
    %v1685 = vrot.slane %v1677, %v1684
    %v1687 = vunpack.c.l.s4 1966171168
    %v1688 = vunpack.c.0.s8 %v1687
    %v1689 = vlaneseq
    %v1690 = vshrl.u32 %v1689, 7
    %v1691 = vsub.s32 %v1688, %v1690
    %v1692 = vrot.slane %v1685, %v1691
    %1693 = vrot.lane.b32.xlu0 %v1692, 96
    %v1694 = vpop.permute.xlu0 %1693
    %1696 = vst.msk [vmem:[#allocation12] sm:$0x1] %vm310, %v1694
    %v1699 = vunpack.c.l.s4 1983009808
    %v1700 = vunpack.c.0.s8 %v1699
    %v1701 = vlaneseq
    %v1702 = vshrl.u32 %v1701, 7
    %v1703 = vsub.s32 %v1700, %v1702
    %v1704 = vrot.slane %v1607, %v1703
    %1705 = vrot.lane.b32.xlu0 %v1704, 96
    %v1706 = vpop.permute.xlu0 %1705
    %v1708 = vsel %vm344, %v1706, %v1655
    %vm1709 = vcmask 517120
    %1710 = vst.msk [vmem:[#allocation2] sm:$0x3] %vm1709, %v1708
    // Predicated region
    $region38: #{residual_bigru_forward.2} parent=1 // pred_check
      _
    $region39: #{residual_bigru_forward.2} parent=1 // pred_check_branch
      %1712 = sbr.rel (0) target = $region41
    $region40: #{residual_bigru_forward.2} parent=1 // pred_region
      %s1714 = ssub.s32 128, 128
      %1715 = vsyncadd [#allocation5], %s1714
      %s1716 = sshll.u32 [#allocation11], 4
      %s1717 = int_to_ptr.vmem [resolvable:$true] %s1716
      %1722 = dma.vmem_to_hbm [thread:$0]  %s1717, 128, %s4, [#allocation5], 16, 16, 1
    $region41: #{residual_bigru_forward.2} parent=1 // pred_fallthru
      _
    // Predicated region
    $region42: #{residual_bigru_forward.2} parent=1 // pred_check
      _
    $region43: #{residual_bigru_forward.2} parent=1 // pred_check_branch
      %1724 = sbr.rel (0) target = $region45
    $region44: #{residual_bigru_forward.2} parent=1 // pred_region
      %s1725 = ssub.s32 0, 0
      %s1726 = smul.u32 8, %s1725
      %s1728 = ssub.s32 128, 128
      %1729 = vsyncadd [#allocation13], %s1728
      %s1730 = smul.addr %s1726, 16
      %s1731 = scalar_lea.hbm %s5, %s1730
      %s1732 = sshll.u32 [#allocation12], 4
      %s1733 = int_to_ptr.vmem [resolvable:$true] %s1732
      %1738 = dma.vmem_to_hbm [thread:$0]  %s1733, 128, %s1731, [#allocation13], 16, 16, 1
    $region45: #{residual_bigru_forward.2} parent=1 // pred_fallthru
      _
    // Predicated region
    $region46: #{residual_bigru_forward.2} parent=1 // pred_check
      _
    $region47: #{residual_bigru_forward.2} parent=1 // pred_check_branch
      %1740 = sbr.rel (0) target = $region49
    $region48: #{residual_bigru_forward.2} parent=1 // pred_region
      %1741 = dma.done [#allocation5], 128
    $region49: #{residual_bigru_forward.2} parent=1 // pred_fallthru
      _
    // Predicated region
    $region50: #{residual_bigru_forward.2} parent=1 // pred_check
      _
    $region51: #{residual_bigru_forward.2} parent=1 // pred_check_branch
      %1743 = sbr.rel (0) target = $region53
    $region52: #{residual_bigru_forward.2} parent=1 // pred_region
      %1744 = dma.done [#allocation13], 128
    $region53: #{residual_bigru_forward.2} parent=1 // pred_fallthru
      _
    %1745 = vsyncpa [#allocation4], 1
    %1746 = vsyncpa [#allocation7], 1
    %1747 = vsyncpa [#allocation10], 1
    %1748 = vsyncpa [#allocation5], 1
    %1749 = vsyncpa [#allocation13], 1

</llo_original>
